<compile_context>
chip_gen: v7x
topology: tpu7x:2x2x1
jax: 0.10.0
libtpu: 0.0.40
codegen_flags: <defaults>
</compile_context>

<pallas_src>
import jax
import jax.numpy as jnp
from jax.experimental import pallas as pl
from jax.experimental.pallas import tpu as pltpu

H_IN, W_IN, C_IN = 32, 32, 3
LANES_IN = 128            # W_IN * C_IN = 96, zero-padded to a full 128-lane vreg
OUT_LANES = 128           # lane-dense logits (10 valid lanes)
MAX_BATCH_TILE = 128      # samples per grid step (multiple of 8)


# ------------------------------ fused kernel --------------------------------

def _lenet_fused_kernel(x_ref, t1_ref, cb1_ref, t2_ref, cb2_ref,
                        w1_ref, fb1_ref, w2_ref, fb2_ref, w3_ref, fb3_ref,
                        out_ref, x_scr, scr1w, x2_scr, scr2w):
    f32 = jnp.float32
    bf16 = jnp.bfloat16
    rows1 = x_ref.shape[0]          # B*32 rows (row = sample*32 + h)
    rows2 = rows1 // 2              # B*16 rows after pool1
    b_tile = out_ref.shape[0]       # B
    kh = t1_ref.shape[0]            # 5
    np1 = cb1_ref.shape[1]          # 84  = 14 pooled widths * 6 ch
    np2 = cb2_ref.shape[1]          # 80  = 5 pooled widths * 16 ch
    n_ph = w1_ref.shape[0] // np2   # 5 pooled heights feeding fc1

    # Stage the input tile with an 8-row zero tail so the kh shifted-window
    # reads below never run past the buffer.  Rows shifted across a sample's
    # 32-row slab only feed per-sample output rows >= 28, which are invalid
    # and (by the pooling / gather strides below) never consumed.
    x_scr[pl.ds(0, rows1), :] = x_ref[...]
    x_scr[pl.ds(rows1, 8), :] = jnp.zeros((8, x_scr.shape[1]), x_scr.dtype)

    # ---- conv1: one bf16 matmul per kernel-row offset against merged
    # even|odd Toeplitz weights (2*84 = 168 output lanes).  LHS windows are
    # plain ref slices (no concatenate copies).
    acc = jnp.dot(x_scr[pl.ds(0, rows1), :], t1_ref[0], preferred_element_type=f32)
    for i in range(1, kh):
        acc = acc + jnp.dot(x_scr[pl.ds(i, rows1), :], t1_ref[i],
                            preferred_element_type=f32)
    # 2x2 max-pool: width = even|odd lane halves, height = even|odd row stride.
    # Bias + ReLU commute with max, so they run on the pooled (1/4-size) slab.
    scr1w[...] = jnp.maximum(acc[:, :np1], acc[:, np1:])
    p1 = jnp.maximum(scr1w[pl.ds(0, rows2, stride=2), :],
                     scr1w[pl.ds(1, rows2, stride=2), :])
    p1 = jnp.maximum(p1 + cb1_ref[...], 0.0)
    x2_scr[pl.ds(0, rows2), :] = p1.astype(bf16)
    x2_scr[pl.ds(rows2, 8), :] = jnp.zeros((8, x2_scr.shape[1]), x2_scr.dtype)

    # ---- conv2 (2*80 = 160 merged output lanes), same scheme.
    acc2 = jnp.dot(x2_scr[pl.ds(0, rows2), :], t2_ref[0], preferred_element_type=f32)
    for i in range(1, kh):
        acc2 = acc2 + jnp.dot(x2_scr[pl.ds(i, rows2), :], t2_ref[i],
                              preferred_element_type=f32)
    scr2w[...] = jnp.maximum(acc2[:, :np2], acc2[:, np2:])

    # Height pool fused with the PyTorch (C,H,W)-flatten gather: one row per
    # sample per pooled height, concatenated into a single (B, 400) fc1 operand.
    parts = []
    for ph in range(n_ph):
        row = jnp.maximum(scr2w[pl.ds(2 * ph, b_tile, stride=16), :],
                          scr2w[pl.ds(2 * ph + 1, b_tile, stride=16), :])
        parts.append(jnp.maximum(row + cb2_ref[...], 0.0).astype(bf16))
    flat = jnp.concatenate(parts, axis=1)                      # (B, 400) bf16

    # ---- fc1 -> fc2 -> fc3 (logits live in lanes 0..9 of a dense 128-lane out)
    h1 = jnp.maximum(jnp.dot(flat, w1_ref[...], preferred_element_type=f32)
                     + fb1_ref[...], 0.0)
    h2 = jnp.maximum(jnp.dot(h1.astype(bf16), w2_ref[...],
                             preferred_element_type=f32) + fb2_ref[...], 0.0)
    logits = jnp.dot(h2.astype(bf16), w3_ref[...],
                     preferred_element_type=f32) + fb3_ref[...]
    out_ref[...] = logits.astype(out_ref.dtype)


# ------------------------- wrapper-side weight packing -----------------------

def _conv_toeplitz_merged(w_hwio, w_in, lanes_in):
    """Pack HWIO conv weights into per-row-offset matmul matrices with MERGED
    even|odd output-width parities in the lanes.

    T has shape (kh, lanes_in, 2 * (Wo//2) * Cout) with
      T[i, win*Cin + ci, parity*Wp*Cout + pw*Cout + co] = w[i, j, ci, co]
    where win = 2*pw + parity + j, so (activation_row @ T[i]) summed over i
    gives conv outputs at widths 2*pw (first half) and 2*pw+1 (second half).
    """
    kh, kw, cin, cout = w_hwio.shape
    wo = w_in - kw + 1
    wp = wo // 2
    t = jnp.zeros((kh, lanes_in, 2 * wp * cout), jnp.float32)
    for parity in (0, 1):
        base = parity * wp * cout
        for j in range(kw):
            for pw in range(wp):
                win = 2 * pw + parity + j
                t = t.at[:, win * cin:(win + 1) * cin,
                         base + pw * cout: base + (pw + 1) * cout].set(w_hwio[:, j])
    return t


def _choose_tiling(n):
    """Pick (batch_tile, n_tiles, n_padded).  Keeps >= 2 tiles when there is
    enough work so v7x's two TensorCores both get a share of the batch."""
    n8 = ((max(n, 1) + 7) // 8) * 8
    bt = min(MAX_BATCH_TILE, n8)
    if 16 <= n8 <= MAX_BATCH_TILE:
        bt = ((n8 // 2 + 7) // 8) * 8
    tiles = (n8 + bt - 1) // bt
    return bt, tiles, tiles * bt


# --------------------------- parameters & model ------------------------------

def init_params(key):
    """PyTorch-style uniform(-1/sqrt(fan_in), +1/sqrt(fan_in)) init.
    Conv weights are HWIO; fc weights are (in, out)."""
    def uniform(k, shape, fan_in):
        bound = 1.0 / float(fan_in) ** 0.5
        return jax.random.uniform(k, shape, jnp.float32, -bound, bound)

    ks = jax.random.split(key, 10)
    return {
        "conv1_w": uniform(ks[0], (5, 5, 3, 6), 3 * 5 * 5),
        "conv1_b": uniform(ks[1], (6,), 3 * 5 * 5),
        "conv2_w": uniform(ks[2], (5, 5, 6, 16), 6 * 5 * 5),
        "conv2_b": uniform(ks[3], (16,), 6 * 5 * 5),
        "fc1_w": uniform(ks[4], (16 * 5 * 5, 120), 16 * 5 * 5),
        "fc1_b": uniform(ks[5], (120,), 16 * 5 * 5),
        "fc2_w": uniform(ks[6], (120, 84), 120),
        "fc2_b": uniform(ks[7], (84,), 120),
        "fc3_w": uniform(ks[8], (84, 10), 84),
        "fc3_b": uniform(ks[9], (10,), 84),
    }


def net_forward(params, x_nchw):
    """Matches Net.forward.  x_nchw: (N, 3, 32, 32) float32 -> (N, 10)."""
    n = x_nchw.shape[0]
    assert x_nchw.shape[1:] == (C_IN, H_IN, W_IN), x_nchw.shape  # fc1 = 16*5*5 pins 32x32
    bt, tiles, n_pad = _choose_tiling(n)
    rows1 = bt * 32
    rows2 = bt * 16

    # Input prep (cheap XLA glue): NCHW -> NHWC -> (N, H, W*C) -> pad -> bf16.
    x = jnp.transpose(x_nchw, (0, 2, 3, 1)).astype(jnp.float32)        # (N,32,32,3)
    x = x.reshape(n, H_IN, W_IN * C_IN)
    x = jnp.pad(x, ((0, n_pad - n), (0, 0), (0, LANES_IN - W_IN * C_IN)))
    x2d = x.reshape(n_pad * H_IN, LANES_IN).astype(jnp.bfloat16)       # rows = b*32 + h

    # Pack weights once (all glue outside the kernel); matmul operands in bf16.
    bf16, f32 = jnp.bfloat16, jnp.float32
    t1 = _conv_toeplitz_merged(params["conv1_w"], W_IN, LANES_IN).astype(bf16)  # (5,128,168)
    cb1 = jnp.tile(params["conv1_b"], 14).reshape(1, 84).astype(f32)
    t2 = _conv_toeplitz_merged(params["conv2_w"], 14, 84).astype(bf16)          # (5,84,160)
    cb2 = jnp.tile(params["conv2_b"], 5).reshape(1, 80).astype(f32)
    # fc1 rows reordered so the kernel's (ph, pw, c) lane order reproduces the
    # PyTorch (C, H, W) flatten exactly: row[ph*80 + pw*16 + c] = fc1_w[c*25 + ph*5 + pw].
    w1 = (params["fc1_w"].reshape(16, 5, 5, 120)
          .transpose(1, 2, 0, 3).reshape(400, 120).astype(bf16))
    fb1 = params["fc1_b"].reshape(1, 120).astype(f32)
    w2 = params["fc2_w"].astype(bf16)
    fb2 = params["fc2_b"].reshape(1, 84).astype(f32)
    w3 = jnp.pad(params["fc3_w"], ((0, 0), (0, OUT_LANES - 10))).astype(bf16)   # (84,128)
    fb3 = jnp.pad(params["fc3_b"], (0, OUT_LANES - 10)).reshape(1, OUT_LANES).astype(f32)

    weights = (t1, cb1, t2, cb2, w1, fb1, w2, fb2, w3, fb3)

    def resident(a):  # weights stay VMEM-resident across the batch grid
        nd = a.ndim
        return pl.BlockSpec(a.shape, lambda b, _nd=nd: (0,) * _nd)

    flops_per_tile = (2 * 5 * rows1 * 128 * 168 +          # conv1 (merged e/o)
                      2 * 5 * rows2 * 84 * 160 +           # conv2 (merged e/o)
                      2 * bt * (400 * 120 + 120 * 84 + 84 * OUT_LANES))
    weight_bytes = sum(int(a.size) * jnp.dtype(a.dtype).itemsize for a in weights)
    cost = pl.CostEstimate(flops=int(tiles * flops_per_tile), transcendentals=0,
                           bytes_accessed=int(x2d.size) * 2 + weight_bytes
                           + n_pad * OUT_LANES * 4)

    vmem_limit = 32 * 1024 * 1024 if bt <= 32 else 64 * 1024 * 1024

    out = pl.pallas_call(
        _lenet_fused_kernel,
        out_shape=jax.ShapeDtypeStruct((n_pad, OUT_LANES), jnp.float32),
        grid_spec=pltpu.PrefetchScalarGridSpec(
            num_scalar_prefetch=0,
            grid=(tiles,),
            in_specs=[pl.BlockSpec((rows1, LANES_IN), lambda b: (b, 0))]  # input tile
                     + [resident(a) for a in weights],
            out_specs=pl.BlockSpec((bt, OUT_LANES), lambda b: (b, 0)),
            scratch_shapes=[
                pltpu.VMEM((rows1 + 8, LANES_IN), jnp.bfloat16),  # staged input (+zero tail)
                pltpu.VMEM((rows1, 84), jnp.float32),             # conv1 width-pooled
                pltpu.VMEM((rows2 + 8, 84), jnp.bfloat16),        # pool1 out / conv2 input
                pltpu.VMEM((rows2, 80), jnp.float32),             # conv2 width-pooled
            ],
        ),
        compiler_params=pltpu.CompilerParams(
            dimension_semantics=("parallel",),
            vmem_limit_bytes=vmem_limit,
        ),
        cost_estimate=cost,
    )(x2d, *weights)

    return out[:n, :10]


# ------------------------- pure-JAX reference (f32) --------------------------

def net_forward_reference(params, x_nchw):
    x = jnp.transpose(x_nchw, (0, 2, 3, 1)).astype(jnp.float32)        # NHWC

    def conv(y, w, b):
        y = jax.lax.conv_general_dilated(y, w, (1, 1), "VALID",
                                         dimension_numbers=("NHWC", "HWIO", "NHWC"))
        return jax.nn.relu(y + b)

    def pool(y):
        return jax.lax.reduce_window(y, -jnp.inf, jax.lax.max,
                                     (1, 2, 2, 1), (1, 2, 2, 1), "VALID")

    x = pool(conv(x, params["conv1_w"], params["conv1_b"]))
    x = pool(conv(x, params["conv2_w"], params["conv2_b"]))
    x = jnp.transpose(x, (0, 3, 1, 2)).reshape(x.shape[0], -1)          # PyTorch (C,H,W) flatten
    x = jax.nn.relu(x @ params["fc1_w"] + params["fc1_b"])
    x = jax.nn.relu(x @ params["fc2_w"] + params["fc2_b"])
    return x @ params["fc3_w"] + params["fc3_b"]


if __name__ == "__main__":
    key = jax.random.PRNGKey(0)
    pkey, xkey = jax.random.split(key)
    params = init_params(pkey)
    # fc1's 16*5*5 pins the spatial size: input must be (N, 3, 32, 32).
    # N=12 exercises batch padding and a 2-tile grid.
    x = jax.random.normal(xkey, (12, 3, 32, 32), jnp.float32)
    out = jax.block_until_ready(jax.jit(net_forward)(params, x))
    assert out.shape == (12, 10), out.shape
    ref = jax.block_until_ready(jax.jit(net_forward_reference)(params, x))
    err = float(jnp.max(jnp.abs(out - ref)))
    assert err < 3e-2, f"max |kernel - reference| = {err}"
    print("KERNEL_OK")
</pallas_src>

<mosaic_0001>
module attributes {stable_mosaic.version = 11 : i64} {
  func.func @_lenet_fused_kernel(%arg0: i32, %arg1: memref<256x128xbf16, #tpu.memory_space<vmem>>, %arg2: memref<5x128x168xbf16, #tpu.memory_space<vmem>>, %arg3: memref<1x84xf32, #tpu.memory_space<vmem>>, %arg4: memref<5x84x160xbf16, #tpu.memory_space<vmem>>, %arg5: memref<1x80xf32, #tpu.memory_space<vmem>>, %arg6: memref<400x120xbf16, #tpu.memory_space<vmem>>, %arg7: memref<1x120xf32, #tpu.memory_space<vmem>>, %arg8: memref<120x84xbf16, #tpu.memory_space<vmem>>, %arg9: memref<1x84xf32, #tpu.memory_space<vmem>>, %arg10: memref<84x128xbf16, #tpu.memory_space<vmem>>, %arg11: memref<1x128xf32, #tpu.memory_space<vmem>>, %arg12: memref<8x128xf32, #tpu.memory_space<vmem>>, %arg13: memref<264x128xbf16, #tpu.memory_space<vmem>>, %arg14: memref<256x84xf32, #tpu.memory_space<vmem>>, %arg15: memref<136x84xbf16, #tpu.memory_space<vmem>>, %arg16: memref<128x80xf32, #tpu.memory_space<vmem>>) attributes {dimension_semantics = [#tpu.dimension_semantics<parallel>], iteration_bounds = array<i64: 2>, scalar_prefetch = 0 : i64, scratch_operands = 4 : i64, tpu.core_type = #tpu.core_type<tc>, window_params = [{transform_indices = @transform_0, window_bounds = array<i64: 256, 128>}, {pipeline_mode = #tpu.pipeline_mode<synchronous>, transform_indices = @transform_1, window_bounds = array<i64: 5, 128, 168>}, {pipeline_mode = #tpu.pipeline_mode<synchronous>, transform_indices = @transform_2, window_bounds = array<i64: 1, 84>}, {pipeline_mode = #tpu.pipeline_mode<synchronous>, transform_indices = @transform_3, window_bounds = array<i64: 5, 84, 160>}, {pipeline_mode = #tpu.pipeline_mode<synchronous>, transform_indices = @transform_4, window_bounds = array<i64: 1, 80>}, {pipeline_mode = #tpu.pipeline_mode<synchronous>, transform_indices = @transform_5, window_bounds = array<i64: 400, 120>}, {pipeline_mode = #tpu.pipeline_mode<synchronous>, transform_indices = @transform_6, window_bounds = array<i64: 1, 120>}, {pipeline_mode = #tpu.pipeline_mode<synchronous>, transform_indices = @transform_7, window_bounds = array<i64: 120, 84>}, {pipeline_mode = #tpu.pipeline_mode<synchronous>, transform_indices = @transform_8, window_bounds = array<i64: 1, 84>}, {pipeline_mode = #tpu.pipeline_mode<synchronous>, transform_indices = @transform_9, window_bounds = array<i64: 84, 128>}, {pipeline_mode = #tpu.pipeline_mode<synchronous>, transform_indices = @transform_10, window_bounds = array<i64: 1, 128>}, {transform_indices = @transform_11, window_bounds = array<i64: 8, 128>}]} {
    %c0 = arith.constant 0 : index
    %c0_0 = arith.constant 0 : index
    %0 = vector.load %arg1[%c0, %c0_0] : memref<256x128xbf16, #tpu.memory_space<vmem>>, vector<256x128xbf16>
    %c0_1 = arith.constant 0 : index
    %c0_2 = arith.constant 0 : index
    %1 = vector.load %arg13[%c0_1, %c0_2] : memref<264x128xbf16, #tpu.memory_space<vmem>>, vector<256x128xbf16>
    tpu.vector_store %arg13[%c0_1, %c0_2], %0 {strides = array<i32>} : memref<264x128xbf16, #tpu.memory_space<vmem>>, vector<256x128xbf16>,
    %cst = arith.constant 0.000000e+00 : bf16
    %2 = vector.broadcast %cst : bf16 to vector<8x128xbf16>
    %c256 = arith.constant 256 : index
    %c0_3 = arith.constant 0 : index
    %3 = vector.load %arg13[%c256, %c0_3] : memref<264x128xbf16, #tpu.memory_space<vmem>>, vector<8x128xbf16>
    tpu.vector_store %arg13[%c256, %c0_3], %2 {strides = array<i32>} : memref<264x128xbf16, #tpu.memory_space<vmem>>, vector<8x128xbf16>,
    %c0_4 = arith.constant 0 : index
    %c0_5 = arith.constant 0 : index
    %4 = vector.load %arg13[%c0_4, %c0_5] : memref<264x128xbf16, #tpu.memory_space<vmem>>, vector<256x128xbf16>
    %c0_6 = arith.constant 0 : index
    %c0_7 = arith.constant 0 : index
    %c0_8 = arith.constant 0 : index
    %5 = vector.load %arg2[%c0_6, %c0_7, %c0_8] : memref<5x128x168xbf16, #tpu.memory_space<vmem>>, vector<1x128x168xbf16>
    %6 = vector.shape_cast %5 : vector<1x128x168xbf16> to vector<128x168xbf16>
    %cst_9 = arith.constant dense<0.000000e+00> : vector<256x168xf32>
    %7 = tpu.matmul %4, %6, %cst_9 {dimension_numbers = #tpu.dot_dimension_numbers<[1], [0], [0], [1], [0, 0, 1, 1], [], []>} : vector<256x128xbf16>, vector<128x168xbf16>, vector<256x168xf32> -> vector<256x168xf32>
    %c1 = arith.constant 1 : index
    %c0_10 = arith.constant 0 : index
    %8 = vector.load %arg13[%c1, %c0_10] : memref<264x128xbf16, #tpu.memory_space<vmem>>, vector<256x128xbf16>
    %c1_11 = arith.constant 1 : index
    %c0_12 = arith.constant 0 : index
    %c0_13 = arith.constant 0 : index
    %9 = vector.load %arg2[%c1_11, %c0_12, %c0_13] : memref<5x128x168xbf16, #tpu.memory_space<vmem>>, vector<1x128x168xbf16>
    %10 = vector.shape_cast %9 : vector<1x128x168xbf16> to vector<128x168xbf16>
    %cst_14 = arith.constant dense<0.000000e+00> : vector<256x168xf32>
    %11 = tpu.matmul %8, %10, %cst_14 {dimension_numbers = #tpu.dot_dimension_numbers<[1], [0], [0], [1], [0, 0, 1, 1], [], []>} : vector<256x128xbf16>, vector<128x168xbf16>, vector<256x168xf32> -> vector<256x168xf32>
    %12 = arith.addf %7, %11 : vector<256x168xf32>
    %c2 = arith.constant 2 : index
    %c0_15 = arith.constant 0 : index
    %13 = vector.load %arg13[%c2, %c0_15] : memref<264x128xbf16, #tpu.memory_space<vmem>>, vector<256x128xbf16>
    %c2_16 = arith.constant 2 : index
    %c0_17 = arith.constant 0 : index
    %c0_18 = arith.constant 0 : index
    %14 = vector.load %arg2[%c2_16, %c0_17, %c0_18] : memref<5x128x168xbf16, #tpu.memory_space<vmem>>, vector<1x128x168xbf16>
    %15 = vector.shape_cast %14 : vector<1x128x168xbf16> to vector<128x168xbf16>
    %cst_19 = arith.constant dense<0.000000e+00> : vector<256x168xf32>
    %16 = tpu.matmul %13, %15, %cst_19 {dimension_numbers = #tpu.dot_dimension_numbers<[1], [0], [0], [1], [0, 0, 1, 1], [], []>} : vector<256x128xbf16>, vector<128x168xbf16>, vector<256x168xf32> -> vector<256x168xf32>
    %17 = arith.addf %12, %16 : vector<256x168xf32>
    %c3 = arith.constant 3 : index
    %c0_20 = arith.constant 0 : index
    %18 = vector.load %arg13[%c3, %c0_20] : memref<264x128xbf16, #tpu.memory_space<vmem>>, vector<256x128xbf16>
    %c3_21 = arith.constant 3 : index
    %c0_22 = arith.constant 0 : index
    %c0_23 = arith.constant 0 : index
    %19 = vector.load %arg2[%c3_21, %c0_22, %c0_23] : memref<5x128x168xbf16, #tpu.memory_space<vmem>>, vector<1x128x168xbf16>
    %20 = vector.shape_cast %19 : vector<1x128x168xbf16> to vector<128x168xbf16>
    %cst_24 = arith.constant dense<0.000000e+00> : vector<256x168xf32>
    %21 = tpu.matmul %18, %20, %cst_24 {dimension_numbers = #tpu.dot_dimension_numbers<[1], [0], [0], [1], [0, 0, 1, 1], [], []>} : vector<256x128xbf16>, vector<128x168xbf16>, vector<256x168xf32> -> vector<256x168xf32>
    %22 = arith.addf %17, %21 : vector<256x168xf32>
    %c4 = arith.constant 4 : index
    %c0_25 = arith.constant 0 : index
    %23 = vector.load %arg13[%c4, %c0_25] : memref<264x128xbf16, #tpu.memory_space<vmem>>, vector<256x128xbf16>
    %c4_26 = arith.constant 4 : index
    %c0_27 = arith.constant 0 : index
    %c0_28 = arith.constant 0 : index
    %24 = vector.load %arg2[%c4_26, %c0_27, %c0_28] : memref<5x128x168xbf16, #tpu.memory_space<vmem>>, vector<1x128x168xbf16>
    %25 = vector.shape_cast %24 : vector<1x128x168xbf16> to vector<128x168xbf16>
    %cst_29 = arith.constant dense<0.000000e+00> : vector<256x168xf32>
    %26 = tpu.matmul %23, %25, %cst_29 {dimension_numbers = #tpu.dot_dimension_numbers<[1], [0], [0], [1], [0, 0, 1, 1], [], []>} : vector<256x128xbf16>, vector<128x168xbf16>, vector<256x168xf32> -> vector<256x168xf32>
    %27 = arith.addf %22, %26 : vector<256x168xf32>
    %28 = vector.extract_strided_slice %27 {offsets = [0, 0], sizes = [256, 84], strides = [1, 1]} : vector<256x168xf32> to vector<256x84xf32>
    %29 = vector.extract_strided_slice %27 {offsets = [0, 84], sizes = [256, 84], strides = [1, 1]} : vector<256x168xf32> to vector<256x84xf32>
    %30 = arith.maximumf %28, %29 : vector<256x84xf32>
    %c0_30 = arith.constant 0 : index
    %c0_31 = arith.constant 0 : index
    %31 = vector.load %arg14[%c0_30, %c0_31] : memref<256x84xf32, #tpu.memory_space<vmem>>, vector<256x84xf32>
    tpu.vector_store %arg14[%c0_30, %c0_31], %30 {strides = array<i32>} : memref<256x84xf32, #tpu.memory_space<vmem>>, vector<256x84xf32>,
    %c0_32 = arith.constant 0 : index
    %c0_33 = arith.constant 0 : index
    %32 = tpu.strided_load %arg14[%c0_32, %c0_33] {strides = array<i32: 2, 1>} : memref<256x84xf32, #tpu.memory_space<vmem>>, vector<128x84xf32>
    %c1_34 = arith.constant 1 : index
    %c0_35 = arith.constant 0 : index
    %33 = tpu.strided_load %arg14[%c1_34, %c0_35] {strides = array<i32: 2, 1>} : memref<256x84xf32, #tpu.memory_space<vmem>>, vector<128x84xf32>
    %34 = arith.maximumf %32, %33 : vector<128x84xf32>
    %c0_36 = arith.constant 0 : index
    %c0_37 = arith.constant 0 : index
    %35 = vector.load %arg3[%c0_36, %c0_37] : memref<1x84xf32, #tpu.memory_space<vmem>>, vector<1x84xf32>
    %36 = vector.broadcast %35 : vector<1x84xf32> to vector<128x84xf32>
    %37 = arith.addf %34, %36 : vector<128x84xf32>
    %cst_38 = arith.constant 0.000000e+00 : f32
    %38 = vector.broadcast %cst_38 : f32 to vector<128x84xf32>
    %39 = arith.maximumf %37, %38 : vector<128x84xf32>
    %40 = arith.truncf %39 : vector<128x84xf32> to vector<128x84xbf16>
    %c0_39 = arith.constant 0 : index
    %c0_40 = arith.constant 0 : index
    %41 = vector.load %arg15[%c0_39, %c0_40] : memref<136x84xbf16, #tpu.memory_space<vmem>>, vector<128x84xbf16>
    tpu.vector_store %arg15[%c0_39, %c0_40], %40 {strides = array<i32>} : memref<136x84xbf16, #tpu.memory_space<vmem>>, vector<128x84xbf16>,
    %cst_41 = arith.constant 0.000000e+00 : bf16
    %42 = vector.broadcast %cst_41 : bf16 to vector<8x84xbf16>
    %c128 = arith.constant 128 : index
    %c0_42 = arith.constant 0 : index
    %43 = vector.load %arg15[%c128, %c0_42] : memref<136x84xbf16, #tpu.memory_space<vmem>>, vector<8x84xbf16>
    tpu.vector_store %arg15[%c128, %c0_42], %42 {strides = array<i32>} : memref<136x84xbf16, #tpu.memory_space<vmem>>, vector<8x84xbf16>,
    %c0_43 = arith.constant 0 : index
    %c0_44 = arith.constant 0 : index
    %44 = vector.load %arg15[%c0_43, %c0_44] : memref<136x84xbf16, #tpu.memory_space<vmem>>, vector<128x84xbf16>
    %c0_45 = arith.constant 0 : index
    %c0_46 = arith.constant 0 : index
    %c0_47 = arith.constant 0 : index
    %45 = vector.load %arg4[%c0_45, %c0_46, %c0_47] : memref<5x84x160xbf16, #tpu.memory_space<vmem>>, vector<1x84x160xbf16>
    %46 = vector.shape_cast %45 : vector<1x84x160xbf16> to vector<84x160xbf16>
    %cst_48 = arith.constant dense<0.000000e+00> : vector<128x160xf32>
    %47 = tpu.matmul %44, %46, %cst_48 {dimension_numbers = #tpu.dot_dimension_numbers<[1], [0], [0], [1], [0, 0, 1, 1], [], []>} : vector<128x84xbf16>, vector<84x160xbf16>, vector<128x160xf32> -> vector<128x160xf32>
    %c1_49 = arith.constant 1 : index
    %c0_50 = arith.constant 0 : index
    %48 = vector.load %arg15[%c1_49, %c0_50] : memref<136x84xbf16, #tpu.memory_space<vmem>>, vector<128x84xbf16>
    %c1_51 = arith.constant 1 : index
    %c0_52 = arith.constant 0 : index
    %c0_53 = arith.constant 0 : index
    %49 = vector.load %arg4[%c1_51, %c0_52, %c0_53] : memref<5x84x160xbf16, #tpu.memory_space<vmem>>, vector<1x84x160xbf16>
    %50 = vector.shape_cast %49 : vector<1x84x160xbf16> to vector<84x160xbf16>
    %cst_54 = arith.constant dense<0.000000e+00> : vector<128x160xf32>
    %51 = tpu.matmul %48, %50, %cst_54 {dimension_numbers = #tpu.dot_dimension_numbers<[1], [0], [0], [1], [0, 0, 1, 1], [], []>} : vector<128x84xbf16>, vector<84x160xbf16>, vector<128x160xf32> -> vector<128x160xf32>
    %52 = arith.addf %47, %51 : vector<128x160xf32>
    %c2_55 = arith.constant 2 : index
    %c0_56 = arith.constant 0 : index
    %53 = vector.load %arg15[%c2_55, %c0_56] : memref<136x84xbf16, #tpu.memory_space<vmem>>, vector<128x84xbf16>
    %c2_57 = arith.constant 2 : index
    %c0_58 = arith.constant 0 : index
    %c0_59 = arith.constant 0 : index
    %54 = vector.load %arg4[%c2_57, %c0_58, %c0_59] : memref<5x84x160xbf16, #tpu.memory_space<vmem>>, vector<1x84x160xbf16>
    %55 = vector.shape_cast %54 : vector<1x84x160xbf16> to vector<84x160xbf16>
    %cst_60 = arith.constant dense<0.000000e+00> : vector<128x160xf32>
    %56 = tpu.matmul %53, %55, %cst_60 {dimension_numbers = #tpu.dot_dimension_numbers<[1], [0], [0], [1], [0, 0, 1, 1], [], []>} : vector<128x84xbf16>, vector<84x160xbf16>, vector<128x160xf32> -> vector<128x160xf32>
    %57 = arith.addf %52, %56 : vector<128x160xf32>
    %c3_61 = arith.constant 3 : index
    %c0_62 = arith.constant 0 : index
    %58 = vector.load %arg15[%c3_61, %c0_62] : memref<136x84xbf16, #tpu.memory_space<vmem>>, vector<128x84xbf16>
    %c3_63 = arith.constant 3 : index
    %c0_64 = arith.constant 0 : index
    %c0_65 = arith.constant 0 : index
    %59 = vector.load %arg4[%c3_63, %c0_64, %c0_65] : memref<5x84x160xbf16, #tpu.memory_space<vmem>>, vector<1x84x160xbf16>
    %60 = vector.shape_cast %59 : vector<1x84x160xbf16> to vector<84x160xbf16>
    %cst_66 = arith.constant dense<0.000000e+00> : vector<128x160xf32>
    %61 = tpu.matmul %58, %60, %cst_66 {dimension_numbers = #tpu.dot_dimension_numbers<[1], [0], [0], [1], [0, 0, 1, 1], [], []>} : vector<128x84xbf16>, vector<84x160xbf16>, vector<128x160xf32> -> vector<128x160xf32>
    %62 = arith.addf %57, %61 : vector<128x160xf32>
    %c4_67 = arith.constant 4 : index
    %c0_68 = arith.constant 0 : index
    %63 = vector.load %arg15[%c4_67, %c0_68] : memref<136x84xbf16, #tpu.memory_space<vmem>>, vector<128x84xbf16>
    %c4_69 = arith.constant 4 : index
    %c0_70 = arith.constant 0 : index
    %c0_71 = arith.constant 0 : index
    %64 = vector.load %arg4[%c4_69, %c0_70, %c0_71] : memref<5x84x160xbf16, #tpu.memory_space<vmem>>, vector<1x84x160xbf16>
    %65 = vector.shape_cast %64 : vector<1x84x160xbf16> to vector<84x160xbf16>
    %cst_72 = arith.constant dense<0.000000e+00> : vector<128x160xf32>
    %66 = tpu.matmul %63, %65, %cst_72 {dimension_numbers = #tpu.dot_dimension_numbers<[1], [0], [0], [1], [0, 0, 1, 1], [], []>} : vector<128x84xbf16>, vector<84x160xbf16>, vector<128x160xf32> -> vector<128x160xf32>
    %67 = arith.addf %62, %66 : vector<128x160xf32>
    %68 = vector.extract_strided_slice %67 {offsets = [0, 0], sizes = [128, 80], strides = [1, 1]} : vector<128x160xf32> to vector<128x80xf32>
    %69 = vector.extract_strided_slice %67 {offsets = [0, 80], sizes = [128, 80], strides = [1, 1]} : vector<128x160xf32> to vector<128x80xf32>
    %70 = arith.maximumf %68, %69 : vector<128x80xf32>
    %c0_73 = arith.constant 0 : index
    %c0_74 = arith.constant 0 : index
    %71 = vector.load %arg16[%c0_73, %c0_74] : memref<128x80xf32, #tpu.memory_space<vmem>>, vector<128x80xf32>
    tpu.vector_store %arg16[%c0_73, %c0_74], %70 {strides = array<i32>} : memref<128x80xf32, #tpu.memory_space<vmem>>, vector<128x80xf32>,
    %c0_75 = arith.constant 0 : index
    %c0_76 = arith.constant 0 : index
    %72 = tpu.strided_load %arg16[%c0_75, %c0_76] {strides = array<i32: 16, 1>} : memref<128x80xf32, #tpu.memory_space<vmem>>, vector<8x80xf32>
    %c1_77 = arith.constant 1 : index
    %c0_78 = arith.constant 0 : index
    %73 = tpu.strided_load %arg16[%c1_77, %c0_78] {strides = array<i32: 16, 1>} : memref<128x80xf32, #tpu.memory_space<vmem>>, vector<8x80xf32>
    %74 = arith.maximumf %72, %73 : vector<8x80xf32>
    %c0_79 = arith.constant 0 : index
    %c0_80 = arith.constant 0 : index
    %75 = vector.load %arg5[%c0_79, %c0_80] : memref<1x80xf32, #tpu.memory_space<vmem>>, vector<1x80xf32>
    %76 = vector.broadcast %75 : vector<1x80xf32> to vector<8x80xf32>
    %77 = arith.addf %74, %76 : vector<8x80xf32>
    %cst_81 = arith.constant 0.000000e+00 : f32
    %78 = vector.broadcast %cst_81 : f32 to vector<8x80xf32>
    %79 = arith.maximumf %77, %78 : vector<8x80xf32>
    %80 = arith.truncf %79 : vector<8x80xf32> to vector<8x80xbf16>
    %c2_82 = arith.constant 2 : index
    %c0_83 = arith.constant 0 : index
    %81 = tpu.strided_load %arg16[%c2_82, %c0_83] {strides = array<i32: 16, 1>} : memref<128x80xf32, #tpu.memory_space<vmem>>, vector<8x80xf32>
    %c3_84 = arith.constant 3 : index
    %c0_85 = arith.constant 0 : index
    %82 = tpu.strided_load %arg16[%c3_84, %c0_85] {strides = array<i32: 16, 1>} : memref<128x80xf32, #tpu.memory_space<vmem>>, vector<8x80xf32>
    %83 = arith.maximumf %81, %82 : vector<8x80xf32>
    %c0_86 = arith.constant 0 : index
    %c0_87 = arith.constant 0 : index
    %84 = vector.load %arg5[%c0_86, %c0_87] : memref<1x80xf32, #tpu.memory_space<vmem>>, vector<1x80xf32>
    %85 = vector.broadcast %84 : vector<1x80xf32> to vector<8x80xf32>
    %86 = arith.addf %83, %85 : vector<8x80xf32>
    %cst_88 = arith.constant 0.000000e+00 : f32
    %87 = vector.broadcast %cst_88 : f32 to vector<8x80xf32>
    %88 = arith.maximumf %86, %87 : vector<8x80xf32>
    %89 = arith.truncf %88 : vector<8x80xf32> to vector<8x80xbf16>
    %c4_89 = arith.constant 4 : index
    %c0_90 = arith.constant 0 : index
    %90 = tpu.strided_load %arg16[%c4_89, %c0_90] {strides = array<i32: 16, 1>} : memref<128x80xf32, #tpu.memory_space<vmem>>, vector<8x80xf32>
    %c5 = arith.constant 5 : index
    %c0_91 = arith.constant 0 : index
    %91 = tpu.strided_load %arg16[%c5, %c0_91] {strides = array<i32: 16, 1>} : memref<128x80xf32, #tpu.memory_space<vmem>>, vector<8x80xf32>
    %92 = arith.maximumf %90, %91 : vector<8x80xf32>
    %c0_92 = arith.constant 0 : index
    %c0_93 = arith.constant 0 : index
    %93 = vector.load %arg5[%c0_92, %c0_93] : memref<1x80xf32, #tpu.memory_space<vmem>>, vector<1x80xf32>
    %94 = vector.broadcast %93 : vector<1x80xf32> to vector<8x80xf32>
    %95 = arith.addf %92, %94 : vector<8x80xf32>
    %cst_94 = arith.constant 0.000000e+00 : f32
    %96 = vector.broadcast %cst_94 : f32 to vector<8x80xf32>
    %97 = arith.maximumf %95, %96 : vector<8x80xf32>
    %98 = arith.truncf %97 : vector<8x80xf32> to vector<8x80xbf16>
    %c6 = arith.constant 6 : index
    %c0_95 = arith.constant 0 : index
    %99 = tpu.strided_load %arg16[%c6, %c0_95] {strides = array<i32: 16, 1>} : memref<128x80xf32, #tpu.memory_space<vmem>>, vector<8x80xf32>
    %c7 = arith.constant 7 : index
    %c0_96 = arith.constant 0 : index
    %100 = tpu.strided_load %arg16[%c7, %c0_96] {strides = array<i32: 16, 1>} : memref<128x80xf32, #tpu.memory_space<vmem>>, vector<8x80xf32>
    %101 = arith.maximumf %99, %100 : vector<8x80xf32>
    %c0_97 = arith.constant 0 : index
    %c0_98 = arith.constant 0 : index
    %102 = vector.load %arg5[%c0_97, %c0_98] : memref<1x80xf32, #tpu.memory_space<vmem>>, vector<1x80xf32>
    %103 = vector.broadcast %102 : vector<1x80xf32> to vector<8x80xf32>
    %104 = arith.addf %101, %103 : vector<8x80xf32>
    %cst_99 = arith.constant 0.000000e+00 : f32
    %105 = vector.broadcast %cst_99 : f32 to vector<8x80xf32>
    %106 = arith.maximumf %104, %105 : vector<8x80xf32>
    %107 = arith.truncf %106 : vector<8x80xf32> to vector<8x80xbf16>
    %c8 = arith.constant 8 : index
    %c0_100 = arith.constant 0 : index
    %108 = tpu.strided_load %arg16[%c8, %c0_100] {strides = array<i32: 16, 1>} : memref<128x80xf32, #tpu.memory_space<vmem>>, vector<8x80xf32>
    %c9 = arith.constant 9 : index
    %c0_101 = arith.constant 0 : index
    %109 = tpu.strided_load %arg16[%c9, %c0_101] {strides = array<i32: 16, 1>} : memref<128x80xf32, #tpu.memory_space<vmem>>, vector<8x80xf32>
    %110 = arith.maximumf %108, %109 : vector<8x80xf32>
    %c0_102 = arith.constant 0 : index
    %c0_103 = arith.constant 0 : index
    %111 = vector.load %arg5[%c0_102, %c0_103] : memref<1x80xf32, #tpu.memory_space<vmem>>, vector<1x80xf32>
    %112 = vector.broadcast %111 : vector<1x80xf32> to vector<8x80xf32>
    %113 = arith.addf %110, %112 : vector<8x80xf32>
    %cst_104 = arith.constant 0.000000e+00 : f32
    %114 = vector.broadcast %cst_104 : f32 to vector<8x80xf32>
    %115 = arith.maximumf %113, %114 : vector<8x80xf32>
    %116 = arith.truncf %115 : vector<8x80xf32> to vector<8x80xbf16>
    %117 = tpu.concatenate %80, %89, %98, %107, %116 in 1 : vector<8x80xbf16>, vector<8x80xbf16>, vector<8x80xbf16>, vector<8x80xbf16>, vector<8x80xbf16> -> vector<8x400xbf16>
    %c0_105 = arith.constant 0 : index
    %c0_106 = arith.constant 0 : index
    %118 = vector.load %arg6[%c0_105, %c0_106] : memref<400x120xbf16, #tpu.memory_space<vmem>>, vector<400x120xbf16>
    %cst_107 = arith.constant dense<0.000000e+00> : vector<8x120xf32>
    %119 = tpu.matmul %117, %118, %cst_107 {dimension_numbers = #tpu.dot_dimension_numbers<[1], [0], [0], [1], [0, 0, 1, 1], [], []>} : vector<8x400xbf16>, vector<400x120xbf16>, vector<8x120xf32> -> vector<8x120xf32>
    %c0_108 = arith.constant 0 : index
    %c0_109 = arith.constant 0 : index
    %120 = vector.load %arg7[%c0_108, %c0_109] : memref<1x120xf32, #tpu.memory_space<vmem>>, vector<1x120xf32>
    %121 = vector.broadcast %120 : vector<1x120xf32> to vector<8x120xf32>
    %122 = arith.addf %119, %121 : vector<8x120xf32>
    %cst_110 = arith.constant 0.000000e+00 : f32
    %123 = vector.broadcast %cst_110 : f32 to vector<8x120xf32>
    %124 = arith.maximumf %122, %123 : vector<8x120xf32>
    %125 = arith.truncf %124 : vector<8x120xf32> to vector<8x120xbf16>
    %c0_111 = arith.constant 0 : index
    %c0_112 = arith.constant 0 : index
    %126 = vector.load %arg8[%c0_111, %c0_112] : memref<120x84xbf16, #tpu.memory_space<vmem>>, vector<120x84xbf16>
    %cst_113 = arith.constant dense<0.000000e+00> : vector<8x84xf32>
    %127 = tpu.matmul %125, %126, %cst_113 {dimension_numbers = #tpu.dot_dimension_numbers<[1], [0], [0], [1], [0, 0, 1, 1], [], []>} : vector<8x120xbf16>, vector<120x84xbf16>, vector<8x84xf32> -> vector<8x84xf32>
    %c0_114 = arith.constant 0 : index
    %c0_115 = arith.constant 0 : index
    %128 = vector.load %arg9[%c0_114, %c0_115] : memref<1x84xf32, #tpu.memory_space<vmem>>, vector<1x84xf32>
    %129 = vector.broadcast %128 : vector<1x84xf32> to vector<8x84xf32>
    %130 = arith.addf %127, %129 : vector<8x84xf32>
    %cst_116 = arith.constant 0.000000e+00 : f32
    %131 = vector.broadcast %cst_116 : f32 to vector<8x84xf32>
    %132 = arith.maximumf %130, %131 : vector<8x84xf32>
    %133 = arith.truncf %132 : vector<8x84xf32> to vector<8x84xbf16>
    %c0_117 = arith.constant 0 : index
    %c0_118 = arith.constant 0 : index
    %134 = vector.load %arg10[%c0_117, %c0_118] : memref<84x128xbf16, #tpu.memory_space<vmem>>, vector<84x128xbf16>
    %cst_119 = arith.constant dense<0.000000e+00> : vector<8x128xf32>
    %135 = tpu.matmul %133, %134, %cst_119 {dimension_numbers = #tpu.dot_dimension_numbers<[1], [0], [0], [1], [0, 0, 1, 1], [], []>} : vector<8x84xbf16>, vector<84x128xbf16>, vector<8x128xf32> -> vector<8x128xf32>
    %c0_120 = arith.constant 0 : index
    %c0_121 = arith.constant 0 : index
    %136 = vector.load %arg11[%c0_120, %c0_121] : memref<1x128xf32, #tpu.memory_space<vmem>>, vector<1x128xf32>
    %137 = vector.broadcast %136 : vector<1x128xf32> to vector<8x128xf32>
    %138 = arith.addf %135, %137 : vector<8x128xf32>
    %c0_122 = arith.constant 0 : index
    %c0_123 = arith.constant 0 : index
    %139 = vector.load %arg12[%c0_122, %c0_123] : memref<8x128xf32, #tpu.memory_space<vmem>>, vector<8x128xf32>
    tpu.vector_store %arg12[%c0_122, %c0_123], %138 {strides = array<i32>} : memref<8x128xf32, #tpu.memory_space<vmem>>, vector<8x128xf32>,
    return
  }
  func.func @transform_0(%arg0: i32) -> (i32, i32) {
    %c0_i32 = arith.constant 0 : i32
    %c0_i32_0 = arith.constant 0 : i32
    return %arg0, %c0_i32 : i32, i32
  }
  func.func @transform_1(%arg0: i32) -> (i32, i32, i32) {
    %c0_i32 = arith.constant 0 : i32
    %c0_i32_0 = arith.constant 0 : i32
    %c0_i32_1 = arith.constant 0 : i32
    %c0_i32_2 = arith.constant 0 : i32
    return %c0_i32, %c0_i32_0, %c0_i32_1 : i32, i32, i32
  }
  func.func @transform_2(%arg0: i32) -> (i32, i32) {
    %c0_i32 = arith.constant 0 : i32
    %c0_i32_0 = arith.constant 0 : i32
    %c0_i32_1 = arith.constant 0 : i32
    return %c0_i32, %c0_i32_0 : i32, i32
  }
  func.func @transform_3(%arg0: i32) -> (i32, i32, i32) {
    %c0_i32 = arith.constant 0 : i32
    %c0_i32_0 = arith.constant 0 : i32
    %c0_i32_1 = arith.constant 0 : i32
    %c0_i32_2 = arith.constant 0 : i32
    return %c0_i32, %c0_i32_0, %c0_i32_1 : i32, i32, i32
  }
  func.func @transform_4(%arg0: i32) -> (i32, i32) {
    %c0_i32 = arith.constant 0 : i32
    %c0_i32_0 = arith.constant 0 : i32
    %c0_i32_1 = arith.constant 0 : i32
    return %c0_i32, %c0_i32_0 : i32, i32
  }
  func.func @transform_5(%arg0: i32) -> (i32, i32) {
    %c0_i32 = arith.constant 0 : i32
    %c0_i32_0 = arith.constant 0 : i32
    %c0_i32_1 = arith.constant 0 : i32
    return %c0_i32, %c0_i32_0 : i32, i32
  }
  func.func @transform_6(%arg0: i32) -> (i32, i32) {
    %c0_i32 = arith.constant 0 : i32
    %c0_i32_0 = arith.constant 0 : i32
    %c0_i32_1 = arith.constant 0 : i32
    return %c0_i32, %c0_i32_0 : i32, i32
  }
  func.func @transform_7(%arg0: i32) -> (i32, i32) {
    %c0_i32 = arith.constant 0 : i32
    %c0_i32_0 = arith.constant 0 : i32
    %c0_i32_1 = arith.constant 0 : i32
    return %c0_i32, %c0_i32_0 : i32, i32
  }
  func.func @transform_8(%arg0: i32) -> (i32, i32) {
    %c0_i32 = arith.constant 0 : i32
    %c0_i32_0 = arith.constant 0 : i32
    %c0_i32_1 = arith.constant 0 : i32
    return %c0_i32, %c0_i32_0 : i32, i32
  }
  func.func @transform_9(%arg0: i32) -> (i32, i32) {
    %c0_i32 = arith.constant 0 : i32
    %c0_i32_0 = arith.constant 0 : i32
    %c0_i32_1 = arith.constant 0 : i32
    return %c0_i32, %c0_i32_0 : i32, i32
  }
  func.func @transform_10(%arg0: i32) -> (i32, i32) {
    %c0_i32 = arith.constant 0 : i32
    %c0_i32_0 = arith.constant 0 : i32
    %c0_i32_1 = arith.constant 0 : i32
    return %c0_i32, %c0_i32_0 : i32, i32
  }
  func.func @transform_11(%arg0: i32) -> (i32, i32) {
    %c0_i32 = arith.constant 0 : i32
    %c0_i32_0 = arith.constant 0 : i32
    return %arg0, %c0_i32 : i32, i32
  }
}

</mosaic_0001>

<llo_original>
// kernel: tile.13
$region0: #{tile.13}
  #allocation0 [shape = 's32[1]{0}', space=sflag, size = 0x4, scoped, tag = 'scoped memory for tile.13']
  %s0 = inlined_call_operand.vmem [shape: f32[6], index: 0, kind: input, shape index: {}]
  %s1 = inlined_call_operand.vmem [shape: f32[14,6], index: 1, kind: output, shape index: {}]
  // Predicated region
  $region2: #{tile.13} parent=0 // pred_check
    _
  $region3: #{tile.13} parent=0 // pred_check_branch
    %3 = sbr.rel (0) target = $region5
  $region4: #{tile.13} parent=0 // pred_region
    _
  $region5: #{tile.13} parent=0 // pred_fallthru
    _
  %v4 = vld [vmem:[%s0] ss:$0 sm:$0xff]
  %5 = vst [vmem:[%s1] sm:$0xff] %v4
  %s6 = scalar_lea.vmem %s1, 8
  %7 = vst [vmem:[%s6] sm:$0xff] %v4

// kernel: tile.14
$region0: #{tile.14}
  %s0 = inlined_call_operand.vmem [shape: f32[14,6], index: 0, kind: input, shape index: {}]
  %s1 = inlined_call_operand.vmem [shape: f32[1,84], index: 1, kind: output, shape index: {}]
  $region1: #{tile.14} parent=0
    #allocation0 [shape = 'u8[4096]{0}', space=vmem, size = 0x1000, scoped, tag = 'scoped mem for output reshape']
    %v2 = vld [vmem:[%s0] sm:$0x1]
    %vm3 = vcmask 48128
    %4 = vst.msk [vmem:[#allocation0] sm:$0x1] %vm3, %v2
    %s5 = scalar_lea.vmem %s0, 13
    %v6 = vld [vmem:[%s5] sm:$0x1]
    %7 = vrot.lane.b32.xlu0 %v6, 78
    %v8 = vpop.permute.xlu0 %7
    %vm9 = vcmask 687728
    %10 = vst.msk [vmem:[#allocation0] sm:$0x1] %vm9, %v8
    %s11 = scalar_lea.vmem %s0, 12
    %v12 = vld [vmem:[%s11] sm:$0x1]
    %13 = vrot.lane.b32.xlu0 %v12, 72
    %v14 = vpop.permute.xlu0 %13
    %vm15 = vcmask 638528
    %16 = vst.msk [vmem:[#allocation0] sm:$0x1] %vm15, %v14
    %s17 = scalar_lea.vmem %s0, 11
    %v18 = vld [vmem:[%s17] sm:$0x1]
    %19 = vrot.lane.b32.xlu0 %v18, 66
    %v20 = vpop.permute.xlu0 %19
    %vm21 = vcmask 589328
    %22 = vst.msk [vmem:[#allocation0] sm:$0x1] %vm21, %v20
    %s23 = scalar_lea.vmem %s0, 10
    %v24 = vld [vmem:[%s23] sm:$0x1]
    %25 = vrot.lane.b32.xlu0 %v24, 60
    %v26 = vpop.permute.xlu0 %25
    %vm27 = vcmask 540128
    %28 = vst.msk [vmem:[#allocation0] sm:$0x1] %vm27, %v26
    %s29 = scalar_lea.vmem %s0, 9
    %v30 = vld [vmem:[%s29] sm:$0x1]
    %31 = vrot.lane.b32.xlu0 %v30, 54
    %v32 = vpop.permute.xlu0 %31
    %vm33 = vcmask 490928
    %34 = vst.msk [vmem:[#allocation0] sm:$0x1] %vm33, %v32
    %s35 = scalar_lea.vmem %s0, 8
    %v36 = vld [vmem:[%s35] sm:$0x1]
    %37 = vrot.lane.b32.xlu0 %v36, 48
    %v38 = vpop.permute.xlu0 %37
    %vm39 = vcmask 441728
    %40 = vst.msk [vmem:[#allocation0] sm:$0x1] %vm39, %v38
    %s41 = scalar_lea.vmem %s0, 7
    %v42 = vld [vmem:[%s41] sm:$0x1]
    %43 = vrot.lane.b32.xlu0 %v42, 42
    %v44 = vpop.permute.xlu0 %43
    %vm45 = vcmask 392528
    %46 = vst.msk [vmem:[#allocation0] sm:$0x1] %vm45, %v44
    %s47 = scalar_lea.vmem %s0, 6
    %v48 = vld [vmem:[%s47] sm:$0x1]
    %49 = vrot.lane.b32.xlu0 %v48, 36
    %v50 = vpop.permute.xlu0 %49
    %vm51 = vcmask 343328
    %52 = vst.msk [vmem:[#allocation0] sm:$0x1] %vm51, %v50
    %s53 = scalar_lea.vmem %s0, 5
    %v54 = vld [vmem:[%s53] sm:$0x1]
    %55 = vrot.lane.b32.xlu0 %v54, 30
    %v56 = vpop.permute.xlu0 %55
    %vm57 = vcmask 294128
    %58 = vst.msk [vmem:[#allocation0] sm:$0x1] %vm57, %v56
    %s59 = scalar_lea.vmem %s0, 4
    %v60 = vld [vmem:[%s59] sm:$0x1]
    %61 = vrot.lane.b32.xlu0 %v60, 24
    %v62 = vpop.permute.xlu0 %61
    %vm63 = vcmask 244928
    %64 = vst.msk [vmem:[#allocation0] sm:$0x1] %vm63, %v62
    %s65 = scalar_lea.vmem %s0, 3
    %v66 = vld [vmem:[%s65] sm:$0x1]
    %67 = vrot.lane.b32.xlu0 %v66, 18
    %v68 = vpop.permute.xlu0 %67
    %vm69 = vcmask 195728
    %70 = vst.msk [vmem:[#allocation0] sm:$0x1] %vm69, %v68
    %s71 = scalar_lea.vmem %s0, 2
    %v72 = vld [vmem:[%s71] sm:$0x1]
    %73 = vrot.lane.b32.xlu0 %v72, 12
    %v74 = vpop.permute.xlu0 %73
    %vm75 = vcmask 146528
    %76 = vst.msk [vmem:[#allocation0] sm:$0x1] %vm75, %v74
    %s77 = scalar_lea.vmem %s0, 1
    %v78 = vld [vmem:[%s77] sm:$0x1]
    %79 = vrot.lane.b32.xlu0 %v78, 6
    %v80 = vpop.permute.xlu0 %79
    %vm81 = vcmask 97328
    %82 = vst.msk [vmem:[#allocation0] sm:$0x1] %vm81, %v80
    %s84 = sshllo.u32 0, 1
    %v86 = vld [vmem:[#allocation0] sm:%s84]
    %s87 = sshllo.u32 0, 1
    %88 = vst [vmem:[%s1] sm:%s87] %v86

// kernel: tile.18
$region0: #{tile.18}
  #allocation0 [shape = 's32[1]{0}', space=sflag, size = 0x4, scoped, tag = 'scoped memory for tile.18']
  %s0 = inlined_call_operand.vmem [shape: f32[16], index: 0, kind: input, shape index: {}]
  %s1 = inlined_call_operand.vmem [shape: f32[5,16], index: 1, kind: output, shape index: {}]
  // Predicated region
  $region2: #{tile.18} parent=0 // pred_check
    _
  $region3: #{tile.18} parent=0 // pred_check_branch
    %3 = sbr.rel (0) target = $region5
  $region4: #{tile.18} parent=0 // pred_region
    _
  $region5: #{tile.18} parent=0 // pred_fallthru
    _
  %v4 = vld [vmem:[%s0] ss:$0 sm:$0xff]
  %5 = vst [vmem:[%s1] sm:$0xff] %v4

// kernel: tile.19
$region0: #{tile.19}
  %s0 = inlined_call_operand.vmem [shape: f32[5,16], index: 0, kind: input, shape index: {}]
  %s1 = inlined_call_operand.vmem [shape: f32[1,80], index: 1, kind: output, shape index: {}]
  $region1: #{tile.19} parent=0
    #allocation0 [shape = 'u8[4096]{0}', space=vmem, size = 0x1000, scoped, tag = 'scoped mem for output reshape']
    %v2 = vld [vmem:[%s0] sm:$0x1]
    %vm3 = vcmask 130048
    %4 = vst.msk [vmem:[#allocation0] sm:$0x1] %vm3, %v2
    %s5 = scalar_lea.vmem %s0, 4
    %v6 = vld [vmem:[%s5] sm:$0x1]
    %7 = vrot.lane.b32.xlu0 %v6, 64
    %v8 = vpop.permute.xlu0 %7
    %vm9 = vcmask 654848
    %10 = vst.msk [vmem:[#allocation0] sm:$0x1] %vm9, %v8
    %s11 = scalar_lea.vmem %s0, 3
    %v12 = vld [vmem:[%s11] sm:$0x1]
    %13 = vrot.lane.b32.xlu0 %v12, 48
    %v14 = vpop.permute.xlu0 %13
    %vm15 = vcmask 523648
    %16 = vst.msk [vmem:[#allocation0] sm:$0x1] %vm15, %v14
    %s17 = scalar_lea.vmem %s0, 2
    %v18 = vld [vmem:[%s17] sm:$0x1]
    %19 = vrot.lane.b32.xlu0 %v18, 32
    %v20 = vpop.permute.xlu0 %19
    %vm21 = vcmask 392448
    %22 = vst.msk [vmem:[#allocation0] sm:$0x1] %vm21, %v20
    %s23 = scalar_lea.vmem %s0, 1
    %v24 = vld [vmem:[%s23] sm:$0x1]
    %25 = vrot.lane.b32.xlu0 %v24, 16
    %v26 = vpop.permute.xlu0 %25
    %vm27 = vcmask 261248
    %28 = vst.msk [vmem:[#allocation0] sm:$0x1] %vm27, %v26
    %s30 = sshllo.u32 0, 1
    %v32 = vld [vmem:[#allocation0] sm:%s30]
    %s33 = sshllo.u32 0, 1
    %34 = vst [vmem:[%s1] sm:%s33] %v32

// kernel: net_forward.1
$region0: #{net_forward.1}
  #allocation0 [shape = 'u32[]', space=smem, size = 0x4, offset = 0x4, fixed_abs, tag = 'smem constant byte address 0x4 - core index']
  #allocation1 [shape = 'u32[144,128]{1,0:T(1,128)}', space=vmem, size = 0x12000, scoped, tag = 'internal scratch']
  #allocation2 [shape = 'bf16[264,128]{1,0:T(8,128)(2,1)}', space=vmem, size = 0x10800, scoped, tag = 'scratch operand']
  #allocation3 [shape = 'f32[256,84]{1,0:T(8,128)}', space=vmem, size = 0x20000, scoped, tag = 'scratch operand']
  #allocation4 [shape = 'bf16[136,84]{1,0:T(8,128)(2,1)}', space=vmem, size = 0x8800, scoped, tag = 'scratch operand']
  #allocation5 [shape = 'f32[128,80]{1,0:T(8,128)}', space=vmem, size = 0x10000, scoped, tag = 'scratch operand']
  %s0 = inlined_call_operand.vmem [shape: bf16[512,128], index: 0, kind: input, shape index: {}]
  %s1 = inlined_call_operand.vmem [shape: bf16[5,128,168], index: 1, kind: input, shape index: {}]
  %s2 = inlined_call_operand.vmem [shape: f32[1,84], index: 2, kind: input, shape index: {}]
  %s3 = inlined_call_operand.vmem [shape: bf16[5,84,160], index: 3, kind: input, shape index: {}]
  %s4 = inlined_call_operand.vmem [shape: f32[1,80], index: 4, kind: input, shape index: {}]
  %s5 = inlined_call_operand.vmem [shape: bf16[400,120], index: 5, kind: input, shape index: {}]
  %s6 = inlined_call_operand.vmem [shape: f32[1,120], index: 6, kind: input, shape index: {}]
  %s7 = inlined_call_operand.vmem [shape: bf16[120,84], index: 7, kind: input, shape index: {}]
  %s8 = inlined_call_operand.vmem [shape: f32[1,84], index: 8, kind: input, shape index: {}]
  %s9 = inlined_call_operand.vmem [shape: bf16[84,128], index: 9, kind: input, shape index: {}]
  %s10 = inlined_call_operand.vmem [shape: f32[1,128], index: 10, kind: input, shape index: {}]
  %s11 = inlined_call_operand.hbm [shape: f32[16,128], index: 11, kind: output, shape index: {}]
  %s12 = sld [smem:[#allocation0]]
  $region77: #{net_forward.1} parent=0
    _
  %s14 = ssub.s32 1, %s12
  %s15 = scalar_select 0, %s14, %s12
  $region1: #{net_forward.1} parent=0
    #allocation6 [shape = 'u8[8192]{0}', space=vmem, size = 0x2000, scoped, tag = 'output window, operand 0']
    #allocation7 [shape = 's32[2]{0}', space=sflag, size = 0x8, scoped, tag = 'scoped memory for net_forward.1']
    %16 = vsyncpa [#allocation7], 0
    %s17 = scalar_lea.sflag [#allocation7], 1
    %18 = vsyncpa %s17, 0
    loop: start=0, step=1, limit=4
    $region2: #{net_forward.1} parent=1 // loop_pre_header
      _
    $region3: #{net_forward.1} parent=1 // loop_header
      %s20 = sphi 0, %s24
      %p21 = scmp.ge.s32.totalorder %s20, 4
      %s30 = sphi 0, %s32
      %s33 = sphi 0, %s30
      %s34 = sphi 0, %s33
      %s50 = sphi 0, %s34
      %s54 = sphi 0, %s54
      %s56 = sphi 0, %s54
      %s57 = sphi 0, %s56
      %s71 = sphi 0, %s57
      %s75 = sphi 0, %s75
      %s77 = sphi 0, %s75
      %s78 = sphi 0, %s77
      %s92 = sphi 0, %s78
      %s96 = sphi 0, %s96
      %s98 = sphi 0, %s96
      %s99 = sphi 0, %s98
      %s113 = sphi 0, %s99
      %s117 = sphi 0, %s117
      %s119 = sphi 0, %s117
      %s120 = sphi 0, %s119
      %s134 = sphi 0, %s120
      %s138 = sphi 0, %s138
      %s140 = sphi 0, %s138
      %s141 = sphi 0, %s140
      %s155 = sphi 0, %s141
      %s159 = sphi 0, %s159
      %s161 = sphi 0, %s159
      %s162 = sphi 0, %s161
      %s176 = sphi 0, %s162
      %s180 = sphi 0, %s180
      %s182 = sphi 0, %s180
      %s183 = sphi 0, %s182
      %s197 = sphi 0, %s183
      %s201 = sphi 0, %s201
      %s203 = sphi 0, %s201
      %s204 = sphi 0, %s203
      %s218 = sphi 0, %s204
      %s222 = sphi 0, %s222
      %s224 = sphi 0, %s222
      %s225 = sphi 0, %s224
      %s239 = sphi 0, %s225
      %s243 = sphi 0, %s243
      %s245 = sphi 0, %s243
      %s246 = sphi 0, %s245
      %s260 = sphi 0, %s246
      %s266 = sphi 0, %s268
      %s269 = sphi 0, %s266
      %s270 = sphi 0, %s269
      %s286 = sphi 0, %s270
    $region4: #{net_forward.1} parent=1 // loop_header_branch
      %23 = sbr.rel (%p21) target = $region8
    $region5: #{net_forward.1} parent=1 // loop_body
      %s25 = ssub.s32 %s20, 1
      %s26 = ssub.s32 %s20, 2
      %s27 = sadd.s32 %s20, 1
      %s28 = ssub.s32 %s20, %s27
      %p29 = scmp.eq.s32.totalorder %s28, 0
      %s31 = sadd.s32 %s30, 1
      %s32 = scalar_select %p29, %s30, %s31
      %p35 = pneg %p29
      %p36 = scmp.eq.s32.totalorder %s20, 1
      %p37 = por %p35, %p36
      %p38 = scmp.ne.s32.totalorder %s30, %s33
      %p39 = scmp.eq.s32.totalorder %s20, 0
      %p40 = por %p38, %p39
      %p41 = scmp.ne.s32.totalorder %s30, %s33
      %p42 = scmp.eq.s32.totalorder %s25, 1
      %p43 = por %p41, %p42
      %p44 = scmp.ne.s32.totalorder %s33, %s34
      %p45 = scmp.eq.s32.totalorder %s25, 0
      %p46 = por %p44, %p45
      %p47 = scmp.ne.s32.totalorder %s33, %s34
      %p48 = scmp.eq.s32.totalorder %s26, 1
      %p49 = por %p47, %p48
      %p51 = scmp.ne.s32.totalorder %s34, %s50
      %p52 = scmp.eq.s32.totalorder %s26, 0
      %p53 = por %p51, %p52
      %s55 = sadd.s32 %s54, 1
      %p58 = scmp.eq.s32.totalorder %s20, 1
      %p59 = scmp.ne.s32.totalorder %s54, %s56
      %p60 = scmp.eq.s32.totalorder %s20, 0
      %p61 = por %p59, %p60
      %p62 = scmp.ne.s32.totalorder %s54, %s56
      %p63 = scmp.eq.s32.totalorder %s25, 1
      %p64 = por %p62, %p63
      %p65 = scmp.ne.s32.totalorder %s56, %s57
      %p66 = scmp.eq.s32.totalorder %s25, 0
      %p67 = por %p65, %p66
      %p68 = scmp.ne.s32.totalorder %s56, %s57
      %p69 = scmp.eq.s32.totalorder %s26, 1
      %p70 = por %p68, %p69
      %p72 = scmp.ne.s32.totalorder %s57, %s71
      %p73 = scmp.eq.s32.totalorder %s26, 0
      %p74 = por %p72, %p73
      %s76 = sadd.s32 %s75, 1
      %p79 = scmp.eq.s32.totalorder %s20, 1
      %p80 = scmp.ne.s32.totalorder %s75, %s77
      %p81 = scmp.eq.s32.totalorder %s20, 0
      %p82 = por %p80, %p81
      %p83 = scmp.ne.s32.totalorder %s75, %s77
      %p84 = scmp.eq.s32.totalorder %s25, 1
      %p85 = por %p83, %p84
      %p86 = scmp.ne.s32.totalorder %s77, %s78
      %p87 = scmp.eq.s32.totalorder %s25, 0
      %p88 = por %p86, %p87
      %p89 = scmp.ne.s32.totalorder %s77, %s78
      %p90 = scmp.eq.s32.totalorder %s26, 1
      %p91 = por %p89, %p90
      %p93 = scmp.ne.s32.totalorder %s78, %s92
      %p94 = scmp.eq.s32.totalorder %s26, 0
      %p95 = por %p93, %p94
      %s97 = sadd.s32 %s96, 1
      %p100 = scmp.eq.s32.totalorder %s20, 1
      %p101 = scmp.ne.s32.totalorder %s96, %s98
      %p102 = scmp.eq.s32.totalorder %s20, 0
      %p103 = por %p101, %p102
      %p104 = scmp.ne.s32.totalorder %s96, %s98
      %p105 = scmp.eq.s32.totalorder %s25, 1
      %p106 = por %p104, %p105
      %p107 = scmp.ne.s32.totalorder %s98, %s99
      %p108 = scmp.eq.s32.totalorder %s25, 0
      %p109 = por %p107, %p108
      %p110 = scmp.ne.s32.totalorder %s98, %s99
      %p111 = scmp.eq.s32.totalorder %s26, 1
      %p112 = por %p110, %p111
      %p114 = scmp.ne.s32.totalorder %s99, %s113
      %p115 = scmp.eq.s32.totalorder %s26, 0
      %p116 = por %p114, %p115
      %s118 = sadd.s32 %s117, 1
      %p121 = scmp.eq.s32.totalorder %s20, 1
      %p122 = scmp.ne.s32.totalorder %s117, %s119
      %p123 = scmp.eq.s32.totalorder %s20, 0
      %p124 = por %p122, %p123
      %p125 = scmp.ne.s32.totalorder %s117, %s119
      %p126 = scmp.eq.s32.totalorder %s25, 1
      %p127 = por %p125, %p126
      %p128 = scmp.ne.s32.totalorder %s119, %s120
      %p129 = scmp.eq.s32.totalorder %s25, 0
      %p130 = por %p128, %p129
      %p131 = scmp.ne.s32.totalorder %s119, %s120
      %p132 = scmp.eq.s32.totalorder %s26, 1
      %p133 = por %p131, %p132
      %p135 = scmp.ne.s32.totalorder %s120, %s134
      %p136 = scmp.eq.s32.totalorder %s26, 0
      %p137 = por %p135, %p136
      %s139 = sadd.s32 %s138, 1
      %p142 = scmp.eq.s32.totalorder %s20, 1
      %p143 = scmp.ne.s32.totalorder %s138, %s140
      %p144 = scmp.eq.s32.totalorder %s20, 0
      %p145 = por %p143, %p144
      %p146 = scmp.ne.s32.totalorder %s138, %s140
      %p147 = scmp.eq.s32.totalorder %s25, 1
      %p148 = por %p146, %p147
      %p149 = scmp.ne.s32.totalorder %s140, %s141
      %p150 = scmp.eq.s32.totalorder %s25, 0
      %p151 = por %p149, %p150
      %p152 = scmp.ne.s32.totalorder %s140, %s141
      %p153 = scmp.eq.s32.totalorder %s26, 1
      %p154 = por %p152, %p153
      %p156 = scmp.ne.s32.totalorder %s141, %s155
      %p157 = scmp.eq.s32.totalorder %s26, 0
      %p158 = por %p156, %p157
      %s160 = sadd.s32 %s159, 1
      %p163 = scmp.eq.s32.totalorder %s20, 1
      %p164 = scmp.ne.s32.totalorder %s159, %s161
      %p165 = scmp.eq.s32.totalorder %s20, 0
      %p166 = por %p164, %p165
      %p167 = scmp.ne.s32.totalorder %s159, %s161
      %p168 = scmp.eq.s32.totalorder %s25, 1
      %p169 = por %p167, %p168
      %p170 = scmp.ne.s32.totalorder %s161, %s162
      %p171 = scmp.eq.s32.totalorder %s25, 0
      %p172 = por %p170, %p171
      %p173 = scmp.ne.s32.totalorder %s161, %s162
      %p174 = scmp.eq.s32.totalorder %s26, 1
      %p175 = por %p173, %p174
      %p177 = scmp.ne.s32.totalorder %s162, %s176
      %p178 = scmp.eq.s32.totalorder %s26, 0
      %p179 = por %p177, %p178
      %s181 = sadd.s32 %s180, 1
      %p184 = scmp.eq.s32.totalorder %s20, 1
      %p185 = scmp.ne.s32.totalorder %s180, %s182
      %p186 = scmp.eq.s32.totalorder %s20, 0
      %p187 = por %p185, %p186
      %p188 = scmp.ne.s32.totalorder %s180, %s182
      %p189 = scmp.eq.s32.totalorder %s25, 1
      %p190 = por %p188, %p189
      %p191 = scmp.ne.s32.totalorder %s182, %s183
      %p192 = scmp.eq.s32.totalorder %s25, 0
      %p193 = por %p191, %p192
      %p194 = scmp.ne.s32.totalorder %s182, %s183
      %p195 = scmp.eq.s32.totalorder %s26, 1
      %p196 = por %p194, %p195
      %p198 = scmp.ne.s32.totalorder %s183, %s197
      %p199 = scmp.eq.s32.totalorder %s26, 0
      %p200 = por %p198, %p199
      %s202 = sadd.s32 %s201, 1
      %p205 = scmp.eq.s32.totalorder %s20, 1
      %p206 = scmp.ne.s32.totalorder %s201, %s203
      %p207 = scmp.eq.s32.totalorder %s20, 0
      %p208 = por %p206, %p207
      %p209 = scmp.ne.s32.totalorder %s201, %s203
      %p210 = scmp.eq.s32.totalorder %s25, 1
      %p211 = por %p209, %p210
      %p212 = scmp.ne.s32.totalorder %s203, %s204
      %p213 = scmp.eq.s32.totalorder %s25, 0
      %p214 = por %p212, %p213
      %p215 = scmp.ne.s32.totalorder %s203, %s204
      %p216 = scmp.eq.s32.totalorder %s26, 1
      %p217 = por %p215, %p216
      %p219 = scmp.ne.s32.totalorder %s204, %s218
      %p220 = scmp.eq.s32.totalorder %s26, 0
      %p221 = por %p219, %p220
      %s223 = sadd.s32 %s222, 1
      %p226 = scmp.eq.s32.totalorder %s20, 1
      %p227 = scmp.ne.s32.totalorder %s222, %s224
      %p228 = scmp.eq.s32.totalorder %s20, 0
      %p229 = por %p227, %p228
      %p230 = scmp.ne.s32.totalorder %s222, %s224
      %p231 = scmp.eq.s32.totalorder %s25, 1
      %p232 = por %p230, %p231
      %p233 = scmp.ne.s32.totalorder %s224, %s225
      %p234 = scmp.eq.s32.totalorder %s25, 0
      %p235 = por %p233, %p234
      %p236 = scmp.ne.s32.totalorder %s224, %s225
      %p237 = scmp.eq.s32.totalorder %s26, 1
      %p238 = por %p236, %p237
      %p240 = scmp.ne.s32.totalorder %s225, %s239
      %p241 = scmp.eq.s32.totalorder %s26, 0
      %p242 = por %p240, %p241
      %s244 = sadd.s32 %s243, 1
      %p247 = scmp.eq.s32.totalorder %s20, 1
      %p248 = scmp.ne.s32.totalorder %s243, %s245
      %p249 = scmp.eq.s32.totalorder %s20, 0
      %p250 = por %p248, %p249
      %p251 = scmp.ne.s32.totalorder %s243, %s245
      %p252 = scmp.eq.s32.totalorder %s25, 1
      %p253 = por %p251, %p252
      %p254 = scmp.ne.s32.totalorder %s245, %s246
      %p255 = scmp.eq.s32.totalorder %s25, 0
      %p256 = por %p254, %p255
      %p257 = scmp.ne.s32.totalorder %s245, %s246
      %p258 = scmp.eq.s32.totalorder %s26, 1
      %p259 = por %p257, %p258
      %p261 = scmp.ne.s32.totalorder %s246, %s260
      %p262 = scmp.eq.s32.totalorder %s26, 0
      %p263 = por %p261, %p262
      %s264 = ssub.s32 %s20, %s27
      %p265 = scmp.eq.s32.totalorder %s264, 0
      %s267 = sadd.s32 %s266, 1
      %s268 = scalar_select %p265, %s266, %s267
      %p271 = pneg %p265
      %p272 = scmp.eq.s32.totalorder %s20, 1
      %p273 = por %p271, %p272
      %p274 = scmp.ne.s32.totalorder %s266, %s269
      %p275 = scmp.eq.s32.totalorder %s20, 0
      %p276 = por %p274, %p275
      %p277 = scmp.ne.s32.totalorder %s266, %s269
      %p278 = scmp.eq.s32.totalorder %s25, 1
      %p279 = por %p277, %p278
      %p280 = scmp.ne.s32.totalorder %s269, %s270
      %p281 = scmp.eq.s32.totalorder %s25, 0
      %p282 = por %p280, %p281
      %p283 = scmp.ne.s32.totalorder %s269, %s270
      %p284 = scmp.eq.s32.totalorder %s26, 1
      %p285 = por %p283, %p284
      %p287 = scmp.ne.s32.totalorder %s270, %s286
      %p288 = scmp.eq.s32.totalorder %s26, 0
      %p289 = por %p287, %p288
      %p290 = scmp.le.s32.totalorder 1, %s20
      %p291 = scmp.lt.s32.totalorder %s20, 3
      %p292 = pnand %p290, %p291
      %p293 = pneg %p292
      // Predicated region
      $region9: #{net_forward.1} parent=5 // pred_check
        _
      $region10: #{net_forward.1} parent=5 // pred_check_branch
        %295 = sbr.rel (%p292) target = $region12
      $region11: #{net_forward.1} parent=5 // pred_region
        %s296 = ssub.s32 %s20, 1
        // Predicated region
        $region13: #{net_forward.1} parent=11 // pred_check
          %p297 = pneg %p67
        $region14: #{net_forward.1} parent=11 // pred_check_branch
          %299 = sbr.rel (%p297) target = $region16
        $region15: #{net_forward.1} parent=11 // pred_region
          _
        $region16: #{net_forward.1} parent=11 // pred_fallthru
          _
        // Predicated region
        $region17: #{net_forward.1} parent=11 // pred_check
          %p300 = pneg %p88
        $region18: #{net_forward.1} parent=11 // pred_check_branch
          %302 = sbr.rel (%p300) target = $region20
        $region19: #{net_forward.1} parent=11 // pred_region
          _
        $region20: #{net_forward.1} parent=11 // pred_fallthru
          _
        // Predicated region
        $region21: #{net_forward.1} parent=11 // pred_check
          %p303 = pneg %p109
        $region22: #{net_forward.1} parent=11 // pred_check_branch
          %305 = sbr.rel (%p303) target = $region24
        $region23: #{net_forward.1} parent=11 // pred_region
          _
        $region24: #{net_forward.1} parent=11 // pred_fallthru
          _
        // Predicated region
        $region25: #{net_forward.1} parent=11 // pred_check
          %p306 = pneg %p130
        $region26: #{net_forward.1} parent=11 // pred_check_branch
          %308 = sbr.rel (%p306) target = $region28
        $region27: #{net_forward.1} parent=11 // pred_region
          _
        $region28: #{net_forward.1} parent=11 // pred_fallthru
          _
        // Predicated region
        $region29: #{net_forward.1} parent=11 // pred_check
          %p309 = pneg %p151
        $region30: #{net_forward.1} parent=11 // pred_check_branch
          %311 = sbr.rel (%p309) target = $region32
        $region31: #{net_forward.1} parent=11 // pred_region
          _
        $region32: #{net_forward.1} parent=11 // pred_fallthru
          _
        // Predicated region
        $region33: #{net_forward.1} parent=11 // pred_check
          %p312 = pneg %p172
        $region34: #{net_forward.1} parent=11 // pred_check_branch
          %314 = sbr.rel (%p312) target = $region36
        $region35: #{net_forward.1} parent=11 // pred_region
          _
        $region36: #{net_forward.1} parent=11 // pred_fallthru
          _
        // Predicated region
        $region37: #{net_forward.1} parent=11 // pred_check
          %p315 = pneg %p193
        $region38: #{net_forward.1} parent=11 // pred_check_branch
          %317 = sbr.rel (%p315) target = $region40
        $region39: #{net_forward.1} parent=11 // pred_region
          _
        $region40: #{net_forward.1} parent=11 // pred_fallthru
          _
        // Predicated region
        $region41: #{net_forward.1} parent=11 // pred_check
          %p318 = pneg %p214
        $region42: #{net_forward.1} parent=11 // pred_check_branch
          %320 = sbr.rel (%p318) target = $region44
        $region43: #{net_forward.1} parent=11 // pred_region
          _
        $region44: #{net_forward.1} parent=11 // pred_fallthru
          _
        // Predicated region
        $region45: #{net_forward.1} parent=11 // pred_check
          %p321 = pneg %p235
        $region46: #{net_forward.1} parent=11 // pred_check_branch
          %323 = sbr.rel (%p321) target = $region48
        $region47: #{net_forward.1} parent=11 // pred_region
          _
        $region48: #{net_forward.1} parent=11 // pred_fallthru
          _
        // Predicated region
        $region49: #{net_forward.1} parent=11 // pred_check
          %p324 = pneg %p256
        $region50: #{net_forward.1} parent=11 // pred_check_branch
          %326 = sbr.rel (%p324) target = $region52
        $region51: #{net_forward.1} parent=11 // pred_region
          _
        $region52: #{net_forward.1} parent=11 // pred_fallthru
          _
      $region12: #{net_forward.1} parent=5 // pred_fallthru
        _
      %p327 = scmp.lt.s32.totalorder %s20, 2
      // Predicated region
      $region53: #{net_forward.1} parent=5 // pred_check
        %p328 = pneg %p327
      $region54: #{net_forward.1} parent=5 // pred_check_branch
        %330 = sbr.rel (%p328) target = $region56
      $region55: #{net_forward.1} parent=5 // pred_region
        // Predicated region
        $region57: #{net_forward.1} parent=55 // pred_check
          %p331 = pneg %p40
        $region58: #{net_forward.1} parent=55 // pred_check_branch
          %333 = sbr.rel (%p331) target = $region60
        $region59: #{net_forward.1} parent=55 // pred_region
          %s334 = smul.u32 32, %s20
          %p335 = scmp.lt.s32.totalorder %s334, 63
          %s336 = scalar_select %p335, %s334, 63
          %s337 = smul.addr %s336, 4
          %s338 = scalar_lea.vmem %s0, %s337
          %s339 = smul.u32 32, %s20
        $region60: #{net_forward.1} parent=55 // pred_fallthru
          _
      $region56: #{net_forward.1} parent=5 // pred_fallthru
        _
      %p340 = scmp.le.s32.totalorder 1, %s20
      %p341 = scmp.lt.s32.totalorder %s20, 3
      %p342 = pnand %p340, %p341
      %p343 = pneg %p342
      // Predicated region
      $region61: #{net_forward.1} parent=5 // pred_check
        _
      $region62: #{net_forward.1} parent=5 // pred_check_branch
        %345 = sbr.rel (%p342) target = $region64
      $region63: #{net_forward.1} parent=5 // pred_region
        %s346 = ssub.s32 %s20, 1
        %s347 = smul.u32 32, %s25
        %p348 = scmp.lt.s32.totalorder %s347, 63
        %s349 = scalar_select %p348, %s347, 63
        %s350 = smul.addr %s349, 4
        %s351 = scalar_lea.vmem %s0, %s350
        %p352 = pneg %p46
        %p353 = pneg %p43
        %p354 = pneg %p67
        %p355 = pneg %p64
        %p356 = pneg %p88
        %p357 = pneg %p85
        %p358 = pneg %p109
        %p359 = pneg %p106
        %p360 = pneg %p130
        %p361 = pneg %p127
        %p362 = pneg %p151
        %p363 = pneg %p148
        %p364 = pneg %p172
        %p365 = pneg %p169
        %p366 = pneg %p193
        %p367 = pneg %p190
        %p368 = pneg %p214
        %p369 = pneg %p211
        %p370 = pneg %p235
        %p371 = pneg %p232
        %p372 = pneg %p256
        %p373 = pneg %p253
        %p374 = pneg %p282
        %p375 = pneg %p279
        %s376 = sand.u32 %s269, 1
        %s377 = scalar_lea.sflag [#allocation7], %s376
        %s378 = sand.u32 %s269, 1
        %s379 = smul.addr %s378, 8
        %s380 = scalar_lea.vmem [#allocation6], %s379
        %s381 = smul.u32 32, %s25
        %p382 = scmp.lt.s32.totalorder %s381, 63
        %s383 = scalar_select %p382, %s381, 63
        %s384 = smul.addr %s383, 4
        %s385 = scalar_lea.vmem %s0, %s384
        %s386 = smul.u32 32, %s25
        %v388 = vld [vmem:[%s385] sm:$0xf]
        %v389 = vld [vmem:[%s385 + $0x4] sm:$0xf]
        %v390 = vld [vmem:[%s385 + $0x8] sm:$0xf]
        %v391 = vld [vmem:[%s385 + $0xc] sm:$0xf]
        %v392 = vld [vmem:[%s385 + $0x10] sm:$0xf]
        %v393 = vld [vmem:[%s385 + $0x14] sm:$0xf]
        %v394 = vld [vmem:[%s385 + $0x18] sm:$0xf]
        %v395 = vld [vmem:[%s385 + $0x1c] sm:$0xf]
        %v396 = vld [vmem:[%s385 + $0x20] sm:$0xf]
        %v397 = vld [vmem:[%s385 + $0x24] sm:$0xf]
        %v398 = vld [vmem:[%s385 + $0x28] sm:$0xf]
        %v399 = vld [vmem:[%s385 + $0x2c] sm:$0xf]
        %v400 = vld [vmem:[%s385 + $0x30] sm:$0xf]
        %v401 = vld [vmem:[%s385 + $0x34] sm:$0xf]
        %v402 = vld [vmem:[%s385 + $0x38] sm:$0xf]
        %v403 = vld [vmem:[%s385 + $0x3c] sm:$0xf]
        %v404 = vld [vmem:[%s385 + $0x40] sm:$0xf]
        %v405 = vld [vmem:[%s385 + $0x44] sm:$0xf]
        %v406 = vld [vmem:[%s385 + $0x48] sm:$0xf]
        %v407 = vld [vmem:[%s385 + $0x4c] sm:$0xf]
        %v408 = vld [vmem:[%s385 + $0x50] sm:$0xf]
        %v409 = vld [vmem:[%s385 + $0x54] sm:$0xf]
        %v410 = vld [vmem:[%s385 + $0x58] sm:$0xf]
        %v411 = vld [vmem:[%s385 + $0x5c] sm:$0xf]
        %v412 = vld [vmem:[%s385 + $0x60] sm:$0xf]
        %v413 = vld [vmem:[%s385 + $0x64] sm:$0xf]
        %v414 = vld [vmem:[%s385 + $0x68] sm:$0xf]
        %v415 = vld [vmem:[%s385 + $0x6c] sm:$0xf]
        %v416 = vld [vmem:[%s385 + $0x70] sm:$0xf]
        %v417 = vld [vmem:[%s385 + $0x74] sm:$0xf]
        %v418 = vld [vmem:[%s385 + $0x78] sm:$0xf]
        %v419 = vld [vmem:[%s385 + $0x7c] sm:$0xf]
        %420 = vst [vmem:[#allocation2] sm:$0xf] %v388
        %421 = vst [vmem:[#allocation2 + $0x4] sm:$0xf] %v389
        %422 = vst [vmem:[#allocation2 + $0x8] sm:$0xf] %v390
        %423 = vst [vmem:[#allocation2 + $0xc] sm:$0xf] %v391
        %424 = vst [vmem:[#allocation2 + $0x10] sm:$0xf] %v392
        %425 = vst [vmem:[#allocation2 + $0x14] sm:$0xf] %v393
        %426 = vst [vmem:[#allocation2 + $0x18] sm:$0xf] %v394
        %427 = vst [vmem:[#allocation2 + $0x1c] sm:$0xf] %v395
        %428 = vst [vmem:[#allocation2 + $0x20] sm:$0xf] %v396
        %429 = vst [vmem:[#allocation2 + $0x24] sm:$0xf] %v397
        %430 = vst [vmem:[#allocation2 + $0x28] sm:$0xf] %v398
        %431 = vst [vmem:[#allocation2 + $0x2c] sm:$0xf] %v399
        %432 = vst [vmem:[#allocation2 + $0x30] sm:$0xf] %v400
        %433 = vst [vmem:[#allocation2 + $0x34] sm:$0xf] %v401
        %434 = vst [vmem:[#allocation2 + $0x38] sm:$0xf] %v402
        %435 = vst [vmem:[#allocation2 + $0x3c] sm:$0xf] %v403
        %436 = vst [vmem:[#allocation2 + $0x40] sm:$0xf] %v404
        %437 = vst [vmem:[#allocation2 + $0x44] sm:$0xf] %v405
        %438 = vst [vmem:[#allocation2 + $0x48] sm:$0xf] %v406
        %439 = vst [vmem:[#allocation2 + $0x4c] sm:$0xf] %v407
        %440 = vst [vmem:[#allocation2 + $0x50] sm:$0xf] %v408
        %441 = vst [vmem:[#allocation2 + $0x54] sm:$0xf] %v409
        %442 = vst [vmem:[#allocation2 + $0x58] sm:$0xf] %v410
        %443 = vst [vmem:[#allocation2 + $0x5c] sm:$0xf] %v411
        %444 = vst [vmem:[#allocation2 + $0x60] sm:$0xf] %v412
        %445 = vst [vmem:[#allocation2 + $0x64] sm:$0xf] %v413
        %446 = vst [vmem:[#allocation2 + $0x68] sm:$0xf] %v414
        %447 = vst [vmem:[#allocation2 + $0x6c] sm:$0xf] %v415
        %448 = vst [vmem:[#allocation2 + $0x70] sm:$0xf] %v416
        %449 = vst [vmem:[#allocation2 + $0x74] sm:$0xf] %v417
        %450 = vst [vmem:[#allocation2 + $0x78] sm:$0xf] %v418
        %451 = vst [vmem:[#allocation2 + $0x7c] sm:$0xf] %v419
        %452 = vst [vmem:[#allocation2 + $0x80] sm:$0xf] 0
        %v453 = vld [vmem:[#allocation2] sm:$0xf]
        %v454 = vld [vmem:[#allocation2 + $0x4] sm:$0xf]
        %v455 = vld [vmem:[#allocation2 + $0x8] sm:$0xf]
        %v456 = vld [vmem:[#allocation2 + $0xc] sm:$0xf]
        %v457 = vld [vmem:[#allocation2 + $0x10] sm:$0xf]
        %v458 = vld [vmem:[#allocation2 + $0x14] sm:$0xf]
        %v459 = vld [vmem:[#allocation2 + $0x18] sm:$0xf]
        %v460 = vld [vmem:[#allocation2 + $0x1c] sm:$0xf]
        %v461 = vld [vmem:[#allocation2 + $0x20] sm:$0xf]
        %v462 = vld [vmem:[#allocation2 + $0x24] sm:$0xf]
        %v463 = vld [vmem:[#allocation2 + $0x28] sm:$0xf]
        %v464 = vld [vmem:[#allocation2 + $0x2c] sm:$0xf]
        %v465 = vld [vmem:[#allocation2 + $0x30] sm:$0xf]
        %v466 = vld [vmem:[#allocation2 + $0x34] sm:$0xf]
        %v467 = vld [vmem:[#allocation2 + $0x38] sm:$0xf]
        %v468 = vld [vmem:[#allocation2 + $0x3c] sm:$0xf]
        %v469 = vld [vmem:[#allocation2 + $0x40] sm:$0xf]
        %v470 = vld [vmem:[#allocation2 + $0x44] sm:$0xf]
        %v471 = vld [vmem:[#allocation2 + $0x48] sm:$0xf]
        %v472 = vld [vmem:[#allocation2 + $0x4c] sm:$0xf]
        %v473 = vld [vmem:[#allocation2 + $0x50] sm:$0xf]
        %v474 = vld [vmem:[#allocation2 + $0x54] sm:$0xf]
        %v475 = vld [vmem:[#allocation2 + $0x58] sm:$0xf]
        %v476 = vld [vmem:[#allocation2 + $0x5c] sm:$0xf]
        %v477 = vld [vmem:[#allocation2 + $0x60] sm:$0xf]
        %v478 = vld [vmem:[#allocation2 + $0x64] sm:$0xf]
        %v479 = vld [vmem:[#allocation2 + $0x68] sm:$0xf]
        %v480 = vld [vmem:[#allocation2 + $0x6c] sm:$0xf]
        %v481 = vld [vmem:[#allocation2 + $0x70] sm:$0xf]
        %v482 = vld [vmem:[#allocation2 + $0x74] sm:$0xf]
        %v483 = vld [vmem:[#allocation2 + $0x78] sm:$0xf]
        %v484 = vld [vmem:[#allocation2 + $0x7c] sm:$0xf]
        %v485 = vld [vmem:[%s1] sm:$0xff]
        %v486 = vld [vmem:[%s1 + $0x8] sm:$0xff]
        %v487 = vld [vmem:[%s1 + $0x10] sm:$0xff]
        %v488 = vld [vmem:[%s1 + $0x18] sm:$0xff]
        %v489 = vld [vmem:[%s1 + $0x20] sm:$0xff]
        %v490 = vld [vmem:[%s1 + $0x28] sm:$0xff]
        %v491 = vld [vmem:[%s1 + $0x30] sm:$0xff]
        %v492 = vld [vmem:[%s1 + $0x38] sm:$0xff]
        %v493 = vld [vmem:[%s1 + $0x40] sm:$0xff]
        %v494 = vld [vmem:[%s1 + $0x48] sm:$0xff]
        %v495 = vld [vmem:[%s1 + $0x50] sm:$0xff]
        %v496 = vld [vmem:[%s1 + $0x58] sm:$0xff]
        %v497 = vld [vmem:[%s1 + $0x60] sm:$0xff]
        %v498 = vld [vmem:[%s1 + $0x68] sm:$0xff]
        %v499 = vld [vmem:[%s1 + $0x70] sm:$0xff]
        %v500 = vld [vmem:[%s1 + $0x78] sm:$0xff]
        %v501 = vld [vmem:[#allocation2] sm:$0xf]
        %v502 = vld [vmem:[#allocation2 + $0x4] sm:$0xf]
        %v503 = vld [vmem:[#allocation2 + $0x8] sm:$0xf]
        %v504 = vld [vmem:[#allocation2 + $0xc] sm:$0xf]
        %v505 = vld [vmem:[#allocation2 + $0x10] sm:$0xf]
        %v506 = vld [vmem:[#allocation2 + $0x14] sm:$0xf]
        %v507 = vld [vmem:[#allocation2 + $0x18] sm:$0xf]
        %v508 = vld [vmem:[#allocation2 + $0x1c] sm:$0xf]
        %v509 = vld [vmem:[#allocation2 + $0x20] sm:$0xf]
        %v510 = vld [vmem:[#allocation2 + $0x24] sm:$0xf]
        %v511 = vld [vmem:[#allocation2 + $0x28] sm:$0xf]
        %v512 = vld [vmem:[#allocation2 + $0x2c] sm:$0xf]
        %v513 = vld [vmem:[#allocation2 + $0x30] sm:$0xf]
        %v514 = vld [vmem:[#allocation2 + $0x34] sm:$0xf]
        %v515 = vld [vmem:[#allocation2 + $0x38] sm:$0xf]
        %v516 = vld [vmem:[#allocation2 + $0x3c] sm:$0xf]
        %v517 = vld [vmem:[#allocation2 + $0x40] sm:$0xf]
        %v518 = vld [vmem:[#allocation2 + $0x44] sm:$0xf]
        %v519 = vld [vmem:[#allocation2 + $0x48] sm:$0xf]
        %v520 = vld [vmem:[#allocation2 + $0x4c] sm:$0xf]
        %v521 = vld [vmem:[#allocation2 + $0x50] sm:$0xf]
        %v522 = vld [vmem:[#allocation2 + $0x54] sm:$0xf]
        %v523 = vld [vmem:[#allocation2 + $0x58] sm:$0xf]
        %v524 = vld [vmem:[#allocation2 + $0x5c] sm:$0xf]
        %v525 = vld [vmem:[#allocation2 + $0x60] sm:$0xf]
        %v526 = vld [vmem:[#allocation2 + $0x64] sm:$0xf]
        %v527 = vld [vmem:[#allocation2 + $0x68] sm:$0xf]
        %v528 = vld [vmem:[#allocation2 + $0x6c] sm:$0xf]
        %v529 = vld [vmem:[#allocation2 + $0x70] sm:$0xf]
        %v530 = vld [vmem:[#allocation2 + $0x74] sm:$0xf]
        %v531 = vld [vmem:[#allocation2 + $0x78] sm:$0xf]
        %v532 = vld [vmem:[#allocation2 + $0x7c] sm:$0xf]
        %v533 = vld [vmem:[#allocation2 + $0x80] sm:$0x1]
        %s534 = scalar_lea.vmem %s1, 128
        %v535 = vld [vmem:[%s534] sm:$0xff]
        %v536 = vld [vmem:[%s534 + $0x8] sm:$0xff]
        %v537 = vld [vmem:[%s534 + $0x10] sm:$0xff]
        %v538 = vld [vmem:[%s534 + $0x18] sm:$0xff]
        %v539 = vld [vmem:[%s534 + $0x20] sm:$0xff]
        %v540 = vld [vmem:[%s534 + $0x28] sm:$0xff]
        %v541 = vld [vmem:[%s534 + $0x30] sm:$0xff]
        %v542 = vld [vmem:[%s534 + $0x38] sm:$0xff]
        %v543 = vld [vmem:[%s534 + $0x40] sm:$0xff]
        %v544 = vld [vmem:[%s534 + $0x48] sm:$0xff]
        %v545 = vld [vmem:[%s534 + $0x50] sm:$0xff]
        %v546 = vld [vmem:[%s534 + $0x58] sm:$0xff]
        %v547 = vld [vmem:[%s534 + $0x60] sm:$0xff]
        %v548 = vld [vmem:[%s534 + $0x68] sm:$0xff]
        %v549 = vld [vmem:[%s534 + $0x70] sm:$0xff]
        %v550 = vld [vmem:[%s534 + $0x78] sm:$0xff]
        %v584 = vunpack.c.l.b16 %v501
        %v585 = vunpack.c.l.b16 %v502
        %v586 = vunpack.c.l.b16 %v503
        %v587 = vunpack.c.l.b16 %v504
        %v588 = vunpack.c.l.b16 %v505
        %v589 = vunpack.c.l.b16 %v506
        %v590 = vunpack.c.l.b16 %v507
        %v591 = vunpack.c.l.b16 %v508
        %v592 = vunpack.c.l.b16 %v509
        %v593 = vunpack.c.l.b16 %v510
        %v594 = vunpack.c.l.b16 %v511
        %v595 = vunpack.c.l.b16 %v512
        %v596 = vunpack.c.l.b16 %v513
        %v597 = vunpack.c.l.b16 %v514
        %v598 = vunpack.c.l.b16 %v515
        %v599 = vunpack.c.l.b16 %v516
        %v600 = vunpack.c.l.b16 %v517
        %v601 = vunpack.c.l.b16 %v518
        %v602 = vunpack.c.l.b16 %v519
        %v603 = vunpack.c.l.b16 %v520
        %v604 = vunpack.c.l.b16 %v521
        %v605 = vunpack.c.l.b16 %v522
        %v606 = vunpack.c.l.b16 %v523
        %v607 = vunpack.c.l.b16 %v524
        %v608 = vunpack.c.l.b16 %v525
        %v609 = vunpack.c.l.b16 %v526
        %v610 = vunpack.c.l.b16 %v527
        %v611 = vunpack.c.l.b16 %v528
        %v612 = vunpack.c.l.b16 %v529
        %v613 = vunpack.c.l.b16 %v530
        %v614 = vunpack.c.l.b16 %v531
        %v615 = vunpack.c.l.b16 %v532
        %v616 = vunpack.c.l.b16 %v533
        %v617 = vpack.c.b16 %v585, %v584
        %v618 = vpack.c.b16 %v587, %v586
        %v619 = vpack.c.b16 %v589, %v588
        %v620 = vpack.c.b16 %v591, %v590
        %v621 = vpack.c.b16 %v593, %v592
        %v622 = vpack.c.b16 %v595, %v594
        %v623 = vpack.c.b16 %v597, %v596
        %v624 = vpack.c.b16 %v599, %v598
        %v625 = vpack.c.b16 %v601, %v600
        %v626 = vpack.c.b16 %v603, %v602
        %v627 = vpack.c.b16 %v605, %v604
        %v628 = vpack.c.b16 %v607, %v606
        %v629 = vpack.c.b16 %v609, %v608
        %v630 = vpack.c.b16 %v611, %v610
        %v631 = vpack.c.b16 %v613, %v612
        %v632 = vpack.c.b16 %v615, %v614
        %v633 = vpack.c.b16 %v616, %v616
        %vm634 = vsmask.f32 7424
        %v636 = vshrl.u32 %v617, 16
        %v638 = vshll.u32 %v617, 16
        %v640 = vrot.slane %v638, 1
        %v641 = vor.u32 %v636, %v640
        %v643 = vshll.u32 %v618, 16
        %v645 = vrot.slane %v643, 1
        %v646 = vsel %vm634, %v641, %v645
        %v647 = vshrl.u32 %v618, 16
        %v649 = vor.u32 %v647, %v645
        %v651 = vshll.u32 %v619, 16
        %v653 = vrot.slane %v651, 1
        %v654 = vsel %vm634, %v649, %v653
        %v655 = vshrl.u32 %v619, 16
        %v657 = vor.u32 %v655, %v653
        %v659 = vshll.u32 %v620, 16
        %v661 = vrot.slane %v659, 1
        %v662 = vsel %vm634, %v657, %v661
        %v663 = vshrl.u32 %v620, 16
        %v665 = vor.u32 %v663, %v661
        %v667 = vshll.u32 %v621, 16
        %v669 = vrot.slane %v667, 1
        %v670 = vsel %vm634, %v665, %v669
        %v671 = vshrl.u32 %v621, 16
        %v673 = vor.u32 %v671, %v669
        %v675 = vshll.u32 %v622, 16
        %v677 = vrot.slane %v675, 1
        %v678 = vsel %vm634, %v673, %v677
        %v679 = vshrl.u32 %v622, 16
        %v681 = vor.u32 %v679, %v677
        %v683 = vshll.u32 %v623, 16
        %v685 = vrot.slane %v683, 1
        %v686 = vsel %vm634, %v681, %v685
        %v687 = vshrl.u32 %v623, 16
        %v689 = vor.u32 %v687, %v685
        %v691 = vshll.u32 %v624, 16
        %v693 = vrot.slane %v691, 1
        %v694 = vsel %vm634, %v689, %v693
        %v695 = vshrl.u32 %v624, 16
        %v697 = vor.u32 %v695, %v693
        %v699 = vshll.u32 %v625, 16
        %v701 = vrot.slane %v699, 1
        %v702 = vsel %vm634, %v697, %v701
        %v703 = vshrl.u32 %v625, 16
        %v705 = vor.u32 %v703, %v701
        %v707 = vshll.u32 %v626, 16
        %v709 = vrot.slane %v707, 1
        %v710 = vsel %vm634, %v705, %v709
        %v711 = vshrl.u32 %v626, 16
        %v713 = vor.u32 %v711, %v709
        %v715 = vshll.u32 %v627, 16
        %v717 = vrot.slane %v715, 1
        %v718 = vsel %vm634, %v713, %v717
        %v719 = vshrl.u32 %v627, 16
        %v721 = vor.u32 %v719, %v717
        %v723 = vshll.u32 %v628, 16
        %v725 = vrot.slane %v723, 1
        %v726 = vsel %vm634, %v721, %v725
        %v727 = vshrl.u32 %v628, 16
        %v729 = vor.u32 %v727, %v725
        %v731 = vshll.u32 %v629, 16
        %v733 = vrot.slane %v731, 1
        %v734 = vsel %vm634, %v729, %v733
        %v735 = vshrl.u32 %v629, 16
        %v737 = vor.u32 %v735, %v733
        %v739 = vshll.u32 %v630, 16
        %v741 = vrot.slane %v739, 1
        %v742 = vsel %vm634, %v737, %v741
        %v743 = vshrl.u32 %v630, 16
        %v745 = vor.u32 %v743, %v741
        %v747 = vshll.u32 %v631, 16
        %v749 = vrot.slane %v747, 1
        %v750 = vsel %vm634, %v745, %v749
        %v751 = vshrl.u32 %v631, 16
        %v753 = vor.u32 %v751, %v749
        %v755 = vshll.u32 %v632, 16
        %v757 = vrot.slane %v755, 1
        %v758 = vsel %vm634, %v753, %v757
        %v759 = vshrl.u32 %v632, 16
        %v761 = vor.u32 %v759, %v757
        %v763 = vshll.u32 %v633, 16
        %v765 = vrot.slane %v763, 1
        %v766 = vsel %vm634, %v761, %v765
        %v799 = vunpack.c.l.b16 %v535
        %v800 = vunpack.c.h.b16 %v535
        %v801 = vunpack.c.l.b16 %v536
        %v802 = vunpack.c.h.b16 %v536
        %v803 = vunpack.c.l.b16 %v537
        %v804 = vunpack.c.h.b16 %v537
        %v805 = vunpack.c.l.b16 %v538
        %v806 = vunpack.c.h.b16 %v538
        %v807 = vunpack.c.l.b16 %v539
        %v808 = vunpack.c.h.b16 %v539
        %v809 = vunpack.c.l.b16 %v540
        %v810 = vunpack.c.h.b16 %v540
        %v811 = vunpack.c.l.b16 %v541
        %v812 = vunpack.c.h.b16 %v541
        %v813 = vunpack.c.l.b16 %v542
        %v814 = vunpack.c.h.b16 %v542
        %v815 = vunpack.c.l.b16 %v543
        %v816 = vunpack.c.h.b16 %v543
        %v817 = vunpack.c.l.b16 %v544
        %v818 = vunpack.c.h.b16 %v544
        %v819 = vunpack.c.l.b16 %v545
        %v820 = vunpack.c.h.b16 %v545
        %v821 = vunpack.c.l.b16 %v546
        %v822 = vunpack.c.h.b16 %v546
        %v823 = vunpack.c.l.b16 %v547
        %v824 = vunpack.c.h.b16 %v547
        %v825 = vunpack.c.l.b16 %v548
        %v826 = vunpack.c.h.b16 %v548
        %v827 = vunpack.c.l.b16 %v549
        %v828 = vunpack.c.h.b16 %v549
        %v829 = vunpack.c.l.b16 %v550
        %v830 = vunpack.c.h.b16 %v550
        %v831 = vpack.c.b16 %v801, %v799
        %v832 = vpack.c.b16 %v802, %v800
        %v833 = vpack.c.b16 %v805, %v803
        %v834 = vpack.c.b16 %v806, %v804
        %v835 = vpack.c.b16 %v809, %v807
        %v836 = vpack.c.b16 %v810, %v808
        %v837 = vpack.c.b16 %v813, %v811
        %v838 = vpack.c.b16 %v814, %v812
        %v839 = vpack.c.b16 %v817, %v815
        %v840 = vpack.c.b16 %v818, %v816
        %v841 = vpack.c.b16 %v821, %v819
        %v842 = vpack.c.b16 %v822, %v820
        %v843 = vpack.c.b16 %v825, %v823
        %v844 = vpack.c.b16 %v826, %v824
        %v845 = vpack.c.b16 %v829, %v827
        %v846 = vpack.c.b16 %v830, %v828
        %863 = vmatprep.subr.bf16.mxu0 %v832
        %864 = vmatpush1.bf16.msra.mxu0 %v831
        %865 = vmatprep.subr.bf16.mxu0 %v834
        %866 = vmatpush1.bf16.msra.mxu0 %v833
        %867 = vmatprep.subr.bf16.mxu0 %v836
        %868 = vmatpush1.bf16.msra.mxu0 %v835
        %869 = vmatprep.subr.bf16.mxu0 %v838
        %870 = vmatpush1.bf16.msra.mxu0 %v837
        %871 = vmatprep.subr.bf16.mxu0 %v840
        %872 = vmatpush1.bf16.msra.mxu0 %v839
        %873 = vmatprep.subr.bf16.mxu0 %v842
        %874 = vmatpush1.bf16.msra.mxu0 %v841
        %875 = vmatprep.subr.bf16.mxu0 %v844
        %876 = vmatpush1.bf16.msra.mxu0 %v843
        %877 = vmatprep.subr.bf16.mxu0 %v846
        %878 = vmatpush1.bf16.msra.mxu0 %v845
        %879 = vmatprep.subr.bf16.mxu0 0
        %880 = vmatpush1.bf16.msra.mxu0 0
        %881 = vmatprep.subr.bf16.mxu0 0
        %882 = vmatpush1.bf16.msra.mxu0 0
        %883 = vmatprep.subr.bf16.mxu0 0
        %884 = vmatpush1.bf16.msra.mxu0 0
        %885 = vmatprep.subr.bf16.mxu0 0
        %886 = vmatpush1.bf16.msra.mxu0 0
        %887 = vmatprep.subr.bf16.mxu0 0
        %888 = vmatpush1.bf16.msra.mxu0 0
        %889 = vmatprep.subr.bf16.mxu0 0
        %890 = vmatpush1.bf16.msra.mxu0 0
        %891 = vmatprep.subr.bf16.mxu0 0
        %892 = vmatpush1.bf16.msra.mxu0 0
        %893 = vmatprep.subr.bf16.mxu0 0
        %894 = vmatpush1.bf16.msra.mxu0 0
        %895 = vmatprep.mubr.bf16.mxu0 0
        %896 = vmatmul.mubr.bf16.gmra.mrb[0].mxu0 %v646
        %v897 = vpop.f32.mrb[0].mxu0
        %v898 = vadd.f32 0.0, %v897
        %v899 = vpop.f32.mrb[0].mxu0
        %v900 = vadd.f32 0.0, %v899
        %v901 = vpop.f32.mrb[0].mxu0
        %v902 = vadd.f32 0.0, %v901
        %v903 = vpop.f32.mrb[0].mxu0
        %v904 = vadd.f32 0.0, %v903
        %905 = vmatprep.mubr.bf16.mxu0 0
        %906 = vmatmul.mubr.bf16.gmra.mrb[0].mxu0 %v654
        %v907 = vpop.f32.mrb[0].mxu0
        %v908 = vadd.f32 0.0, %v907
        %v909 = vpop.f32.mrb[0].mxu0
        %v910 = vadd.f32 0.0, %v909
        %v911 = vpop.f32.mrb[0].mxu0
        %v912 = vadd.f32 0.0, %v911
        %v913 = vpop.f32.mrb[0].mxu0
        %v914 = vadd.f32 0.0, %v913
        %915 = vmatprep.mubr.bf16.mxu0 0
        %916 = vmatmul.mubr.bf16.gmra.mrb[0].mxu0 %v662
        %v917 = vpop.f32.mrb[0].mxu0
        %v918 = vadd.f32 0.0, %v917
        %v919 = vpop.f32.mrb[0].mxu0
        %v920 = vadd.f32 0.0, %v919
        %v921 = vpop.f32.mrb[0].mxu0
        %v922 = vadd.f32 0.0, %v921
        %v923 = vpop.f32.mrb[0].mxu0
        %v924 = vadd.f32 0.0, %v923
        %925 = vmatprep.mubr.bf16.mxu0 0
        %926 = vmatmul.mubr.bf16.gmra.mrb[0].mxu0 %v670
        %v927 = vpop.f32.mrb[0].mxu0
        %v928 = vadd.f32 0.0, %v927
        %v929 = vpop.f32.mrb[0].mxu0
        %v930 = vadd.f32 0.0, %v929
        %v931 = vpop.f32.mrb[0].mxu0
        %v932 = vadd.f32 0.0, %v931
        %v933 = vpop.f32.mrb[0].mxu0
        %v934 = vadd.f32 0.0, %v933
        %935 = vmatprep.mubr.bf16.mxu0 0
        %936 = vmatmul.mubr.bf16.gmra.mrb[0].mxu0 %v678
        %v937 = vpop.f32.mrb[0].mxu0
        %v938 = vadd.f32 0.0, %v937
        %v939 = vpop.f32.mrb[0].mxu0
        %v940 = vadd.f32 0.0, %v939
        %v941 = vpop.f32.mrb[0].mxu0
        %v942 = vadd.f32 0.0, %v941
        %v943 = vpop.f32.mrb[0].mxu0
        %v944 = vadd.f32 0.0, %v943
        %945 = vmatprep.mubr.bf16.mxu0 0
        %946 = vmatmul.mubr.bf16.gmra.mrb[0].mxu0 %v686
        %v947 = vpop.f32.mrb[0].mxu0
        %v948 = vadd.f32 0.0, %v947
        %v949 = vpop.f32.mrb[0].mxu0
        %v950 = vadd.f32 0.0, %v949
        %v951 = vpop.f32.mrb[0].mxu0
        %v952 = vadd.f32 0.0, %v951
        %v953 = vpop.f32.mrb[0].mxu0
        %v954 = vadd.f32 0.0, %v953
        %955 = vmatprep.mubr.bf16.mxu0 0
        %956 = vmatmul.mubr.bf16.gmra.mrb[0].mxu0 %v694
        %v957 = vpop.f32.mrb[0].mxu0
        %v958 = vadd.f32 0.0, %v957
        %v959 = vpop.f32.mrb[0].mxu0
        %v960 = vadd.f32 0.0, %v959
        %v961 = vpop.f32.mrb[0].mxu0
        %v962 = vadd.f32 0.0, %v961
        %v963 = vpop.f32.mrb[0].mxu0
        %v964 = vadd.f32 0.0, %v963
        %965 = vmatprep.mubr.bf16.mxu0 0
        %966 = vmatmul.mubr.bf16.gmra.mrb[0].mxu0 %v702
        %v967 = vpop.f32.mrb[0].mxu0
        %v968 = vadd.f32 0.0, %v967
        %v969 = vpop.f32.mrb[0].mxu0
        %v970 = vadd.f32 0.0, %v969
        %v971 = vpop.f32.mrb[0].mxu0
        %v972 = vadd.f32 0.0, %v971
        %v973 = vpop.f32.mrb[0].mxu0
        %v974 = vadd.f32 0.0, %v973
        %975 = vmatprep.mubr.bf16.mxu0 0
        %976 = vmatmul.mubr.bf16.gmra.mrb[0].mxu0 %v710
        %v977 = vpop.f32.mrb[0].mxu0
        %v978 = vadd.f32 0.0, %v977
        %v979 = vpop.f32.mrb[0].mxu0
        %v980 = vadd.f32 0.0, %v979
        %v981 = vpop.f32.mrb[0].mxu0
        %v982 = vadd.f32 0.0, %v981
        %v983 = vpop.f32.mrb[0].mxu0
        %v984 = vadd.f32 0.0, %v983
        %985 = vmatprep.mubr.bf16.mxu0 0
        %986 = vmatmul.mubr.bf16.gmra.mrb[0].mxu0 %v718
        %v987 = vpop.f32.mrb[0].mxu0
        %v988 = vadd.f32 0.0, %v987
        %v989 = vpop.f32.mrb[0].mxu0
        %v990 = vadd.f32 0.0, %v989
        %v991 = vpop.f32.mrb[0].mxu0
        %v992 = vadd.f32 0.0, %v991
        %v993 = vpop.f32.mrb[0].mxu0
        %v994 = vadd.f32 0.0, %v993
        %995 = vmatprep.mubr.bf16.mxu0 0
        %996 = vmatmul.mubr.bf16.gmra.mrb[0].mxu0 %v726
        %v997 = vpop.f32.mrb[0].mxu0
        %v998 = vadd.f32 0.0, %v997
        %v999 = vpop.f32.mrb[0].mxu0
        %v1000 = vadd.f32 0.0, %v999
        %v1001 = vpop.f32.mrb[0].mxu0
        %v1002 = vadd.f32 0.0, %v1001
        %v1003 = vpop.f32.mrb[0].mxu0
        %v1004 = vadd.f32 0.0, %v1003
        %1005 = vmatprep.mubr.bf16.mxu0 0
        %1006 = vmatmul.mubr.bf16.gmra.mrb[0].mxu0 %v734
        %v1007 = vpop.f32.mrb[0].mxu0
        %v1008 = vadd.f32 0.0, %v1007
        %v1009 = vpop.f32.mrb[0].mxu0
        %v1010 = vadd.f32 0.0, %v1009
        %v1011 = vpop.f32.mrb[0].mxu0
        %v1012 = vadd.f32 0.0, %v1011
        %v1013 = vpop.f32.mrb[0].mxu0
        %v1014 = vadd.f32 0.0, %v1013
        %1015 = vmatprep.mubr.bf16.mxu0 0
        %1016 = vmatmul.mubr.bf16.gmra.mrb[0].mxu0 %v742
        %v1017 = vpop.f32.mrb[0].mxu0
        %v1018 = vadd.f32 0.0, %v1017
        %v1019 = vpop.f32.mrb[0].mxu0
        %v1020 = vadd.f32 0.0, %v1019
        %v1021 = vpop.f32.mrb[0].mxu0
        %v1022 = vadd.f32 0.0, %v1021
        %v1023 = vpop.f32.mrb[0].mxu0
        %v1024 = vadd.f32 0.0, %v1023
        %1025 = vmatprep.mubr.bf16.mxu0 0
        %1026 = vmatmul.mubr.bf16.gmra.mrb[0].mxu0 %v750
        %v1027 = vpop.f32.mrb[0].mxu0
        %v1028 = vadd.f32 0.0, %v1027
        %v1029 = vpop.f32.mrb[0].mxu0
        %v1030 = vadd.f32 0.0, %v1029
        %v1031 = vpop.f32.mrb[0].mxu0
        %v1032 = vadd.f32 0.0, %v1031
        %v1033 = vpop.f32.mrb[0].mxu0
        %v1034 = vadd.f32 0.0, %v1033
        %1035 = vmatprep.mubr.bf16.mxu0 0
        %1036 = vmatmul.mubr.bf16.gmra.mrb[0].mxu0 %v758
        %v1037 = vpop.f32.mrb[0].mxu0
        %v1038 = vadd.f32 0.0, %v1037
        %v1039 = vpop.f32.mrb[0].mxu0
        %v1040 = vadd.f32 0.0, %v1039
        %v1041 = vpop.f32.mrb[0].mxu0
        %v1042 = vadd.f32 0.0, %v1041
        %v1043 = vpop.f32.mrb[0].mxu0
        %v1044 = vadd.f32 0.0, %v1043
        %1045 = vmatprep.mubr.bf16.mxu0 0
        %1046 = vmatmul.mubr.bf16.gmra.mrb[0].mxu0 %v766
        %v1047 = vpop.f32.mrb[0].mxu0
        %v1048 = vadd.f32 0.0, %v1047
        %v1049 = vpop.f32.mrb[0].mxu0
        %v1050 = vadd.f32 0.0, %v1049
        %v1051 = vpop.f32.mrb[0].mxu0
        %v1052 = vadd.f32 0.0, %v1051
        %v1053 = vpop.f32.mrb[0].mxu0
        %v1054 = vadd.f32 0.0, %v1053
        %1055 = vdwg.mxu0
        %v1088 = vunpack.c.l.b16 %v453
        %v1089 = vunpack.c.l.b16 %v454
        %v1090 = vunpack.c.l.b16 %v455
        %v1091 = vunpack.c.l.b16 %v456
        %v1092 = vunpack.c.l.b16 %v457
        %v1093 = vunpack.c.l.b16 %v458
        %v1094 = vunpack.c.l.b16 %v459
        %v1095 = vunpack.c.l.b16 %v460
        %v1096 = vunpack.c.l.b16 %v461
        %v1097 = vunpack.c.l.b16 %v462
        %v1098 = vunpack.c.l.b16 %v463
        %v1099 = vunpack.c.l.b16 %v464
        %v1100 = vunpack.c.l.b16 %v465
        %v1101 = vunpack.c.l.b16 %v466
        %v1102 = vunpack.c.l.b16 %v467
        %v1103 = vunpack.c.l.b16 %v468
        %v1104 = vunpack.c.l.b16 %v469
        %v1105 = vunpack.c.l.b16 %v470
        %v1106 = vunpack.c.l.b16 %v471
        %v1107 = vunpack.c.l.b16 %v472
        %v1108 = vunpack.c.l.b16 %v473
        %v1109 = vunpack.c.l.b16 %v474
        %v1110 = vunpack.c.l.b16 %v475
        %v1111 = vunpack.c.l.b16 %v476
        %v1112 = vunpack.c.l.b16 %v477
        %v1113 = vunpack.c.l.b16 %v478
        %v1114 = vunpack.c.l.b16 %v479
        %v1115 = vunpack.c.l.b16 %v480
        %v1116 = vunpack.c.l.b16 %v481
        %v1117 = vunpack.c.l.b16 %v482
        %v1118 = vunpack.c.l.b16 %v483
        %v1119 = vunpack.c.l.b16 %v484
        %v1120 = vpack.c.b16 %v1089, %v1088
        %v1121 = vpack.c.b16 %v1091, %v1090
        %v1122 = vpack.c.b16 %v1093, %v1092
        %v1123 = vpack.c.b16 %v1095, %v1094
        %v1124 = vpack.c.b16 %v1097, %v1096
        %v1125 = vpack.c.b16 %v1099, %v1098
        %v1126 = vpack.c.b16 %v1101, %v1100
        %v1127 = vpack.c.b16 %v1103, %v1102
        %v1128 = vpack.c.b16 %v1105, %v1104
        %v1129 = vpack.c.b16 %v1107, %v1106
        %v1130 = vpack.c.b16 %v1109, %v1108
        %v1131 = vpack.c.b16 %v1111, %v1110
        %v1132 = vpack.c.b16 %v1113, %v1112
        %v1133 = vpack.c.b16 %v1115, %v1114
        %v1134 = vpack.c.b16 %v1117, %v1116
        %v1135 = vpack.c.b16 %v1119, %v1118
        %v1168 = vunpack.c.l.b16 %v485
        %v1169 = vunpack.c.h.b16 %v485
        %v1170 = vunpack.c.l.b16 %v486
        %v1171 = vunpack.c.h.b16 %v486
        %v1172 = vunpack.c.l.b16 %v487
        %v1173 = vunpack.c.h.b16 %v487
        %v1174 = vunpack.c.l.b16 %v488
        %v1175 = vunpack.c.h.b16 %v488
        %v1176 = vunpack.c.l.b16 %v489
        %v1177 = vunpack.c.h.b16 %v489
        %v1178 = vunpack.c.l.b16 %v490
        %v1179 = vunpack.c.h.b16 %v490
        %v1180 = vunpack.c.l.b16 %v491
        %v1181 = vunpack.c.h.b16 %v491
        %v1182 = vunpack.c.l.b16 %v492
        %v1183 = vunpack.c.h.b16 %v492
        %v1184 = vunpack.c.l.b16 %v493
        %v1185 = vunpack.c.h.b16 %v493
        %v1186 = vunpack.c.l.b16 %v494
        %v1187 = vunpack.c.h.b16 %v494
        %v1188 = vunpack.c.l.b16 %v495
        %v1189 = vunpack.c.h.b16 %v495
        %v1190 = vunpack.c.l.b16 %v496
        %v1191 = vunpack.c.h.b16 %v496
        %v1192 = vunpack.c.l.b16 %v497
        %v1193 = vunpack.c.h.b16 %v497
        %v1194 = vunpack.c.l.b16 %v498
        %v1195 = vunpack.c.h.b16 %v498
        %v1196 = vunpack.c.l.b16 %v499
        %v1197 = vunpack.c.h.b16 %v499
        %v1198 = vunpack.c.l.b16 %v500
        %v1199 = vunpack.c.h.b16 %v500
        %v1200 = vpack.c.b16 %v1170, %v1168
        %v1201 = vpack.c.b16 %v1171, %v1169
        %v1202 = vpack.c.b16 %v1174, %v1172
        %v1203 = vpack.c.b16 %v1175, %v1173
        %v1204 = vpack.c.b16 %v1178, %v1176
        %v1205 = vpack.c.b16 %v1179, %v1177
        %v1206 = vpack.c.b16 %v1182, %v1180
        %v1207 = vpack.c.b16 %v1183, %v1181
        %v1208 = vpack.c.b16 %v1186, %v1184
        %v1209 = vpack.c.b16 %v1187, %v1185
        %v1210 = vpack.c.b16 %v1190, %v1188
        %v1211 = vpack.c.b16 %v1191, %v1189
        %v1212 = vpack.c.b16 %v1194, %v1192
        %v1213 = vpack.c.b16 %v1195, %v1193
        %v1214 = vpack.c.b16 %v1198, %v1196
        %v1215 = vpack.c.b16 %v1199, %v1197
        %1232 = vmatprep.subr.bf16.mxu0 %v1201
        %1233 = vmatpush1.bf16.msra.mxu0 %v1200
        %1234 = vmatprep.subr.bf16.mxu0 %v1203
        %1235 = vmatpush1.bf16.msra.mxu0 %v1202
        %1236 = vmatprep.subr.bf16.mxu0 %v1205
        %1237 = vmatpush1.bf16.msra.mxu0 %v1204
        %1238 = vmatprep.subr.bf16.mxu0 %v1207
        %1239 = vmatpush1.bf16.msra.mxu0 %v1206
        %1240 = vmatprep.subr.bf16.mxu0 %v1209
        %1241 = vmatpush1.bf16.msra.mxu0 %v1208
        %1242 = vmatprep.subr.bf16.mxu0 %v1211
        %1243 = vmatpush1.bf16.msra.mxu0 %v1210
        %1244 = vmatprep.subr.bf16.mxu0 %v1213
        %1245 = vmatpush1.bf16.msra.mxu0 %v1212
        %1246 = vmatprep.subr.bf16.mxu0 %v1215
        %1247 = vmatpush1.bf16.msra.mxu0 %v1214
        %1248 = vmatprep.subr.bf16.mxu0 0
        %1249 = vmatpush1.bf16.msra.mxu0 0
        %1250 = vmatprep.subr.bf16.mxu0 0
        %1251 = vmatpush1.bf16.msra.mxu0 0
        %1252 = vmatprep.subr.bf16.mxu0 0
        %1253 = vmatpush1.bf16.msra.mxu0 0
        %1254 = vmatprep.subr.bf16.mxu0 0
        %1255 = vmatpush1.bf16.msra.mxu0 0
        %1256 = vmatprep.subr.bf16.mxu0 0
        %1257 = vmatpush1.bf16.msra.mxu0 0
        %1258 = vmatprep.subr.bf16.mxu0 0
        %1259 = vmatpush1.bf16.msra.mxu0 0
        %1260 = vmatprep.subr.bf16.mxu0 0
        %1261 = vmatpush1.bf16.msra.mxu0 0
        %1262 = vmatprep.subr.bf16.mxu0 0
        %1263 = vmatpush1.bf16.msra.mxu0 0
        %1264 = vmatprep.mubr.bf16.mxu0 0
        %1265 = vmatmul.mubr.bf16.gmra.mrb[0].mxu0 %v1120
        %v1266 = vpop.f32.mrb[0].mxu0
        %v1267 = vadd.f32 %v898, %v1266
        %v1268 = vpop.f32.mrb[0].mxu0
        %v1269 = vadd.f32 %v900, %v1268
        %v1270 = vpop.f32.mrb[0].mxu0
        %v1271 = vadd.f32 %v902, %v1270
        %v1272 = vpop.f32.mrb[0].mxu0
        %v1273 = vadd.f32 %v904, %v1272
        %1274 = vmatprep.mubr.bf16.mxu0 0
        %1275 = vmatmul.mubr.bf16.gmra.mrb[0].mxu0 %v1121
        %v1276 = vpop.f32.mrb[0].mxu0
        %v1277 = vadd.f32 %v908, %v1276
        %v1278 = vpop.f32.mrb[0].mxu0
        %v1279 = vadd.f32 %v910, %v1278
        %v1280 = vpop.f32.mrb[0].mxu0
        %v1281 = vadd.f32 %v912, %v1280
        %v1282 = vpop.f32.mrb[0].mxu0
        %v1283 = vadd.f32 %v914, %v1282
        %1284 = vmatprep.mubr.bf16.mxu0 0
        %1285 = vmatmul.mubr.bf16.gmra.mrb[0].mxu0 %v1122
        %v1286 = vpop.f32.mrb[0].mxu0
        %v1287 = vadd.f32 %v918, %v1286
        %v1288 = vpop.f32.mrb[0].mxu0
        %v1289 = vadd.f32 %v920, %v1288
        %v1290 = vpop.f32.mrb[0].mxu0
        %v1291 = vadd.f32 %v922, %v1290
        %v1292 = vpop.f32.mrb[0].mxu0
        %v1293 = vadd.f32 %v924, %v1292
        %1294 = vmatprep.mubr.bf16.mxu0 0
        %1295 = vmatmul.mubr.bf16.gmra.mrb[0].mxu0 %v1123
        %v1296 = vpop.f32.mrb[0].mxu0
        %v1297 = vadd.f32 %v928, %v1296
        %v1298 = vpop.f32.mrb[0].mxu0
        %v1299 = vadd.f32 %v930, %v1298
        %v1300 = vpop.f32.mrb[0].mxu0
        %v1301 = vadd.f32 %v932, %v1300
        %v1302 = vpop.f32.mrb[0].mxu0
        %v1303 = vadd.f32 %v934, %v1302
        %1304 = vmatprep.mubr.bf16.mxu0 0
        %1305 = vmatmul.mubr.bf16.gmra.mrb[0].mxu0 %v1124
        %v1306 = vpop.f32.mrb[0].mxu0
        %v1307 = vadd.f32 %v938, %v1306
        %v1308 = vpop.f32.mrb[0].mxu0
        %v1309 = vadd.f32 %v940, %v1308
        %v1310 = vpop.f32.mrb[0].mxu0
        %v1311 = vadd.f32 %v942, %v1310
        %v1312 = vpop.f32.mrb[0].mxu0
        %v1313 = vadd.f32 %v944, %v1312
        %1314 = vmatprep.mubr.bf16.mxu0 0
        %1315 = vmatmul.mubr.bf16.gmra.mrb[0].mxu0 %v1125
        %v1316 = vpop.f32.mrb[0].mxu0
        %v1317 = vadd.f32 %v948, %v1316
        %v1318 = vpop.f32.mrb[0].mxu0
        %v1319 = vadd.f32 %v950, %v1318
        %v1320 = vpop.f32.mrb[0].mxu0
        %v1321 = vadd.f32 %v952, %v1320
        %v1322 = vpop.f32.mrb[0].mxu0
        %v1323 = vadd.f32 %v954, %v1322
        %1324 = vmatprep.mubr.bf16.mxu0 0
        %1325 = vmatmul.mubr.bf16.gmra.mrb[0].mxu0 %v1126
        %v1326 = vpop.f32.mrb[0].mxu0
        %v1327 = vadd.f32 %v958, %v1326
        %v1328 = vpop.f32.mrb[0].mxu0
        %v1329 = vadd.f32 %v960, %v1328
        %v1330 = vpop.f32.mrb[0].mxu0
        %v1331 = vadd.f32 %v962, %v1330
        %v1332 = vpop.f32.mrb[0].mxu0
        %v1333 = vadd.f32 %v964, %v1332
        %1334 = vmatprep.mubr.bf16.mxu0 0
        %1335 = vmatmul.mubr.bf16.gmra.mrb[0].mxu0 %v1127
        %v1336 = vpop.f32.mrb[0].mxu0
        %v1337 = vadd.f32 %v968, %v1336
        %v1338 = vpop.f32.mrb[0].mxu0
        %v1339 = vadd.f32 %v970, %v1338
        %v1340 = vpop.f32.mrb[0].mxu0
        %v1341 = vadd.f32 %v972, %v1340
        %v1342 = vpop.f32.mrb[0].mxu0
        %v1343 = vadd.f32 %v974, %v1342
        %1344 = vmatprep.mubr.bf16.mxu0 0
        %1345 = vmatmul.mubr.bf16.gmra.mrb[0].mxu0 %v1128
        %v1346 = vpop.f32.mrb[0].mxu0
        %v1347 = vadd.f32 %v978, %v1346
        %v1348 = vpop.f32.mrb[0].mxu0
        %v1349 = vadd.f32 %v980, %v1348
        %v1350 = vpop.f32.mrb[0].mxu0
        %v1351 = vadd.f32 %v982, %v1350
        %v1352 = vpop.f32.mrb[0].mxu0
        %v1353 = vadd.f32 %v984, %v1352
        %1354 = vmatprep.mubr.bf16.mxu0 0
        %1355 = vmatmul.mubr.bf16.gmra.mrb[0].mxu0 %v1129
        %v1356 = vpop.f32.mrb[0].mxu0
        %v1357 = vadd.f32 %v988, %v1356
        %v1358 = vpop.f32.mrb[0].mxu0
        %v1359 = vadd.f32 %v990, %v1358
        %v1360 = vpop.f32.mrb[0].mxu0
        %v1361 = vadd.f32 %v992, %v1360
        %v1362 = vpop.f32.mrb[0].mxu0
        %v1363 = vadd.f32 %v994, %v1362
        %1364 = vmatprep.mubr.bf16.mxu0 0
        %1365 = vmatmul.mubr.bf16.gmra.mrb[0].mxu0 %v1130
        %v1366 = vpop.f32.mrb[0].mxu0
        %v1367 = vadd.f32 %v998, %v1366
        %v1368 = vpop.f32.mrb[0].mxu0
        %v1369 = vadd.f32 %v1000, %v1368
        %v1370 = vpop.f32.mrb[0].mxu0
        %v1371 = vadd.f32 %v1002, %v1370
        %v1372 = vpop.f32.mrb[0].mxu0
        %v1373 = vadd.f32 %v1004, %v1372
        %1374 = vmatprep.mubr.bf16.mxu0 0
        %1375 = vmatmul.mubr.bf16.gmra.mrb[0].mxu0 %v1131
        %v1376 = vpop.f32.mrb[0].mxu0
        %v1377 = vadd.f32 %v1008, %v1376
        %v1378 = vpop.f32.mrb[0].mxu0
        %v1379 = vadd.f32 %v1010, %v1378
        %v1380 = vpop.f32.mrb[0].mxu0
        %v1381 = vadd.f32 %v1012, %v1380
        %v1382 = vpop.f32.mrb[0].mxu0
        %v1383 = vadd.f32 %v1014, %v1382
        %1384 = vmatprep.mubr.bf16.mxu0 0
        %1385 = vmatmul.mubr.bf16.gmra.mrb[0].mxu0 %v1132
        %v1386 = vpop.f32.mrb[0].mxu0
        %v1387 = vadd.f32 %v1018, %v1386
        %v1388 = vpop.f32.mrb[0].mxu0
        %v1389 = vadd.f32 %v1020, %v1388
        %v1390 = vpop.f32.mrb[0].mxu0
        %v1391 = vadd.f32 %v1022, %v1390
        %v1392 = vpop.f32.mrb[0].mxu0
        %v1393 = vadd.f32 %v1024, %v1392
        %1394 = vmatprep.mubr.bf16.mxu0 0
        %1395 = vmatmul.mubr.bf16.gmra.mrb[0].mxu0 %v1133
        %v1396 = vpop.f32.mrb[0].mxu0
        %v1397 = vadd.f32 %v1028, %v1396
        %v1398 = vpop.f32.mrb[0].mxu0
        %v1399 = vadd.f32 %v1030, %v1398
        %v1400 = vpop.f32.mrb[0].mxu0
        %v1401 = vadd.f32 %v1032, %v1400
        %v1402 = vpop.f32.mrb[0].mxu0
        %v1403 = vadd.f32 %v1034, %v1402
        %1404 = vmatprep.mubr.bf16.mxu0 0
        %1405 = vmatmul.mubr.bf16.gmra.mrb[0].mxu0 %v1134
        %v1406 = vpop.f32.mrb[0].mxu0
        %v1407 = vadd.f32 %v1038, %v1406
        %v1408 = vpop.f32.mrb[0].mxu0
        %v1409 = vadd.f32 %v1040, %v1408
        %v1410 = vpop.f32.mrb[0].mxu0
        %v1411 = vadd.f32 %v1042, %v1410
        %v1412 = vpop.f32.mrb[0].mxu0
        %v1413 = vadd.f32 %v1044, %v1412
        %1414 = vmatprep.mubr.bf16.mxu0 0
        %1415 = vmatmul.mubr.bf16.gmra.mrb[0].mxu0 %v1135
        %v1416 = vpop.f32.mrb[0].mxu0
        %v1417 = vadd.f32 %v1048, %v1416
        %v1418 = vpop.f32.mrb[0].mxu0
        %v1419 = vadd.f32 %v1050, %v1418
        %v1420 = vpop.f32.mrb[0].mxu0
        %v1421 = vadd.f32 %v1052, %v1420
        %v1422 = vpop.f32.mrb[0].mxu0
        %v1423 = vadd.f32 %v1054, %v1422
        %1424 = vdwg.mxu0
        %v1425 = vld [vmem:[#allocation2] sm:$0xe]
        %s1426 = scalar_lea.vmem %s1, 256
        %v1427 = vld [vmem:[%s1426] sm:$0xff]
        %v1428 = vld [vmem:[%s1426 + $0x8] sm:$0xff]
        %v1429 = vld [vmem:[%s1426 + $0x10] sm:$0xff]
        %v1430 = vld [vmem:[%s1426 + $0x18] sm:$0xff]
        %v1431 = vld [vmem:[%s1426 + $0x20] sm:$0xff]
        %v1432 = vld [vmem:[%s1426 + $0x28] sm:$0xff]
        %v1433 = vld [vmem:[%s1426 + $0x30] sm:$0xff]
        %v1434 = vld [vmem:[%s1426 + $0x38] sm:$0xff]
        %v1435 = vld [vmem:[%s1426 + $0x40] sm:$0xff]
        %v1436 = vld [vmem:[%s1426 + $0x48] sm:$0xff]
        %v1437 = vld [vmem:[%s1426 + $0x50] sm:$0xff]
        %v1438 = vld [vmem:[%s1426 + $0x58] sm:$0xff]
        %v1439 = vld [vmem:[%s1426 + $0x60] sm:$0xff]
        %v1440 = vld [vmem:[%s1426 + $0x68] sm:$0xff]
        %v1441 = vld [vmem:[%s1426 + $0x70] sm:$0xff]
        %v1442 = vld [vmem:[%s1426 + $0x78] sm:$0xff]
        %v1444 = vunpack.c.l.b16 %v1425
        %v1445 = vpack.c.b16 %v585, %v1444
        %vm1446 = vcmask 1046528
        %v1447 = vrot.slane %v1445, 1
        %v1448 = vrot.slane %v618, 1
        %v1449 = vsel %vm1446, %v1447, %v1448
        %v1450 = vrot.slane %v619, 1
        %v1451 = vsel %vm1446, %v1448, %v1450
        %v1452 = vrot.slane %v620, 1
        %v1453 = vsel %vm1446, %v1450, %v1452
        %v1454 = vrot.slane %v621, 1
        %v1455 = vsel %vm1446, %v1452, %v1454
        %v1456 = vrot.slane %v622, 1
        %v1457 = vsel %vm1446, %v1454, %v1456
        %v1458 = vrot.slane %v623, 1
        %v1459 = vsel %vm1446, %v1456, %v1458
        %v1460 = vrot.slane %v624, 1
        %v1461 = vsel %vm1446, %v1458, %v1460
        %v1462 = vrot.slane %v625, 1
        %v1463 = vsel %vm1446, %v1460, %v1462
        %v1464 = vrot.slane %v626, 1
        %v1465 = vsel %vm1446, %v1462, %v1464
        %v1466 = vrot.slane %v627, 1
        %v1467 = vsel %vm1446, %v1464, %v1466
        %v1468 = vrot.slane %v628, 1
        %v1469 = vsel %vm1446, %v1466, %v1468
        %v1470 = vrot.slane %v629, 1
        %v1471 = vsel %vm1446, %v1468, %v1470
        %v1472 = vrot.slane %v630, 1
        %v1473 = vsel %vm1446, %v1470, %v1472
        %v1474 = vrot.slane %v631, 1
        %v1475 = vsel %vm1446, %v1472, %v1474
        %v1476 = vrot.slane %v632, 1
        %v1477 = vsel %vm1446, %v1474, %v1476
        %v1478 = vrot.slane %v633, 1
        %v1479 = vsel %vm1446, %v1476, %v1478
        %v1512 = vunpack.c.l.b16 %v1427
        %v1513 = vunpack.c.h.b16 %v1427
        %v1514 = vunpack.c.l.b16 %v1428
        %v1515 = vunpack.c.h.b16 %v1428
        %v1516 = vunpack.c.l.b16 %v1429
        %v1517 = vunpack.c.h.b16 %v1429
        %v1518 = vunpack.c.l.b16 %v1430
        %v1519 = vunpack.c.h.b16 %v1430
        %v1520 = vunpack.c.l.b16 %v1431
        %v1521 = vunpack.c.h.b16 %v1431
        %v1522 = vunpack.c.l.b16 %v1432
        %v1523 = vunpack.c.h.b16 %v1432
        %v1524 = vunpack.c.l.b16 %v1433
        %v1525 = vunpack.c.h.b16 %v1433
        %v1526 = vunpack.c.l.b16 %v1434
        %v1527 = vunpack.c.h.b16 %v1434
        %v1528 = vunpack.c.l.b16 %v1435
        %v1529 = vunpack.c.h.b16 %v1435
        %v1530 = vunpack.c.l.b16 %v1436
        %v1531 = vunpack.c.h.b16 %v1436
        %v1532 = vunpack.c.l.b16 %v1437
        %v1533 = vunpack.c.h.b16 %v1437
        %v1534 = vunpack.c.l.b16 %v1438
        %v1535 = vunpack.c.h.b16 %v1438
        %v1536 = vunpack.c.l.b16 %v1439
        %v1537 = vunpack.c.h.b16 %v1439
        %v1538 = vunpack.c.l.b16 %v1440
        %v1539 = vunpack.c.h.b16 %v1440
        %v1540 = vunpack.c.l.b16 %v1441
        %v1541 = vunpack.c.h.b16 %v1441
        %v1542 = vunpack.c.l.b16 %v1442
        %v1543 = vunpack.c.h.b16 %v1442
        %v1544 = vpack.c.b16 %v1514, %v1512
        %v1545 = vpack.c.b16 %v1515, %v1513
        %v1546 = vpack.c.b16 %v1518, %v1516
        %v1547 = vpack.c.b16 %v1519, %v1517
        %v1548 = vpack.c.b16 %v1522, %v1520
        %v1549 = vpack.c.b16 %v1523, %v1521
        %v1550 = vpack.c.b16 %v1526, %v1524
        %v1551 = vpack.c.b16 %v1527, %v1525
        %v1552 = vpack.c.b16 %v1530, %v1528
        %v1553 = vpack.c.b16 %v1531, %v1529
        %v1554 = vpack.c.b16 %v1534, %v1532
        %v1555 = vpack.c.b16 %v1535, %v1533
        %v1556 = vpack.c.b16 %v1538, %v1536
        %v1557 = vpack.c.b16 %v1539, %v1537
        %v1558 = vpack.c.b16 %v1542, %v1540
        %v1559 = vpack.c.b16 %v1543, %v1541
        %1576 = vmatprep.subr.bf16.mxu0 %v1545
        %1577 = vmatpush1.bf16.msra.mxu0 %v1544
        %1578 = vmatprep.subr.bf16.mxu0 %v1547
        %1579 = vmatpush1.bf16.msra.mxu0 %v1546
        %1580 = vmatprep.subr.bf16.mxu0 %v1549
        %1581 = vmatpush1.bf16.msra.mxu0 %v1548
        %1582 = vmatprep.subr.bf16.mxu0 %v1551
        %1583 = vmatpush1.bf16.msra.mxu0 %v1550
        %1584 = vmatprep.subr.bf16.mxu0 %v1553
        %1585 = vmatpush1.bf16.msra.mxu0 %v1552
        %1586 = vmatprep.subr.bf16.mxu0 %v1555
        %1587 = vmatpush1.bf16.msra.mxu0 %v1554
        %1588 = vmatprep.subr.bf16.mxu0 %v1557
        %1589 = vmatpush1.bf16.msra.mxu0 %v1556
        %1590 = vmatprep.subr.bf16.mxu0 %v1559
        %1591 = vmatpush1.bf16.msra.mxu0 %v1558
        %1592 = vmatprep.subr.bf16.mxu0 0
        %1593 = vmatpush1.bf16.msra.mxu0 0
        %1594 = vmatprep.subr.bf16.mxu0 0
        %1595 = vmatpush1.bf16.msra.mxu0 0
        %1596 = vmatprep.subr.bf16.mxu0 0
        %1597 = vmatpush1.bf16.msra.mxu0 0
        %1598 = vmatprep.subr.bf16.mxu0 0
        %1599 = vmatpush1.bf16.msra.mxu0 0
        %1600 = vmatprep.subr.bf16.mxu0 0
        %1601 = vmatpush1.bf16.msra.mxu0 0
        %1602 = vmatprep.subr.bf16.mxu0 0
        %1603 = vmatpush1.bf16.msra.mxu0 0
        %1604 = vmatprep.subr.bf16.mxu0 0
        %1605 = vmatpush1.bf16.msra.mxu0 0
        %1606 = vmatprep.subr.bf16.mxu0 0
        %1607 = vmatpush1.bf16.msra.mxu0 0
        %1608 = vmatprep.mubr.bf16.mxu0 0
        %1609 = vmatmul.mubr.bf16.gmra.mrb[0].mxu0 %v1449
        %v1610 = vpop.f32.mrb[0].mxu0
        %v1611 = vadd.f32 0.0, %v1610
        %v1612 = vpop.f32.mrb[0].mxu0
        %v1613 = vadd.f32 0.0, %v1612
        %v1614 = vpop.f32.mrb[0].mxu0
        %v1615 = vadd.f32 0.0, %v1614
        %v1616 = vpop.f32.mrb[0].mxu0
        %v1617 = vadd.f32 0.0, %v1616
        %1618 = vmatprep.mubr.bf16.mxu0 0
        %1619 = vmatmul.mubr.bf16.gmra.mrb[0].mxu0 %v1451
        %v1620 = vpop.f32.mrb[0].mxu0
        %v1621 = vadd.f32 0.0, %v1620
        %v1622 = vpop.f32.mrb[0].mxu0
        %v1623 = vadd.f32 0.0, %v1622
        %v1624 = vpop.f32.mrb[0].mxu0
        %v1625 = vadd.f32 0.0, %v1624
        %v1626 = vpop.f32.mrb[0].mxu0
        %v1627 = vadd.f32 0.0, %v1626
        %1628 = vmatprep.mubr.bf16.mxu0 0
        %1629 = vmatmul.mubr.bf16.gmra.mrb[0].mxu0 %v1453
        %v1630 = vpop.f32.mrb[0].mxu0
        %v1631 = vadd.f32 0.0, %v1630
        %v1632 = vpop.f32.mrb[0].mxu0
        %v1633 = vadd.f32 0.0, %v1632
        %v1634 = vpop.f32.mrb[0].mxu0
        %v1635 = vadd.f32 0.0, %v1634
        %v1636 = vpop.f32.mrb[0].mxu0
        %v1637 = vadd.f32 0.0, %v1636
        %1638 = vmatprep.mubr.bf16.mxu0 0
        %1639 = vmatmul.mubr.bf16.gmra.mrb[0].mxu0 %v1455
        %v1640 = vpop.f32.mrb[0].mxu0
        %v1641 = vadd.f32 0.0, %v1640
        %v1642 = vpop.f32.mrb[0].mxu0
        %v1643 = vadd.f32 0.0, %v1642
        %v1644 = vpop.f32.mrb[0].mxu0
        %v1645 = vadd.f32 0.0, %v1644
        %v1646 = vpop.f32.mrb[0].mxu0
        %v1647 = vadd.f32 0.0, %v1646
        %1648 = vmatprep.mubr.bf16.mxu0 0
        %1649 = vmatmul.mubr.bf16.gmra.mrb[0].mxu0 %v1457
        %v1650 = vpop.f32.mrb[0].mxu0
        %v1651 = vadd.f32 0.0, %v1650
        %v1652 = vpop.f32.mrb[0].mxu0
        %v1653 = vadd.f32 0.0, %v1652
        %v1654 = vpop.f32.mrb[0].mxu0
        %v1655 = vadd.f32 0.0, %v1654
        %v1656 = vpop.f32.mrb[0].mxu0
        %v1657 = vadd.f32 0.0, %v1656
        %1658 = vmatprep.mubr.bf16.mxu0 0
        %1659 = vmatmul.mubr.bf16.gmra.mrb[0].mxu0 %v1459
        %v1660 = vpop.f32.mrb[0].mxu0
        %v1661 = vadd.f32 0.0, %v1660
        %v1662 = vpop.f32.mrb[0].mxu0
        %v1663 = vadd.f32 0.0, %v1662
        %v1664 = vpop.f32.mrb[0].mxu0
        %v1665 = vadd.f32 0.0, %v1664
        %v1666 = vpop.f32.mrb[0].mxu0
        %v1667 = vadd.f32 0.0, %v1666
        %1668 = vmatprep.mubr.bf16.mxu0 0
        %1669 = vmatmul.mubr.bf16.gmra.mrb[0].mxu0 %v1461
        %v1670 = vpop.f32.mrb[0].mxu0
        %v1671 = vadd.f32 0.0, %v1670
        %v1672 = vpop.f32.mrb[0].mxu0
        %v1673 = vadd.f32 0.0, %v1672
        %v1674 = vpop.f32.mrb[0].mxu0
        %v1675 = vadd.f32 0.0, %v1674
        %v1676 = vpop.f32.mrb[0].mxu0
        %v1677 = vadd.f32 0.0, %v1676
        %1678 = vmatprep.mubr.bf16.mxu0 0
        %1679 = vmatmul.mubr.bf16.gmra.mrb[0].mxu0 %v1463
        %v1680 = vpop.f32.mrb[0].mxu0
        %v1681 = vadd.f32 0.0, %v1680
        %v1682 = vpop.f32.mrb[0].mxu0
        %v1683 = vadd.f32 0.0, %v1682
        %v1684 = vpop.f32.mrb[0].mxu0
        %v1685 = vadd.f32 0.0, %v1684
        %v1686 = vpop.f32.mrb[0].mxu0
        %v1687 = vadd.f32 0.0, %v1686
        %1688 = vmatprep.mubr.bf16.mxu0 0
        %1689 = vmatmul.mubr.bf16.gmra.mrb[0].mxu0 %v1465
        %v1690 = vpop.f32.mrb[0].mxu0
        %v1691 = vadd.f32 0.0, %v1690
        %v1692 = vpop.f32.mrb[0].mxu0
        %v1693 = vadd.f32 0.0, %v1692
        %v1694 = vpop.f32.mrb[0].mxu0
        %v1695 = vadd.f32 0.0, %v1694
        %v1696 = vpop.f32.mrb[0].mxu0
        %v1697 = vadd.f32 0.0, %v1696
        %1698 = vmatprep.mubr.bf16.mxu0 0
        %1699 = vmatmul.mubr.bf16.gmra.mrb[0].mxu0 %v1467
        %v1700 = vpop.f32.mrb[0].mxu0
        %v1701 = vadd.f32 0.0, %v1700
        %v1702 = vpop.f32.mrb[0].mxu0
        %v1703 = vadd.f32 0.0, %v1702
        %v1704 = vpop.f32.mrb[0].mxu0
        %v1705 = vadd.f32 0.0, %v1704
        %v1706 = vpop.f32.mrb[0].mxu0
        %v1707 = vadd.f32 0.0, %v1706
        %1708 = vmatprep.mubr.bf16.mxu0 0
        %1709 = vmatmul.mubr.bf16.gmra.mrb[0].mxu0 %v1469
        %v1710 = vpop.f32.mrb[0].mxu0
        %v1711 = vadd.f32 0.0, %v1710
        %v1712 = vpop.f32.mrb[0].mxu0
        %v1713 = vadd.f32 0.0, %v1712
        %v1714 = vpop.f32.mrb[0].mxu0
        %v1715 = vadd.f32 0.0, %v1714
        %v1716 = vpop.f32.mrb[0].mxu0
        %v1717 = vadd.f32 0.0, %v1716
        %1718 = vmatprep.mubr.bf16.mxu0 0
        %1719 = vmatmul.mubr.bf16.gmra.mrb[0].mxu0 %v1471
        %v1720 = vpop.f32.mrb[0].mxu0
        %v1721 = vadd.f32 0.0, %v1720
        %v1722 = vpop.f32.mrb[0].mxu0
        %v1723 = vadd.f32 0.0, %v1722
        %v1724 = vpop.f32.mrb[0].mxu0
        %v1725 = vadd.f32 0.0, %v1724
        %v1726 = vpop.f32.mrb[0].mxu0
        %v1727 = vadd.f32 0.0, %v1726
        %1728 = vmatprep.mubr.bf16.mxu0 0
        %1729 = vmatmul.mubr.bf16.gmra.mrb[0].mxu0 %v1473
        %v1730 = vpop.f32.mrb[0].mxu0
        %v1731 = vadd.f32 0.0, %v1730
        %v1732 = vpop.f32.mrb[0].mxu0
        %v1733 = vadd.f32 0.0, %v1732
        %v1734 = vpop.f32.mrb[0].mxu0
        %v1735 = vadd.f32 0.0, %v1734
        %v1736 = vpop.f32.mrb[0].mxu0
        %v1737 = vadd.f32 0.0, %v1736
        %1738 = vmatprep.mubr.bf16.mxu0 0
        %1739 = vmatmul.mubr.bf16.gmra.mrb[0].mxu0 %v1475
        %v1740 = vpop.f32.mrb[0].mxu0
        %v1741 = vadd.f32 0.0, %v1740
        %v1742 = vpop.f32.mrb[0].mxu0
        %v1743 = vadd.f32 0.0, %v1742
        %v1744 = vpop.f32.mrb[0].mxu0
        %v1745 = vadd.f32 0.0, %v1744
        %v1746 = vpop.f32.mrb[0].mxu0
        %v1747 = vadd.f32 0.0, %v1746
        %1748 = vmatprep.mubr.bf16.mxu0 0
        %1749 = vmatmul.mubr.bf16.gmra.mrb[0].mxu0 %v1477
        %v1750 = vpop.f32.mrb[0].mxu0
        %v1751 = vadd.f32 0.0, %v1750
        %v1752 = vpop.f32.mrb[0].mxu0
        %v1753 = vadd.f32 0.0, %v1752
        %v1754 = vpop.f32.mrb[0].mxu0
        %v1755 = vadd.f32 0.0, %v1754
        %v1756 = vpop.f32.mrb[0].mxu0
        %v1757 = vadd.f32 0.0, %v1756
        %1758 = vmatprep.mubr.bf16.mxu0 0
        %1759 = vmatmul.mubr.bf16.gmra.mrb[0].mxu0 %v1479
        %v1760 = vpop.f32.mrb[0].mxu0
        %v1761 = vadd.f32 0.0, %v1760
        %v1762 = vpop.f32.mrb[0].mxu0
        %v1763 = vadd.f32 0.0, %v1762
        %v1764 = vpop.f32.mrb[0].mxu0
        %v1765 = vadd.f32 0.0, %v1764
        %v1766 = vpop.f32.mrb[0].mxu0
        %v1767 = vadd.f32 0.0, %v1766
        %1768 = vdwg.mxu0
        %v1769 = vadd.f32 %v1267, %v1611
        %v1770 = vadd.f32 %v1269, %v1613
        %v1771 = vadd.f32 %v1271, %v1615
        %v1772 = vadd.f32 %v1273, %v1617
        %v1773 = vadd.f32 %v1277, %v1621
        %v1774 = vadd.f32 %v1279, %v1623
        %v1775 = vadd.f32 %v1281, %v1625
        %v1776 = vadd.f32 %v1283, %v1627
        %v1777 = vadd.f32 %v1287, %v1631
        %v1778 = vadd.f32 %v1289, %v1633
        %v1779 = vadd.f32 %v1291, %v1635
        %v1780 = vadd.f32 %v1293, %v1637
        %v1781 = vadd.f32 %v1297, %v1641
        %v1782 = vadd.f32 %v1299, %v1643
        %v1783 = vadd.f32 %v1301, %v1645
        %v1784 = vadd.f32 %v1303, %v1647
        %v1785 = vadd.f32 %v1307, %v1651
        %v1786 = vadd.f32 %v1309, %v1653
        %v1787 = vadd.f32 %v1311, %v1655
        %v1788 = vadd.f32 %v1313, %v1657
        %v1789 = vadd.f32 %v1317, %v1661
        %v1790 = vadd.f32 %v1319, %v1663
        %v1791 = vadd.f32 %v1321, %v1665
        %v1792 = vadd.f32 %v1323, %v1667
        %v1793 = vadd.f32 %v1327, %v1671
        %v1794 = vadd.f32 %v1329, %v1673
        %v1795 = vadd.f32 %v1331, %v1675
        %v1796 = vadd.f32 %v1333, %v1677
        %v1797 = vadd.f32 %v1337, %v1681
        %v1798 = vadd.f32 %v1339, %v1683
        %v1799 = vadd.f32 %v1341, %v1685
        %v1800 = vadd.f32 %v1343, %v1687
        %v1801 = vadd.f32 %v1347, %v1691
        %v1802 = vadd.f32 %v1349, %v1693
        %v1803 = vadd.f32 %v1351, %v1695
        %v1804 = vadd.f32 %v1353, %v1697
        %v1805 = vadd.f32 %v1357, %v1701
        %v1806 = vadd.f32 %v1359, %v1703
        %v1807 = vadd.f32 %v1361, %v1705
        %v1808 = vadd.f32 %v1363, %v1707
        %v1809 = vadd.f32 %v1367, %v1711
        %v1810 = vadd.f32 %v1369, %v1713
        %v1811 = vadd.f32 %v1371, %v1715
        %v1812 = vadd.f32 %v1373, %v1717
        %v1813 = vadd.f32 %v1377, %v1721
        %v1814 = vadd.f32 %v1379, %v1723
        %v1815 = vadd.f32 %v1381, %v1725
        %v1816 = vadd.f32 %v1383, %v1727
        %v1817 = vadd.f32 %v1387, %v1731
        %v1818 = vadd.f32 %v1389, %v1733
        %v1819 = vadd.f32 %v1391, %v1735
        %v1820 = vadd.f32 %v1393, %v1737
        %v1821 = vadd.f32 %v1397, %v1741
        %v1822 = vadd.f32 %v1399, %v1743
        %v1823 = vadd.f32 %v1401, %v1745
        %v1824 = vadd.f32 %v1403, %v1747
        %v1825 = vadd.f32 %v1407, %v1751
        %v1826 = vadd.f32 %v1409, %v1753
        %v1827 = vadd.f32 %v1411, %v1755
        %v1828 = vadd.f32 %v1413, %v1757
        %v1829 = vadd.f32 %v1417, %v1761
        %v1830 = vadd.f32 %v1419, %v1763
        %v1831 = vadd.f32 %v1421, %v1765
        %v1832 = vadd.f32 %v1423, %v1767
        %v1833 = vld [vmem:[#allocation2 + $0x80] sm:$0x3]
        %s1834 = scalar_lea.vmem %s1, 384
        %v1835 = vld [vmem:[%s1834] sm:$0xff]
        %v1836 = vld [vmem:[%s1834 + $0x8] sm:$0xff]
        %v1837 = vld [vmem:[%s1834 + $0x10] sm:$0xff]
        %v1838 = vld [vmem:[%s1834 + $0x18] sm:$0xff]
        %v1839 = vld [vmem:[%s1834 + $0x20] sm:$0xff]
        %v1840 = vld [vmem:[%s1834 + $0x28] sm:$0xff]
        %v1841 = vld [vmem:[%s1834 + $0x30] sm:$0xff]
        %v1842 = vld [vmem:[%s1834 + $0x38] sm:$0xff]
        %v1843 = vld [vmem:[%s1834 + $0x40] sm:$0xff]
        %v1844 = vld [vmem:[%s1834 + $0x48] sm:$0xff]
        %v1845 = vld [vmem:[%s1834 + $0x50] sm:$0xff]
        %v1846 = vld [vmem:[%s1834 + $0x58] sm:$0xff]
        %v1847 = vld [vmem:[%s1834 + $0x60] sm:$0xff]
        %v1848 = vld [vmem:[%s1834 + $0x68] sm:$0xff]
        %v1849 = vld [vmem:[%s1834 + $0x70] sm:$0xff]
        %v1850 = vld [vmem:[%s1834 + $0x78] sm:$0xff]
        %v1852 = vunpack.c.l.b16 %v1833
        %v1853 = vpack.c.b16 %v1852, %v1852
        %vm1854 = vsmask.f32 6400
        %v1856 = vshrl.u32 %v1445, 16
        %v1858 = vrot.slane %v1856, 1
        %v1859 = vshll.u32 %v1445, 16
        %v1861 = vrot.slane %v1859, 2
        %v1862 = vor.u32 %v1858, %v1861
        %v1863 = vrot.slane %v647, 1
        %v1864 = vrot.slane %v643, 2
        %v1865 = vor.u32 %v1863, %v1864
        %v1866 = vsel %vm1854, %v1862, %v1865
        %v1867 = vrot.slane %v655, 1
        %v1868 = vrot.slane %v651, 2
        %v1869 = vor.u32 %v1867, %v1868
        %v1870 = vsel %vm1854, %v1865, %v1869
        %v1871 = vrot.slane %v663, 1
        %v1872 = vrot.slane %v659, 2
        %v1873 = vor.u32 %v1871, %v1872
        %v1874 = vsel %vm1854, %v1869, %v1873
        %v1875 = vrot.slane %v671, 1
        %v1876 = vrot.slane %v667, 2
        %v1877 = vor.u32 %v1875, %v1876
        %v1878 = vsel %vm1854, %v1873, %v1877
        %v1879 = vrot.slane %v679, 1
        %v1880 = vrot.slane %v675, 2
        %v1881 = vor.u32 %v1879, %v1880
        %v1882 = vsel %vm1854, %v1877, %v1881
        %v1883 = vrot.slane %v687, 1
        %v1884 = vrot.slane %v683, 2
        %v1885 = vor.u32 %v1883, %v1884
        %v1886 = vsel %vm1854, %v1881, %v1885
        %v1887 = vrot.slane %v695, 1
        %v1888 = vrot.slane %v691, 2
        %v1889 = vor.u32 %v1887, %v1888
        %v1890 = vsel %vm1854, %v1885, %v1889
        %v1891 = vrot.slane %v703, 1
        %v1892 = vrot.slane %v699, 2
        %v1893 = vor.u32 %v1891, %v1892
        %v1894 = vsel %vm1854, %v1889, %v1893
        %v1895 = vrot.slane %v711, 1
        %v1896 = vrot.slane %v707, 2
        %v1897 = vor.u32 %v1895, %v1896
        %v1898 = vsel %vm1854, %v1893, %v1897
        %v1899 = vrot.slane %v719, 1
        %v1900 = vrot.slane %v715, 2
        %v1901 = vor.u32 %v1899, %v1900
        %v1902 = vsel %vm1854, %v1897, %v1901
        %v1903 = vrot.slane %v727, 1
        %v1904 = vrot.slane %v723, 2
        %v1905 = vor.u32 %v1903, %v1904
        %v1906 = vsel %vm1854, %v1901, %v1905
        %v1907 = vrot.slane %v735, 1
        %v1908 = vrot.slane %v731, 2
        %v1909 = vor.u32 %v1907, %v1908
        %v1910 = vsel %vm1854, %v1905, %v1909
        %v1911 = vrot.slane %v743, 1
        %v1912 = vrot.slane %v739, 2
        %v1913 = vor.u32 %v1911, %v1912
        %v1914 = vsel %vm1854, %v1909, %v1913
        %v1915 = vrot.slane %v751, 1
        %v1916 = vrot.slane %v747, 2
        %v1917 = vor.u32 %v1915, %v1916
        %v1918 = vsel %vm1854, %v1913, %v1917
        %v1919 = vrot.slane %v759, 1
        %v1920 = vrot.slane %v755, 2
        %v1921 = vor.u32 %v1919, %v1920
        %v1922 = vsel %vm1854, %v1917, %v1921
        %v1924 = vshrl.u32 %v1853, 16
        %v1926 = vrot.slane %v1924, 1
        %v1927 = vshll.u32 %v1853, 16
        %v1929 = vrot.slane %v1927, 2
        %v1930 = vor.u32 %v1926, %v1929
        %v1931 = vsel %vm1854, %v1921, %v1930
        %v1964 = vunpack.c.l.b16 %v1835
        %v1965 = vunpack.c.h.b16 %v1835
        %v1966 = vunpack.c.l.b16 %v1836
        %v1967 = vunpack.c.h.b16 %v1836
        %v1968 = vunpack.c.l.b16 %v1837
        %v1969 = vunpack.c.h.b16 %v1837
        %v1970 = vunpack.c.l.b16 %v1838
        %v1971 = vunpack.c.h.b16 %v1838
        %v1972 = vunpack.c.l.b16 %v1839
        %v1973 = vunpack.c.h.b16 %v1839
        %v1974 = vunpack.c.l.b16 %v1840
        %v1975 = vunpack.c.h.b16 %v1840
        %v1976 = vunpack.c.l.b16 %v1841
        %v1977 = vunpack.c.h.b16 %v1841
        %v1978 = vunpack.c.l.b16 %v1842
        %v1979 = vunpack.c.h.b16 %v1842
        %v1980 = vunpack.c.l.b16 %v1843
        %v1981 = vunpack.c.h.b16 %v1843
        %v1982 = vunpack.c.l.b16 %v1844
        %v1983 = vunpack.c.h.b16 %v1844
        %v1984 = vunpack.c.l.b16 %v1845
        %v1985 = vunpack.c.h.b16 %v1845
        %v1986 = vunpack.c.l.b16 %v1846
        %v1987 = vunpack.c.h.b16 %v1846
        %v1988 = vunpack.c.l.b16 %v1847
        %v1989 = vunpack.c.h.b16 %v1847
        %v1990 = vunpack.c.l.b16 %v1848
        %v1991 = vunpack.c.h.b16 %v1848
        %v1992 = vunpack.c.l.b16 %v1849
        %v1993 = vunpack.c.h.b16 %v1849
        %v1994 = vunpack.c.l.b16 %v1850
        %v1995 = vunpack.c.h.b16 %v1850
        %v1996 = vpack.c.b16 %v1966, %v1964
        %v1997 = vpack.c.b16 %v1967, %v1965
        %v1998 = vpack.c.b16 %v1970, %v1968
        %v1999 = vpack.c.b16 %v1971, %v1969
        %v2000 = vpack.c.b16 %v1974, %v1972
        %v2001 = vpack.c.b16 %v1975, %v1973
        %v2002 = vpack.c.b16 %v1978, %v1976
        %v2003 = vpack.c.b16 %v1979, %v1977
        %v2004 = vpack.c.b16 %v1982, %v1980
        %v2005 = vpack.c.b16 %v1983, %v1981
        %v2006 = vpack.c.b16 %v1986, %v1984
        %v2007 = vpack.c.b16 %v1987, %v1985
        %v2008 = vpack.c.b16 %v1990, %v1988
        %v2009 = vpack.c.b16 %v1991, %v1989
        %v2010 = vpack.c.b16 %v1994, %v1992
        %v2011 = vpack.c.b16 %v1995, %v1993
        %2028 = vmatprep.subr.bf16.mxu0 %v1997
        %2029 = vmatpush1.bf16.msra.mxu0 %v1996
        %2030 = vmatprep.subr.bf16.mxu0 %v1999
        %2031 = vmatpush1.bf16.msra.mxu0 %v1998
        %2032 = vmatprep.subr.bf16.mxu0 %v2001
        %2033 = vmatpush1.bf16.msra.mxu0 %v2000
        %2034 = vmatprep.subr.bf16.mxu0 %v2003
        %2035 = vmatpush1.bf16.msra.mxu0 %v2002
        %2036 = vmatprep.subr.bf16.mxu0 %v2005
        %2037 = vmatpush1.bf16.msra.mxu0 %v2004
        %2038 = vmatprep.subr.bf16.mxu0 %v2007
        %2039 = vmatpush1.bf16.msra.mxu0 %v2006
        %2040 = vmatprep.subr.bf16.mxu0 %v2009
        %2041 = vmatpush1.bf16.msra.mxu0 %v2008
        %2042 = vmatprep.subr.bf16.mxu0 %v2011
        %2043 = vmatpush1.bf16.msra.mxu0 %v2010
        %2044 = vmatprep.subr.bf16.mxu0 0
        %2045 = vmatpush1.bf16.msra.mxu0 0
        %2046 = vmatprep.subr.bf16.mxu0 0
        %2047 = vmatpush1.bf16.msra.mxu0 0
        %2048 = vmatprep.subr.bf16.mxu0 0
        %2049 = vmatpush1.bf16.msra.mxu0 0
        %2050 = vmatprep.subr.bf16.mxu0 0
        %2051 = vmatpush1.bf16.msra.mxu0 0
        %2052 = vmatprep.subr.bf16.mxu0 0
        %2053 = vmatpush1.bf16.msra.mxu0 0
        %2054 = vmatprep.subr.bf16.mxu0 0
        %2055 = vmatpush1.bf16.msra.mxu0 0
        %2056 = vmatprep.subr.bf16.mxu0 0
        %2057 = vmatpush1.bf16.msra.mxu0 0
        %2058 = vmatprep.subr.bf16.mxu0 0
        %2059 = vmatpush1.bf16.msra.mxu0 0
        %2060 = vmatprep.mubr.bf16.mxu0 0
        %2061 = vmatmul.mubr.bf16.gmra.mrb[0].mxu0 %v1866
        %v2062 = vpop.f32.mrb[0].mxu0
        %v2063 = vadd.f32 0.0, %v2062
        %v2064 = vpop.f32.mrb[0].mxu0
        %v2065 = vadd.f32 0.0, %v2064
        %v2066 = vpop.f32.mrb[0].mxu0
        %v2067 = vadd.f32 0.0, %v2066
        %v2068 = vpop.f32.mrb[0].mxu0
        %v2069 = vadd.f32 0.0, %v2068
        %2070 = vmatprep.mubr.bf16.mxu0 0
        %2071 = vmatmul.mubr.bf16.gmra.mrb[0].mxu0 %v1870
        %v2072 = vpop.f32.mrb[0].mxu0
        %v2073 = vadd.f32 0.0, %v2072
        %v2074 = vpop.f32.mrb[0].mxu0
        %v2075 = vadd.f32 0.0, %v2074
        %v2076 = vpop.f32.mrb[0].mxu0
        %v2077 = vadd.f32 0.0, %v2076
        %v2078 = vpop.f32.mrb[0].mxu0
        %v2079 = vadd.f32 0.0, %v2078
        %2080 = vmatprep.mubr.bf16.mxu0 0
        %2081 = vmatmul.mubr.bf16.gmra.mrb[0].mxu0 %v1874
        %v2082 = vpop.f32.mrb[0].mxu0
        %v2083 = vadd.f32 0.0, %v2082
        %v2084 = vpop.f32.mrb[0].mxu0
        %v2085 = vadd.f32 0.0, %v2084
        %v2086 = vpop.f32.mrb[0].mxu0
        %v2087 = vadd.f32 0.0, %v2086
        %v2088 = vpop.f32.mrb[0].mxu0
        %v2089 = vadd.f32 0.0, %v2088
        %2090 = vmatprep.mubr.bf16.mxu0 0
        %2091 = vmatmul.mubr.bf16.gmra.mrb[0].mxu0 %v1878
        %v2092 = vpop.f32.mrb[0].mxu0
        %v2093 = vadd.f32 0.0, %v2092
        %v2094 = vpop.f32.mrb[0].mxu0
        %v2095 = vadd.f32 0.0, %v2094
        %v2096 = vpop.f32.mrb[0].mxu0
        %v2097 = vadd.f32 0.0, %v2096
        %v2098 = vpop.f32.mrb[0].mxu0
        %v2099 = vadd.f32 0.0, %v2098
        %2100 = vmatprep.mubr.bf16.mxu0 0
        %2101 = vmatmul.mubr.bf16.gmra.mrb[0].mxu0 %v1882
        %v2102 = vpop.f32.mrb[0].mxu0
        %v2103 = vadd.f32 0.0, %v2102
        %v2104 = vpop.f32.mrb[0].mxu0
        %v2105 = vadd.f32 0.0, %v2104
        %v2106 = vpop.f32.mrb[0].mxu0
        %v2107 = vadd.f32 0.0, %v2106
        %v2108 = vpop.f32.mrb[0].mxu0
        %v2109 = vadd.f32 0.0, %v2108
        %2110 = vmatprep.mubr.bf16.mxu0 0
        %2111 = vmatmul.mubr.bf16.gmra.mrb[0].mxu0 %v1886
        %v2112 = vpop.f32.mrb[0].mxu0
        %v2113 = vadd.f32 0.0, %v2112
        %v2114 = vpop.f32.mrb[0].mxu0
        %v2115 = vadd.f32 0.0, %v2114
        %v2116 = vpop.f32.mrb[0].mxu0
        %v2117 = vadd.f32 0.0, %v2116
        %v2118 = vpop.f32.mrb[0].mxu0
        %v2119 = vadd.f32 0.0, %v2118
        %2120 = vmatprep.mubr.bf16.mxu0 0
        %2121 = vmatmul.mubr.bf16.gmra.mrb[0].mxu0 %v1890
        %v2122 = vpop.f32.mrb[0].mxu0
        %v2123 = vadd.f32 0.0, %v2122
        %v2124 = vpop.f32.mrb[0].mxu0
        %v2125 = vadd.f32 0.0, %v2124
        %v2126 = vpop.f32.mrb[0].mxu0
        %v2127 = vadd.f32 0.0, %v2126
        %v2128 = vpop.f32.mrb[0].mxu0
        %v2129 = vadd.f32 0.0, %v2128
        %2130 = vmatprep.mubr.bf16.mxu0 0
        %2131 = vmatmul.mubr.bf16.gmra.mrb[0].mxu0 %v1894
        %v2132 = vpop.f32.mrb[0].mxu0
        %v2133 = vadd.f32 0.0, %v2132
        %v2134 = vpop.f32.mrb[0].mxu0
        %v2135 = vadd.f32 0.0, %v2134
        %v2136 = vpop.f32.mrb[0].mxu0
        %v2137 = vadd.f32 0.0, %v2136
        %v2138 = vpop.f32.mrb[0].mxu0
        %v2139 = vadd.f32 0.0, %v2138
        %2140 = vmatprep.mubr.bf16.mxu0 0
        %2141 = vmatmul.mubr.bf16.gmra.mrb[0].mxu0 %v1898
        %v2142 = vpop.f32.mrb[0].mxu0
        %v2143 = vadd.f32 0.0, %v2142
        %v2144 = vpop.f32.mrb[0].mxu0
        %v2145 = vadd.f32 0.0, %v2144
        %v2146 = vpop.f32.mrb[0].mxu0
        %v2147 = vadd.f32 0.0, %v2146
        %v2148 = vpop.f32.mrb[0].mxu0
        %v2149 = vadd.f32 0.0, %v2148
        %2150 = vmatprep.mubr.bf16.mxu0 0
        %2151 = vmatmul.mubr.bf16.gmra.mrb[0].mxu0 %v1902
        %v2152 = vpop.f32.mrb[0].mxu0
        %v2153 = vadd.f32 0.0, %v2152
        %v2154 = vpop.f32.mrb[0].mxu0
        %v2155 = vadd.f32 0.0, %v2154
        %v2156 = vpop.f32.mrb[0].mxu0
        %v2157 = vadd.f32 0.0, %v2156
        %v2158 = vpop.f32.mrb[0].mxu0
        %v2159 = vadd.f32 0.0, %v2158
        %2160 = vmatprep.mubr.bf16.mxu0 0
        %2161 = vmatmul.mubr.bf16.gmra.mrb[0].mxu0 %v1906
        %v2162 = vpop.f32.mrb[0].mxu0
        %v2163 = vadd.f32 0.0, %v2162
        %v2164 = vpop.f32.mrb[0].mxu0
        %v2165 = vadd.f32 0.0, %v2164
        %v2166 = vpop.f32.mrb[0].mxu0
        %v2167 = vadd.f32 0.0, %v2166
        %v2168 = vpop.f32.mrb[0].mxu0
        %v2169 = vadd.f32 0.0, %v2168
        %2170 = vmatprep.mubr.bf16.mxu0 0
        %2171 = vmatmul.mubr.bf16.gmra.mrb[0].mxu0 %v1910
        %v2172 = vpop.f32.mrb[0].mxu0
        %v2173 = vadd.f32 0.0, %v2172
        %v2174 = vpop.f32.mrb[0].mxu0
        %v2175 = vadd.f32 0.0, %v2174
        %v2176 = vpop.f32.mrb[0].mxu0
        %v2177 = vadd.f32 0.0, %v2176
        %v2178 = vpop.f32.mrb[0].mxu0
        %v2179 = vadd.f32 0.0, %v2178
        %2180 = vmatprep.mubr.bf16.mxu0 0
        %2181 = vmatmul.mubr.bf16.gmra.mrb[0].mxu0 %v1914
        %v2182 = vpop.f32.mrb[0].mxu0
        %v2183 = vadd.f32 0.0, %v2182
        %v2184 = vpop.f32.mrb[0].mxu0
        %v2185 = vadd.f32 0.0, %v2184
        %v2186 = vpop.f32.mrb[0].mxu0
        %v2187 = vadd.f32 0.0, %v2186
        %v2188 = vpop.f32.mrb[0].mxu0
        %v2189 = vadd.f32 0.0, %v2188
        %2190 = vmatprep.mubr.bf16.mxu0 0
        %2191 = vmatmul.mubr.bf16.gmra.mrb[0].mxu0 %v1918
        %v2192 = vpop.f32.mrb[0].mxu0
        %v2193 = vadd.f32 0.0, %v2192
        %v2194 = vpop.f32.mrb[0].mxu0
        %v2195 = vadd.f32 0.0, %v2194
        %v2196 = vpop.f32.mrb[0].mxu0
        %v2197 = vadd.f32 0.0, %v2196
        %v2198 = vpop.f32.mrb[0].mxu0
        %v2199 = vadd.f32 0.0, %v2198
        %2200 = vmatprep.mubr.bf16.mxu0 0
        %2201 = vmatmul.mubr.bf16.gmra.mrb[0].mxu0 %v1922
        %v2202 = vpop.f32.mrb[0].mxu0
        %v2203 = vadd.f32 0.0, %v2202
        %v2204 = vpop.f32.mrb[0].mxu0
        %v2205 = vadd.f32 0.0, %v2204
        %v2206 = vpop.f32.mrb[0].mxu0
        %v2207 = vadd.f32 0.0, %v2206
        %v2208 = vpop.f32.mrb[0].mxu0
        %v2209 = vadd.f32 0.0, %v2208
        %2210 = vmatprep.mubr.bf16.mxu0 0
        %2211 = vmatmul.mubr.bf16.gmra.mrb[0].mxu0 %v1931
        %v2212 = vpop.f32.mrb[0].mxu0
        %v2213 = vadd.f32 0.0, %v2212
        %v2214 = vpop.f32.mrb[0].mxu0
        %v2215 = vadd.f32 0.0, %v2214
        %v2216 = vpop.f32.mrb[0].mxu0
        %v2217 = vadd.f32 0.0, %v2216
        %v2218 = vpop.f32.mrb[0].mxu0
        %v2219 = vadd.f32 0.0, %v2218
        %2220 = vdwg.mxu0
        %v2221 = vadd.f32 %v1769, %v2063
        %v2222 = vadd.f32 %v1770, %v2065
        %v2223 = vadd.f32 %v1771, %v2067
        %v2224 = vadd.f32 %v1772, %v2069
        %v2225 = vadd.f32 %v1773, %v2073
        %v2226 = vadd.f32 %v1774, %v2075
        %v2227 = vadd.f32 %v1775, %v2077
        %v2228 = vadd.f32 %v1776, %v2079
        %v2229 = vadd.f32 %v1777, %v2083
        %v2230 = vadd.f32 %v1778, %v2085
        %v2231 = vadd.f32 %v1779, %v2087
        %v2232 = vadd.f32 %v1780, %v2089
        %v2233 = vadd.f32 %v1781, %v2093
        %v2234 = vadd.f32 %v1782, %v2095
        %v2235 = vadd.f32 %v1783, %v2097
        %v2236 = vadd.f32 %v1784, %v2099
        %v2237 = vadd.f32 %v1785, %v2103
        %v2238 = vadd.f32 %v1786, %v2105
        %v2239 = vadd.f32 %v1787, %v2107
        %v2240 = vadd.f32 %v1788, %v2109
        %v2241 = vadd.f32 %v1789, %v2113
        %v2242 = vadd.f32 %v1790, %v2115
        %v2243 = vadd.f32 %v1791, %v2117
        %v2244 = vadd.f32 %v1792, %v2119
        %v2245 = vadd.f32 %v1793, %v2123
        %v2246 = vadd.f32 %v1794, %v2125
        %v2247 = vadd.f32 %v1795, %v2127
        %v2248 = vadd.f32 %v1796, %v2129
        %v2249 = vadd.f32 %v1797, %v2133
        %v2250 = vadd.f32 %v1798, %v2135
        %v2251 = vadd.f32 %v1799, %v2137
        %v2252 = vadd.f32 %v1800, %v2139
        %v2253 = vadd.f32 %v1801, %v2143
        %v2254 = vadd.f32 %v1802, %v2145
        %v2255 = vadd.f32 %v1803, %v2147
        %v2256 = vadd.f32 %v1804, %v2149
        %v2257 = vadd.f32 %v1805, %v2153
        %v2258 = vadd.f32 %v1806, %v2155
        %v2259 = vadd.f32 %v1807, %v2157
        %v2260 = vadd.f32 %v1808, %v2159
        %v2261 = vadd.f32 %v1809, %v2163
        %v2262 = vadd.f32 %v1810, %v2165
        %v2263 = vadd.f32 %v1811, %v2167
        %v2264 = vadd.f32 %v1812, %v2169
        %v2265 = vadd.f32 %v1813, %v2173
        %v2266 = vadd.f32 %v1814, %v2175
        %v2267 = vadd.f32 %v1815, %v2177
        %v2268 = vadd.f32 %v1816, %v2179
        %v2269 = vadd.f32 %v1817, %v2183
        %v2270 = vadd.f32 %v1818, %v2185
        %v2271 = vadd.f32 %v1819, %v2187
        %v2272 = vadd.f32 %v1820, %v2189
        %v2273 = vadd.f32 %v1821, %v2193
        %v2274 = vadd.f32 %v1822, %v2195
        %v2275 = vadd.f32 %v1823, %v2197
        %v2276 = vadd.f32 %v1824, %v2199
        %v2277 = vadd.f32 %v1825, %v2203
        %v2278 = vadd.f32 %v1826, %v2205
        %v2279 = vadd.f32 %v1827, %v2207
        %v2280 = vadd.f32 %v1828, %v2209
        %v2281 = vadd.f32 %v1829, %v2213
        %v2282 = vadd.f32 %v1830, %v2215
        %v2283 = vadd.f32 %v1831, %v2217
        %v2284 = vadd.f32 %v1832, %v2219
        %v2285 = vld [vmem:[#allocation2] sm:$0xc]
        %s2286 = scalar_lea.vmem %s1, 512
        %v2287 = vld [vmem:[%s2286] sm:$0xff]
        %v2288 = vld [vmem:[%s2286 + $0x8] sm:$0xff]
        %v2289 = vld [vmem:[%s2286 + $0x10] sm:$0xff]
        %v2290 = vld [vmem:[%s2286 + $0x18] sm:$0xff]
        %v2291 = vld [vmem:[%s2286 + $0x20] sm:$0xff]
        %v2292 = vld [vmem:[%s2286 + $0x28] sm:$0xff]
        %v2293 = vld [vmem:[%s2286 + $0x30] sm:$0xff]
        %v2294 = vld [vmem:[%s2286 + $0x38] sm:$0xff]
        %v2295 = vld [vmem:[%s2286 + $0x40] sm:$0xff]
        %v2296 = vld [vmem:[%s2286 + $0x48] sm:$0xff]
        %v2297 = vld [vmem:[%s2286 + $0x50] sm:$0xff]
        %v2298 = vld [vmem:[%s2286 + $0x58] sm:$0xff]
        %v2299 = vld [vmem:[%s2286 + $0x60] sm:$0xff]
        %v2300 = vld [vmem:[%s2286 + $0x68] sm:$0xff]
        %v2301 = vld [vmem:[%s2286 + $0x70] sm:$0xff]
        %v2302 = vld [vmem:[%s2286 + $0x78] sm:$0xff]
        %v2304 = vunpack.c.l.b16 %v2285
        %v2305 = vpack.c.b16 %v585, %v2304
        %vm2306 = vcmask 1045504
        %v2307 = vrot.slane %v2305, 2
        %v2308 = vrot.slane %v618, 2
        %v2309 = vsel %vm2306, %v2307, %v2308
        %v2310 = vrot.slane %v619, 2
        %v2311 = vsel %vm2306, %v2308, %v2310
        %v2312 = vrot.slane %v620, 2
        %v2313 = vsel %vm2306, %v2310, %v2312
        %v2314 = vrot.slane %v621, 2
        %v2315 = vsel %vm2306, %v2312, %v2314
        %v2316 = vrot.slane %v622, 2
        %v2317 = vsel %vm2306, %v2314, %v2316
        %v2318 = vrot.slane %v623, 2
        %v2319 = vsel %vm2306, %v2316, %v2318
        %v2320 = vrot.slane %v624, 2
        %v2321 = vsel %vm2306, %v2318, %v2320
        %v2322 = vrot.slane %v625, 2
        %v2323 = vsel %vm2306, %v2320, %v2322
        %v2324 = vrot.slane %v626, 2
        %v2325 = vsel %vm2306, %v2322, %v2324
        %v2326 = vrot.slane %v627, 2
        %v2327 = vsel %vm2306, %v2324, %v2326
        %v2328 = vrot.slane %v628, 2
        %v2329 = vsel %vm2306, %v2326, %v2328
        %v2330 = vrot.slane %v629, 2
        %v2331 = vsel %vm2306, %v2328, %v2330
        %v2332 = vrot.slane %v630, 2
        %v2333 = vsel %vm2306, %v2330, %v2332
        %v2334 = vrot.slane %v631, 2
        %v2335 = vsel %vm2306, %v2332, %v2334
        %v2336 = vrot.slane %v632, 2
        %v2337 = vsel %vm2306, %v2334, %v2336
        %v2338 = vrot.slane %v1853, 2
        %v2339 = vsel %vm2306, %v2336, %v2338
        %v2372 = vunpack.c.l.b16 %v2287
        %v2373 = vunpack.c.h.b16 %v2287
        %v2374 = vunpack.c.l.b16 %v2288
        %v2375 = vunpack.c.h.b16 %v2288
        %v2376 = vunpack.c.l.b16 %v2289
        %v2377 = vunpack.c.h.b16 %v2289
        %v2378 = vunpack.c.l.b16 %v2290
        %v2379 = vunpack.c.h.b16 %v2290
        %v2380 = vunpack.c.l.b16 %v2291
        %v2381 = vunpack.c.h.b16 %v2291
        %v2382 = vunpack.c.l.b16 %v2292
        %v2383 = vunpack.c.h.b16 %v2292
        %v2384 = vunpack.c.l.b16 %v2293
        %v2385 = vunpack.c.h.b16 %v2293
        %v2386 = vunpack.c.l.b16 %v2294
        %v2387 = vunpack.c.h.b16 %v2294
        %v2388 = vunpack.c.l.b16 %v2295
        %v2389 = vunpack.c.h.b16 %v2295
        %v2390 = vunpack.c.l.b16 %v2296
        %v2391 = vunpack.c.h.b16 %v2296
        %v2392 = vunpack.c.l.b16 %v2297
        %v2393 = vunpack.c.h.b16 %v2297
        %v2394 = vunpack.c.l.b16 %v2298
        %v2395 = vunpack.c.h.b16 %v2298
        %v2396 = vunpack.c.l.b16 %v2299
        %v2397 = vunpack.c.h.b16 %v2299
        %v2398 = vunpack.c.l.b16 %v2300
        %v2399 = vunpack.c.h.b16 %v2300
        %v2400 = vunpack.c.l.b16 %v2301
        %v2401 = vunpack.c.h.b16 %v2301
        %v2402 = vunpack.c.l.b16 %v2302
        %v2403 = vunpack.c.h.b16 %v2302
        %v2404 = vpack.c.b16 %v2374, %v2372
        %v2405 = vpack.c.b16 %v2375, %v2373
        %v2406 = vpack.c.b16 %v2378, %v2376
        %v2407 = vpack.c.b16 %v2379, %v2377
        %v2408 = vpack.c.b16 %v2382, %v2380
        %v2409 = vpack.c.b16 %v2383, %v2381
        %v2410 = vpack.c.b16 %v2386, %v2384
        %v2411 = vpack.c.b16 %v2387, %v2385
        %v2412 = vpack.c.b16 %v2390, %v2388
        %v2413 = vpack.c.b16 %v2391, %v2389
        %v2414 = vpack.c.b16 %v2394, %v2392
        %v2415 = vpack.c.b16 %v2395, %v2393
        %v2416 = vpack.c.b16 %v2398, %v2396
        %v2417 = vpack.c.b16 %v2399, %v2397
        %v2418 = vpack.c.b16 %v2402, %v2400
        %v2419 = vpack.c.b16 %v2403, %v2401
        %2436 = vmatprep.subr.bf16.mxu0 %v2405
        %2437 = vmatpush1.bf16.msra.mxu0 %v2404
        %2438 = vmatprep.subr.bf16.mxu0 %v2407
        %2439 = vmatpush1.bf16.msra.mxu0 %v2406
        %2440 = vmatprep.subr.bf16.mxu0 %v2409
        %2441 = vmatpush1.bf16.msra.mxu0 %v2408
        %2442 = vmatprep.subr.bf16.mxu0 %v2411
        %2443 = vmatpush1.bf16.msra.mxu0 %v2410
        %2444 = vmatprep.subr.bf16.mxu0 %v2413
        %2445 = vmatpush1.bf16.msra.mxu0 %v2412
        %2446 = vmatprep.subr.bf16.mxu0 %v2415
        %2447 = vmatpush1.bf16.msra.mxu0 %v2414
        %2448 = vmatprep.subr.bf16.mxu0 %v2417
        %2449 = vmatpush1.bf16.msra.mxu0 %v2416
        %2450 = vmatprep.subr.bf16.mxu0 %v2419
        %2451 = vmatpush1.bf16.msra.mxu0 %v2418
        %2452 = vmatprep.subr.bf16.mxu0 0
        %2453 = vmatpush1.bf16.msra.mxu0 0
        %2454 = vmatprep.subr.bf16.mxu0 0
        %2455 = vmatpush1.bf16.msra.mxu0 0
        %2456 = vmatprep.subr.bf16.mxu0 0
        %2457 = vmatpush1.bf16.msra.mxu0 0
        %2458 = vmatprep.subr.bf16.mxu0 0
        %2459 = vmatpush1.bf16.msra.mxu0 0
        %2460 = vmatprep.subr.bf16.mxu0 0
        %2461 = vmatpush1.bf16.msra.mxu0 0
        %2462 = vmatprep.subr.bf16.mxu0 0
        %2463 = vmatpush1.bf16.msra.mxu0 0
        %2464 = vmatprep.subr.bf16.mxu0 0
        %2465 = vmatpush1.bf16.msra.mxu0 0
        %2466 = vmatprep.subr.bf16.mxu0 0
        %2467 = vmatpush1.bf16.msra.mxu0 0
        %2468 = vmatprep.mubr.bf16.mxu0 0
        %2469 = vmatmul.mubr.bf16.gmra.mrb[0].mxu0 %v2309
        %v2470 = vpop.f32.mrb[0].mxu0
        %v2471 = vadd.f32 0.0, %v2470
        %v2472 = vpop.f32.mrb[0].mxu0
        %v2473 = vadd.f32 0.0, %v2472
        %v2474 = vpop.f32.mrb[0].mxu0
        %v2475 = vadd.f32 0.0, %v2474
        %v2476 = vpop.f32.mrb[0].mxu0
        %v2477 = vadd.f32 0.0, %v2476
        %2478 = vmatprep.mubr.bf16.mxu0 0
        %2479 = vmatmul.mubr.bf16.gmra.mrb[0].mxu0 %v2311
        %v2480 = vpop.f32.mrb[0].mxu0
        %v2481 = vadd.f32 0.0, %v2480
        %v2482 = vpop.f32.mrb[0].mxu0
        %v2483 = vadd.f32 0.0, %v2482
        %v2484 = vpop.f32.mrb[0].mxu0
        %v2485 = vadd.f32 0.0, %v2484
        %v2486 = vpop.f32.mrb[0].mxu0
        %v2487 = vadd.f32 0.0, %v2486
        %2488 = vmatprep.mubr.bf16.mxu0 0
        %2489 = vmatmul.mubr.bf16.gmra.mrb[0].mxu0 %v2313
        %v2490 = vpop.f32.mrb[0].mxu0
        %v2491 = vadd.f32 0.0, %v2490
        %v2492 = vpop.f32.mrb[0].mxu0
        %v2493 = vadd.f32 0.0, %v2492
        %v2494 = vpop.f32.mrb[0].mxu0
        %v2495 = vadd.f32 0.0, %v2494
        %v2496 = vpop.f32.mrb[0].mxu0
        %v2497 = vadd.f32 0.0, %v2496
        %2498 = vmatprep.mubr.bf16.mxu0 0
        %2499 = vmatmul.mubr.bf16.gmra.mrb[0].mxu0 %v2315
        %v2500 = vpop.f32.mrb[0].mxu0
        %v2501 = vadd.f32 0.0, %v2500
        %v2502 = vpop.f32.mrb[0].mxu0
        %v2503 = vadd.f32 0.0, %v2502
        %v2504 = vpop.f32.mrb[0].mxu0
        %v2505 = vadd.f32 0.0, %v2504
        %v2506 = vpop.f32.mrb[0].mxu0
        %v2507 = vadd.f32 0.0, %v2506
        %2508 = vmatprep.mubr.bf16.mxu0 0
        %2509 = vmatmul.mubr.bf16.gmra.mrb[0].mxu0 %v2317
        %v2510 = vpop.f32.mrb[0].mxu0
        %v2511 = vadd.f32 0.0, %v2510
        %v2512 = vpop.f32.mrb[0].mxu0
        %v2513 = vadd.f32 0.0, %v2512
        %v2514 = vpop.f32.mrb[0].mxu0
        %v2515 = vadd.f32 0.0, %v2514
        %v2516 = vpop.f32.mrb[0].mxu0
        %v2517 = vadd.f32 0.0, %v2516
        %2518 = vmatprep.mubr.bf16.mxu0 0
        %2519 = vmatmul.mubr.bf16.gmra.mrb[0].mxu0 %v2319
        %v2520 = vpop.f32.mrb[0].mxu0
        %v2521 = vadd.f32 0.0, %v2520
        %v2522 = vpop.f32.mrb[0].mxu0
        %v2523 = vadd.f32 0.0, %v2522
        %v2524 = vpop.f32.mrb[0].mxu0
        %v2525 = vadd.f32 0.0, %v2524
        %v2526 = vpop.f32.mrb[0].mxu0
        %v2527 = vadd.f32 0.0, %v2526
        %2528 = vmatprep.mubr.bf16.mxu0 0
        %2529 = vmatmul.mubr.bf16.gmra.mrb[0].mxu0 %v2321
        %v2530 = vpop.f32.mrb[0].mxu0
        %v2531 = vadd.f32 0.0, %v2530
        %v2532 = vpop.f32.mrb[0].mxu0
        %v2533 = vadd.f32 0.0, %v2532
        %v2534 = vpop.f32.mrb[0].mxu0
        %v2535 = vadd.f32 0.0, %v2534
        %v2536 = vpop.f32.mrb[0].mxu0
        %v2537 = vadd.f32 0.0, %v2536
        %2538 = vmatprep.mubr.bf16.mxu0 0
        %2539 = vmatmul.mubr.bf16.gmra.mrb[0].mxu0 %v2323
        %v2540 = vpop.f32.mrb[0].mxu0
        %v2541 = vadd.f32 0.0, %v2540
        %v2542 = vpop.f32.mrb[0].mxu0
        %v2543 = vadd.f32 0.0, %v2542
        %v2544 = vpop.f32.mrb[0].mxu0
        %v2545 = vadd.f32 0.0, %v2544
        %v2546 = vpop.f32.mrb[0].mxu0
        %v2547 = vadd.f32 0.0, %v2546
        %2548 = vmatprep.mubr.bf16.mxu0 0
        %2549 = vmatmul.mubr.bf16.gmra.mrb[0].mxu0 %v2325
        %v2550 = vpop.f32.mrb[0].mxu0
        %v2551 = vadd.f32 0.0, %v2550
        %v2552 = vpop.f32.mrb[0].mxu0
        %v2553 = vadd.f32 0.0, %v2552
        %v2554 = vpop.f32.mrb[0].mxu0
        %v2555 = vadd.f32 0.0, %v2554
        %v2556 = vpop.f32.mrb[0].mxu0
        %v2557 = vadd.f32 0.0, %v2556
        %2558 = vmatprep.mubr.bf16.mxu0 0
        %2559 = vmatmul.mubr.bf16.gmra.mrb[0].mxu0 %v2327
        %v2560 = vpop.f32.mrb[0].mxu0
        %v2561 = vadd.f32 0.0, %v2560
        %v2562 = vpop.f32.mrb[0].mxu0
        %v2563 = vadd.f32 0.0, %v2562
        %v2564 = vpop.f32.mrb[0].mxu0
        %v2565 = vadd.f32 0.0, %v2564
        %v2566 = vpop.f32.mrb[0].mxu0
        %v2567 = vadd.f32 0.0, %v2566
        %2568 = vmatprep.mubr.bf16.mxu0 0
        %2569 = vmatmul.mubr.bf16.gmra.mrb[0].mxu0 %v2329
        %v2570 = vpop.f32.mrb[0].mxu0
        %v2571 = vadd.f32 0.0, %v2570
        %v2572 = vpop.f32.mrb[0].mxu0
        %v2573 = vadd.f32 0.0, %v2572
        %v2574 = vpop.f32.mrb[0].mxu0
        %v2575 = vadd.f32 0.0, %v2574
        %v2576 = vpop.f32.mrb[0].mxu0
        %v2577 = vadd.f32 0.0, %v2576
        %2578 = vmatprep.mubr.bf16.mxu0 0
        %2579 = vmatmul.mubr.bf16.gmra.mrb[0].mxu0 %v2331
        %v2580 = vpop.f32.mrb[0].mxu0
        %v2581 = vadd.f32 0.0, %v2580
        %v2582 = vpop.f32.mrb[0].mxu0
        %v2583 = vadd.f32 0.0, %v2582
        %v2584 = vpop.f32.mrb[0].mxu0
        %v2585 = vadd.f32 0.0, %v2584
        %v2586 = vpop.f32.mrb[0].mxu0
        %v2587 = vadd.f32 0.0, %v2586
        %2588 = vmatprep.mubr.bf16.mxu0 0
        %2589 = vmatmul.mubr.bf16.gmra.mrb[0].mxu0 %v2333
        %v2590 = vpop.f32.mrb[0].mxu0
        %v2591 = vadd.f32 0.0, %v2590
        %v2592 = vpop.f32.mrb[0].mxu0
        %v2593 = vadd.f32 0.0, %v2592
        %v2594 = vpop.f32.mrb[0].mxu0
        %v2595 = vadd.f32 0.0, %v2594
        %v2596 = vpop.f32.mrb[0].mxu0
        %v2597 = vadd.f32 0.0, %v2596
        %2598 = vmatprep.mubr.bf16.mxu0 0
        %2599 = vmatmul.mubr.bf16.gmra.mrb[0].mxu0 %v2335
        %v2600 = vpop.f32.mrb[0].mxu0
        %v2601 = vadd.f32 0.0, %v2600
        %v2602 = vpop.f32.mrb[0].mxu0
        %v2603 = vadd.f32 0.0, %v2602
        %v2604 = vpop.f32.mrb[0].mxu0
        %v2605 = vadd.f32 0.0, %v2604
        %v2606 = vpop.f32.mrb[0].mxu0
        %v2607 = vadd.f32 0.0, %v2606
        %2608 = vmatprep.mubr.bf16.mxu0 0
        %2609 = vmatmul.mubr.bf16.gmra.mrb[0].mxu0 %v2337
        %v2610 = vpop.f32.mrb[0].mxu0
        %v2611 = vadd.f32 0.0, %v2610
        %v2612 = vpop.f32.mrb[0].mxu0
        %v2613 = vadd.f32 0.0, %v2612
        %v2614 = vpop.f32.mrb[0].mxu0
        %v2615 = vadd.f32 0.0, %v2614
        %v2616 = vpop.f32.mrb[0].mxu0
        %v2617 = vadd.f32 0.0, %v2616
        %2618 = vmatprep.mubr.bf16.mxu0 0
        %2619 = vmatmul.mubr.bf16.gmra.mrb[0].mxu0 %v2339
        %v2620 = vpop.f32.mrb[0].mxu0
        %v2621 = vadd.f32 0.0, %v2620
        %v2622 = vpop.f32.mrb[0].mxu0
        %v2623 = vadd.f32 0.0, %v2622
        %v2624 = vpop.f32.mrb[0].mxu0
        %v2625 = vadd.f32 0.0, %v2624
        %v2626 = vpop.f32.mrb[0].mxu0
        %v2627 = vadd.f32 0.0, %v2626
        %2628 = vdwg.mxu0
        %v2629 = vadd.f32 %v2221, %v2471
        %v2630 = vadd.f32 %v2222, %v2473
        %v2631 = vadd.f32 %v2223, %v2475
        %v2632 = vadd.f32 %v2224, %v2477
        %v2633 = vadd.f32 %v2225, %v2481
        %v2634 = vadd.f32 %v2226, %v2483
        %v2635 = vadd.f32 %v2227, %v2485
        %v2636 = vadd.f32 %v2228, %v2487
        %v2637 = vadd.f32 %v2229, %v2491
        %v2638 = vadd.f32 %v2230, %v2493
        %v2639 = vadd.f32 %v2231, %v2495
        %v2640 = vadd.f32 %v2232, %v2497
        %v2641 = vadd.f32 %v2233, %v2501
        %v2642 = vadd.f32 %v2234, %v2503
        %v2643 = vadd.f32 %v2235, %v2505
        %v2644 = vadd.f32 %v2236, %v2507
        %v2645 = vadd.f32 %v2237, %v2511
        %v2646 = vadd.f32 %v2238, %v2513
        %v2647 = vadd.f32 %v2239, %v2515
        %v2648 = vadd.f32 %v2240, %v2517
        %v2649 = vadd.f32 %v2241, %v2521
        %v2650 = vadd.f32 %v2242, %v2523
        %v2651 = vadd.f32 %v2243, %v2525
        %v2652 = vadd.f32 %v2244, %v2527
        %v2653 = vadd.f32 %v2245, %v2531
        %v2654 = vadd.f32 %v2246, %v2533
        %v2655 = vadd.f32 %v2247, %v2535
        %v2656 = vadd.f32 %v2248, %v2537
        %v2657 = vadd.f32 %v2249, %v2541
        %v2658 = vadd.f32 %v2250, %v2543
        %v2659 = vadd.f32 %v2251, %v2545
        %v2660 = vadd.f32 %v2252, %v2547
        %v2661 = vadd.f32 %v2253, %v2551
        %v2662 = vadd.f32 %v2254, %v2553
        %v2663 = vadd.f32 %v2255, %v2555
        %v2664 = vadd.f32 %v2256, %v2557
        %v2665 = vadd.f32 %v2257, %v2561
        %v2666 = vadd.f32 %v2258, %v2563
        %v2667 = vadd.f32 %v2259, %v2565
        %v2668 = vadd.f32 %v2260, %v2567
        %v2669 = vadd.f32 %v2261, %v2571
        %v2670 = vadd.f32 %v2262, %v2573
        %v2671 = vadd.f32 %v2263, %v2575
        %v2672 = vadd.f32 %v2264, %v2577
        %v2673 = vadd.f32 %v2265, %v2581
        %v2674 = vadd.f32 %v2266, %v2583
        %v2675 = vadd.f32 %v2267, %v2585
        %v2676 = vadd.f32 %v2268, %v2587
        %v2677 = vadd.f32 %v2269, %v2591
        %v2678 = vadd.f32 %v2270, %v2593
        %v2679 = vadd.f32 %v2271, %v2595
        %v2680 = vadd.f32 %v2272, %v2597
        %v2681 = vadd.f32 %v2273, %v2601
        %v2682 = vadd.f32 %v2274, %v2603
        %v2683 = vadd.f32 %v2275, %v2605
        %v2684 = vadd.f32 %v2276, %v2607
        %v2685 = vadd.f32 %v2277, %v2611
        %v2686 = vadd.f32 %v2278, %v2613
        %v2687 = vadd.f32 %v2279, %v2615
        %v2688 = vadd.f32 %v2280, %v2617
        %v2689 = vadd.f32 %v2281, %v2621
        %v2690 = vadd.f32 %v2282, %v2623
        %v2691 = vadd.f32 %v2283, %v2625
        %v2692 = vadd.f32 %v2284, %v2627
        %2757 = vrot.lane.b32.xlu0 %v2629, 44
        %v2758 = vpop.permute.xlu0 %2757
        %2759 = vrot.lane.b32.xlu0 %v2630, 44
        %v2760 = vpop.permute.xlu0 %2759
        %2761 = vrot.lane.b32.xlu0 %v2631, 44
        %v2762 = vpop.permute.xlu0 %2761
        %2763 = vrot.lane.b32.xlu0 %v2632, 44
        %v2764 = vpop.permute.xlu0 %2763
        %2765 = vrot.lane.b32.xlu0 %v2633, 44
        %v2766 = vpop.permute.xlu0 %2765
        %2767 = vrot.lane.b32.xlu0 %v2634, 44
        %v2768 = vpop.permute.xlu0 %2767
        %2769 = vrot.lane.b32.xlu0 %v2635, 44
        %v2770 = vpop.permute.xlu0 %2769
        %2771 = vrot.lane.b32.xlu0 %v2636, 44
        %v2772 = vpop.permute.xlu0 %2771
        %2773 = vrot.lane.b32.xlu0 %v2637, 44
        %v2774 = vpop.permute.xlu0 %2773
        %2775 = vrot.lane.b32.xlu0 %v2638, 44
        %v2776 = vpop.permute.xlu0 %2775
        %2777 = vrot.lane.b32.xlu0 %v2639, 44
        %v2778 = vpop.permute.xlu0 %2777
        %2779 = vrot.lane.b32.xlu0 %v2640, 44
        %v2780 = vpop.permute.xlu0 %2779
        %2781 = vrot.lane.b32.xlu0 %v2641, 44
        %v2782 = vpop.permute.xlu0 %2781
        %2783 = vrot.lane.b32.xlu0 %v2642, 44
        %v2784 = vpop.permute.xlu0 %2783
        %2785 = vrot.lane.b32.xlu0 %v2643, 44
        %v2786 = vpop.permute.xlu0 %2785
        %2787 = vrot.lane.b32.xlu0 %v2644, 44
        %v2788 = vpop.permute.xlu0 %2787
        %2789 = vrot.lane.b32.xlu0 %v2645, 44
        %v2790 = vpop.permute.xlu0 %2789
        %2791 = vrot.lane.b32.xlu0 %v2646, 44
        %v2792 = vpop.permute.xlu0 %2791
        %2793 = vrot.lane.b32.xlu0 %v2647, 44
        %v2794 = vpop.permute.xlu0 %2793
        %2795 = vrot.lane.b32.xlu0 %v2648, 44
        %v2796 = vpop.permute.xlu0 %2795
        %2797 = vrot.lane.b32.xlu0 %v2649, 44
        %v2798 = vpop.permute.xlu0 %2797
        %2799 = vrot.lane.b32.xlu0 %v2650, 44
        %v2800 = vpop.permute.xlu0 %2799
        %2801 = vrot.lane.b32.xlu0 %v2651, 44
        %v2802 = vpop.permute.xlu0 %2801
        %2803 = vrot.lane.b32.xlu0 %v2652, 44
        %v2804 = vpop.permute.xlu0 %2803
        %2805 = vrot.lane.b32.xlu0 %v2653, 44
        %v2806 = vpop.permute.xlu0 %2805
        %2807 = vrot.lane.b32.xlu0 %v2654, 44
        %v2808 = vpop.permute.xlu0 %2807
        %2809 = vrot.lane.b32.xlu0 %v2655, 44
        %v2810 = vpop.permute.xlu0 %2809
        %2811 = vrot.lane.b32.xlu0 %v2656, 44
        %v2812 = vpop.permute.xlu0 %2811
        %2813 = vrot.lane.b32.xlu0 %v2657, 44
        %v2814 = vpop.permute.xlu0 %2813
        %2815 = vrot.lane.b32.xlu0 %v2658, 44
        %v2816 = vpop.permute.xlu0 %2815
        %2817 = vrot.lane.b32.xlu0 %v2659, 44
        %v2818 = vpop.permute.xlu0 %2817
        %2819 = vrot.lane.b32.xlu0 %v2660, 44
        %v2820 = vpop.permute.xlu0 %2819
        %2821 = vrot.lane.b32.xlu0 %v2661, 44
        %v2822 = vpop.permute.xlu0 %2821
        %2823 = vrot.lane.b32.xlu0 %v2662, 44
        %v2824 = vpop.permute.xlu0 %2823
        %2825 = vrot.lane.b32.xlu0 %v2663, 44
        %v2826 = vpop.permute.xlu0 %2825
        %2827 = vrot.lane.b32.xlu0 %v2664, 44
        %v2828 = vpop.permute.xlu0 %2827
        %2829 = vrot.lane.b32.xlu0 %v2665, 44
        %v2830 = vpop.permute.xlu0 %2829
        %2831 = vrot.lane.b32.xlu0 %v2666, 44
        %v2832 = vpop.permute.xlu0 %2831
        %2833 = vrot.lane.b32.xlu0 %v2667, 44
        %v2834 = vpop.permute.xlu0 %2833
        %2835 = vrot.lane.b32.xlu0 %v2668, 44
        %v2836 = vpop.permute.xlu0 %2835
        %2837 = vrot.lane.b32.xlu0 %v2669, 44
        %v2838 = vpop.permute.xlu0 %2837
        %2839 = vrot.lane.b32.xlu0 %v2670, 44
        %v2840 = vpop.permute.xlu0 %2839
        %2841 = vrot.lane.b32.xlu0 %v2671, 44
        %v2842 = vpop.permute.xlu0 %2841
        %2843 = vrot.lane.b32.xlu0 %v2672, 44
        %v2844 = vpop.permute.xlu0 %2843
        %2845 = vrot.lane.b32.xlu0 %v2673, 44
        %v2846 = vpop.permute.xlu0 %2845
        %2847 = vrot.lane.b32.xlu0 %v2674, 44
        %v2848 = vpop.permute.xlu0 %2847
        %2849 = vrot.lane.b32.xlu0 %v2675, 44
        %v2850 = vpop.permute.xlu0 %2849
        %2851 = vrot.lane.b32.xlu0 %v2676, 44
        %v2852 = vpop.permute.xlu0 %2851
        %2853 = vrot.lane.b32.xlu0 %v2677, 44
        %v2854 = vpop.permute.xlu0 %2853
        %2855 = vrot.lane.b32.xlu0 %v2678, 44
        %v2856 = vpop.permute.xlu0 %2855
        %2857 = vrot.lane.b32.xlu0 %v2679, 44
        %v2858 = vpop.permute.xlu0 %2857
        %2859 = vrot.lane.b32.xlu0 %v2680, 44
        %v2860 = vpop.permute.xlu0 %2859
        %2861 = vrot.lane.b32.xlu0 %v2681, 44
        %v2862 = vpop.permute.xlu0 %2861
        %2863 = vrot.lane.b32.xlu0 %v2682, 44
        %v2864 = vpop.permute.xlu0 %2863
        %2865 = vrot.lane.b32.xlu0 %v2683, 44
        %v2866 = vpop.permute.xlu0 %2865
        %2867 = vrot.lane.b32.xlu0 %v2684, 44
        %v2868 = vpop.permute.xlu0 %2867
        %2869 = vrot.lane.b32.xlu0 %v2685, 44
        %v2870 = vpop.permute.xlu0 %2869
        %2871 = vrot.lane.b32.xlu0 %v2686, 44
        %v2872 = vpop.permute.xlu0 %2871
        %2873 = vrot.lane.b32.xlu0 %v2687, 44
        %v2874 = vpop.permute.xlu0 %2873
        %2875 = vrot.lane.b32.xlu0 %v2688, 44
        %v2876 = vpop.permute.xlu0 %2875
        %2877 = vrot.lane.b32.xlu0 %v2689, 44
        %v2878 = vpop.permute.xlu0 %2877
        %2879 = vrot.lane.b32.xlu0 %v2690, 44
        %v2880 = vpop.permute.xlu0 %2879
        %2881 = vrot.lane.b32.xlu0 %v2691, 44
        %v2882 = vpop.permute.xlu0 %2881
        %2883 = vrot.lane.b32.xlu0 %v2692, 44
        %v2884 = vpop.permute.xlu0 %2883
        %vm2885 = vcmask 359424
        %v2886 = vsel %vm2885, %v2758, %v2760
        %v2887 = vsel %vm2885, %v2762, %v2764
        %v2888 = vsel %vm2885, %v2766, %v2768
        %v2889 = vsel %vm2885, %v2770, %v2772
        %v2890 = vsel %vm2885, %v2774, %v2776
        %v2891 = vsel %vm2885, %v2778, %v2780
        %v2892 = vsel %vm2885, %v2782, %v2784
        %v2893 = vsel %vm2885, %v2786, %v2788
        %v2894 = vsel %vm2885, %v2790, %v2792
        %v2895 = vsel %vm2885, %v2794, %v2796
        %v2896 = vsel %vm2885, %v2798, %v2800
        %v2897 = vsel %vm2885, %v2802, %v2804
        %v2898 = vsel %vm2885, %v2806, %v2808
        %v2899 = vsel %vm2885, %v2810, %v2812
        %v2900 = vsel %vm2885, %v2814, %v2816
        %v2901 = vsel %vm2885, %v2818, %v2820
        %v2902 = vsel %vm2885, %v2822, %v2824
        %v2903 = vsel %vm2885, %v2826, %v2828
        %v2904 = vsel %vm2885, %v2830, %v2832
        %v2905 = vsel %vm2885, %v2834, %v2836
        %v2906 = vsel %vm2885, %v2838, %v2840
        %v2907 = vsel %vm2885, %v2842, %v2844
        %v2908 = vsel %vm2885, %v2846, %v2848
        %v2909 = vsel %vm2885, %v2850, %v2852
        %v2910 = vsel %vm2885, %v2854, %v2856
        %v2911 = vsel %vm2885, %v2858, %v2860
        %v2912 = vsel %vm2885, %v2862, %v2864
        %v2913 = vsel %vm2885, %v2866, %v2868
        %v2914 = vsel %vm2885, %v2870, %v2872
        %v2915 = vsel %vm2885, %v2874, %v2876
        %v2916 = vsel %vm2885, %v2878, %v2880
        %v2917 = vsel %vm2885, %v2882, %v2884
        %v2950 = vmax.f32 %v2629, %v2886
        %v2951 = vmax.f32 %v2631, %v2887
        %v2952 = vmax.f32 %v2633, %v2888
        %v2953 = vmax.f32 %v2635, %v2889
        %v2954 = vmax.f32 %v2637, %v2890
        %v2955 = vmax.f32 %v2639, %v2891
        %v2956 = vmax.f32 %v2641, %v2892
        %v2957 = vmax.f32 %v2643, %v2893
        %v2958 = vmax.f32 %v2645, %v2894
        %v2959 = vmax.f32 %v2647, %v2895
        %v2960 = vmax.f32 %v2649, %v2896
        %v2961 = vmax.f32 %v2651, %v2897
        %v2962 = vmax.f32 %v2653, %v2898
        %v2963 = vmax.f32 %v2655, %v2899
        %v2964 = vmax.f32 %v2657, %v2900
        %v2965 = vmax.f32 %v2659, %v2901
        %v2966 = vmax.f32 %v2661, %v2902
        %v2967 = vmax.f32 %v2663, %v2903
        %v2968 = vmax.f32 %v2665, %v2904
        %v2969 = vmax.f32 %v2667, %v2905
        %v2970 = vmax.f32 %v2669, %v2906
        %v2971 = vmax.f32 %v2671, %v2907
        %v2972 = vmax.f32 %v2673, %v2908
        %v2973 = vmax.f32 %v2675, %v2909
        %v2974 = vmax.f32 %v2677, %v2910
        %v2975 = vmax.f32 %v2679, %v2911
        %v2976 = vmax.f32 %v2681, %v2912
        %v2977 = vmax.f32 %v2683, %v2913
        %v2978 = vmax.f32 %v2685, %v2914
        %v2979 = vmax.f32 %v2687, %v2915
        %v2980 = vmax.f32 %v2689, %v2916
        %v2981 = vmax.f32 %v2691, %v2917
        %vm2982 = vcmask 687104
        %2983 = vst.msk [vmem:[#allocation3] sm:$0xff] %vm2982, %v2950
        %2984 = vst.msk [vmem:[#allocation3 + $0x8] sm:$0xff] %vm2982, %v2951
        %2985 = vst.msk [vmem:[#allocation3 + $0x10] sm:$0xff] %vm2982, %v2952
        %2986 = vst.msk [vmem:[#allocation3 + $0x18] sm:$0xff] %vm2982, %v2953
        %2987 = vst.msk [vmem:[#allocation3 + $0x20] sm:$0xff] %vm2982, %v2954
        %2988 = vst.msk [vmem:[#allocation3 + $0x28] sm:$0xff] %vm2982, %v2955
        %2989 = vst.msk [vmem:[#allocation3 + $0x30] sm:$0xff] %vm2982, %v2956
        %2990 = vst.msk [vmem:[#allocation3 + $0x38] sm:$0xff] %vm2982, %v2957
        %2991 = vst.msk [vmem:[#allocation3 + $0x40] sm:$0xff] %vm2982, %v2958
        %2992 = vst.msk [vmem:[#allocation3 + $0x48] sm:$0xff] %vm2982, %v2959
        %2993 = vst.msk [vmem:[#allocation3 + $0x50] sm:$0xff] %vm2982, %v2960
        %2994 = vst.msk [vmem:[#allocation3 + $0x58] sm:$0xff] %vm2982, %v2961
        %2995 = vst.msk [vmem:[#allocation3 + $0x60] sm:$0xff] %vm2982, %v2962
        %2996 = vst.msk [vmem:[#allocation3 + $0x68] sm:$0xff] %vm2982, %v2963
        %2997 = vst.msk [vmem:[#allocation3 + $0x70] sm:$0xff] %vm2982, %v2964
        %2998 = vst.msk [vmem:[#allocation3 + $0x78] sm:$0xff] %vm2982, %v2965
        %2999 = vst.msk [vmem:[#allocation3 + $0x80] sm:$0xff] %vm2982, %v2966
        %3000 = vst.msk [vmem:[#allocation3 + $0x88] sm:$0xff] %vm2982, %v2967
        %3001 = vst.msk [vmem:[#allocation3 + $0x90] sm:$0xff] %vm2982, %v2968
        %3002 = vst.msk [vmem:[#allocation3 + $0x98] sm:$0xff] %vm2982, %v2969
        %3003 = vst.msk [vmem:[#allocation3 + $0xa0] sm:$0xff] %vm2982, %v2970
        %3004 = vst.msk [vmem:[#allocation3 + $0xa8] sm:$0xff] %vm2982, %v2971
        %3005 = vst.msk [vmem:[#allocation3 + $0xb0] sm:$0xff] %vm2982, %v2972
        %3006 = vst.msk [vmem:[#allocation3 + $0xb8] sm:$0xff] %vm2982, %v2973
        %3007 = vst.msk [vmem:[#allocation3 + $0xc0] sm:$0xff] %vm2982, %v2974
        %3008 = vst.msk [vmem:[#allocation3 + $0xc8] sm:$0xff] %vm2982, %v2975
        %3009 = vst.msk [vmem:[#allocation3 + $0xd0] sm:$0xff] %vm2982, %v2976
        %3010 = vst.msk [vmem:[#allocation3 + $0xd8] sm:$0xff] %vm2982, %v2977
        %3011 = vst.msk [vmem:[#allocation3 + $0xe0] sm:$0xff] %vm2982, %v2978
        %3012 = vst.msk [vmem:[#allocation3 + $0xe8] sm:$0xff] %vm2982, %v2979
        %3013 = vst.msk [vmem:[#allocation3 + $0xf0] sm:$0xff] %vm2982, %v2980
        %3014 = vst.msk [vmem:[#allocation3 + $0xf8] sm:$0xff] %vm2982, %v2981
        %v3015 = vld [vmem:[#allocation3] ss:$2 sm:$0xff]
        %s3016 = scalar_lea.vmem [#allocation3], 16
        %v3017 = vld [vmem:[%s3016] ss:$2 sm:$0xff]
        %s3018 = scalar_lea.vmem [#allocation3], 32
        %v3019 = vld [vmem:[%s3018] ss:$2 sm:$0xff]
        %s3020 = scalar_lea.vmem [#allocation3], 48
        %v3021 = vld [vmem:[%s3020] ss:$2 sm:$0xff]
        %s3022 = scalar_lea.vmem [#allocation3], 64
        %v3023 = vld [vmem:[%s3022] ss:$2 sm:$0xff]
        %s3024 = scalar_lea.vmem [#allocation3], 80
        %v3025 = vld [vmem:[%s3024] ss:$2 sm:$0xff]
        %s3026 = scalar_lea.vmem [#allocation3], 96
        %v3027 = vld [vmem:[%s3026] ss:$2 sm:$0xff]
        %s3028 = scalar_lea.vmem [#allocation3], 112
        %v3029 = vld [vmem:[%s3028] ss:$2 sm:$0xff]
        %s3030 = scalar_lea.vmem [#allocation3], 128
        %v3031 = vld [vmem:[%s3030] ss:$2 sm:$0xff]
        %s3032 = scalar_lea.vmem [#allocation3], 144
        %v3033 = vld [vmem:[%s3032] ss:$2 sm:$0xff]
        %s3034 = scalar_lea.vmem [#allocation3], 160
        %v3035 = vld [vmem:[%s3034] ss:$2 sm:$0xff]
        %s3036 = scalar_lea.vmem [#allocation3], 176
        %v3037 = vld [vmem:[%s3036] ss:$2 sm:$0xff]
        %s3038 = scalar_lea.vmem [#allocation3], 192
        %v3039 = vld [vmem:[%s3038] ss:$2 sm:$0xff]
        %s3040 = scalar_lea.vmem [#allocation3], 208
        %v3041 = vld [vmem:[%s3040] ss:$2 sm:$0xff]
        %s3042 = scalar_lea.vmem [#allocation3], 224
        %v3043 = vld [vmem:[%s3042] ss:$2 sm:$0xff]
        %s3044 = scalar_lea.vmem [#allocation3], 240
        %v3045 = vld [vmem:[%s3044] ss:$2 sm:$0xff]
        %s3046 = scalar_lea.vmem [#allocation3], 1
        %v3047 = vld [vmem:[%s3046] ss:$2 sm:$0xff]
        %s3048 = scalar_lea.vmem [#allocation3], 17
        %v3049 = vld [vmem:[%s3048] ss:$2 sm:$0xff]
        %s3050 = scalar_lea.vmem [#allocation3], 33
        %v3051 = vld [vmem:[%s3050] ss:$2 sm:$0xff]
        %s3052 = scalar_lea.vmem [#allocation3], 49
        %v3053 = vld [vmem:[%s3052] ss:$2 sm:$0xff]
        %s3054 = scalar_lea.vmem [#allocation3], 65
        %v3055 = vld [vmem:[%s3054] ss:$2 sm:$0xff]
        %s3056 = scalar_lea.vmem [#allocation3], 81
        %v3057 = vld [vmem:[%s3056] ss:$2 sm:$0xff]
        %s3058 = scalar_lea.vmem [#allocation3], 97
        %v3059 = vld [vmem:[%s3058] ss:$2 sm:$0xff]
        %s3060 = scalar_lea.vmem [#allocation3], 113
        %v3061 = vld [vmem:[%s3060] ss:$2 sm:$0xff]
        %s3062 = scalar_lea.vmem [#allocation3], 129
        %v3063 = vld [vmem:[%s3062] ss:$2 sm:$0xff]
        %s3064 = scalar_lea.vmem [#allocation3], 145
        %v3065 = vld [vmem:[%s3064] ss:$2 sm:$0xff]
        %s3066 = scalar_lea.vmem [#allocation3], 161
        %v3067 = vld [vmem:[%s3066] ss:$2 sm:$0xff]
        %s3068 = scalar_lea.vmem [#allocation3], 177
        %v3069 = vld [vmem:[%s3068] ss:$2 sm:$0xff]
        %s3070 = scalar_lea.vmem [#allocation3], 193
        %v3071 = vld [vmem:[%s3070] ss:$2 sm:$0xff]
        %s3072 = scalar_lea.vmem [#allocation3], 209
        %v3073 = vld [vmem:[%s3072] ss:$2 sm:$0xff]
        %s3074 = scalar_lea.vmem [#allocation3], 225
        %v3075 = vld [vmem:[%s3074] ss:$2 sm:$0xff]
        %s3076 = scalar_lea.vmem [#allocation3], 241
        %v3077 = vld [vmem:[%s3076] ss:$2 sm:$0xff]
        %v3078 = vmax.f32 %v3015, %v3047
        %v3079 = vmax.f32 %v3017, %v3049
        %v3080 = vmax.f32 %v3019, %v3051
        %v3081 = vmax.f32 %v3021, %v3053
        %v3082 = vmax.f32 %v3023, %v3055
        %v3083 = vmax.f32 %v3025, %v3057
        %v3084 = vmax.f32 %v3027, %v3059
        %v3085 = vmax.f32 %v3029, %v3061
        %v3086 = vmax.f32 %v3031, %v3063
        %v3087 = vmax.f32 %v3033, %v3065
        %v3088 = vmax.f32 %v3035, %v3067
        %v3089 = vmax.f32 %v3037, %v3069
        %v3090 = vmax.f32 %v3039, %v3071
        %v3091 = vmax.f32 %v3041, %v3073
        %v3092 = vmax.f32 %v3043, %v3075
        %v3093 = vmax.f32 %v3045, %v3077
        %v3094 = vld [vmem:[%s2] sm:$0x1]
        %v3096 = vlaneseq
        %v3097 = vshrl.u32 %v3096, 7
        %v3098 = vsub.s32 0, %v3097
        %v3099 = vrot.slane %v3094, %v3098
        %v3101 = vadd.f32 %v3078, %v3099
        %v3102 = vadd.f32 %v3079, %v3099
        %v3103 = vadd.f32 %v3080, %v3099
        %v3104 = vadd.f32 %v3081, %v3099
        %v3105 = vadd.f32 %v3082, %v3099
        %v3106 = vadd.f32 %v3083, %v3099
        %v3107 = vadd.f32 %v3084, %v3099
        %v3108 = vadd.f32 %v3085, %v3099
        %v3109 = vadd.f32 %v3086, %v3099
        %v3110 = vadd.f32 %v3087, %v3099
        %v3111 = vadd.f32 %v3088, %v3099
        %v3112 = vadd.f32 %v3089, %v3099
        %v3113 = vadd.f32 %v3090, %v3099
        %v3114 = vadd.f32 %v3091, %v3099
        %v3115 = vadd.f32 %v3092, %v3099
        %v3116 = vadd.f32 %v3093, %v3099
        %v3117 = vmax.f32 %v3101, 0.0
        %v3118 = vmax.f32 %v3102, 0.0
        %v3119 = vmax.f32 %v3103, 0.0
        %v3120 = vmax.f32 %v3104, 0.0
        %v3121 = vmax.f32 %v3105, 0.0
        %v3122 = vmax.f32 %v3106, 0.0
        %v3123 = vmax.f32 %v3107, 0.0
        %v3124 = vmax.f32 %v3108, 0.0
        %v3125 = vmax.f32 %v3109, 0.0
        %v3126 = vmax.f32 %v3110, 0.0
        %v3127 = vmax.f32 %v3111, 0.0
        %v3128 = vmax.f32 %v3112, 0.0
        %v3129 = vmax.f32 %v3113, 0.0
        %v3130 = vmax.f32 %v3114, 0.0
        %v3131 = vmax.f32 %v3115, 0.0
        %v3132 = vmax.f32 %v3116, 0.0
        %v3133 = vpack.c.bf16 %v3118, %v3117
        %v3134 = vpack.c.bf16 %v3120, %v3119
        %v3135 = vpack.c.bf16 %v3122, %v3121
        %v3136 = vpack.c.bf16 %v3124, %v3123
        %v3137 = vpack.c.bf16 %v3126, %v3125
        %v3138 = vpack.c.bf16 %v3128, %v3127
        %v3139 = vpack.c.bf16 %v3130, %v3129
        %v3140 = vpack.c.bf16 %v3132, %v3131
        %v3149 = vunpack.c.l.b16 %v3133
        %v3150 = vunpack.c.h.b16 %v3133
        %v3151 = vunpack.c.l.b16 %v3134
        %v3152 = vunpack.c.h.b16 %v3134
        %v3153 = vunpack.c.l.b16 %v3135
        %v3154 = vunpack.c.h.b16 %v3135
        %v3155 = vunpack.c.l.b16 %v3136
        %v3156 = vunpack.c.h.b16 %v3136
        %v3157 = vunpack.c.l.b16 %v3137
        %v3158 = vunpack.c.h.b16 %v3137
        %v3159 = vunpack.c.l.b16 %v3138
        %v3160 = vunpack.c.h.b16 %v3138
        %v3161 = vunpack.c.l.b16 %v3139
        %v3162 = vunpack.c.h.b16 %v3139
        %v3163 = vunpack.c.l.b16 %v3140
        %v3164 = vunpack.c.h.b16 %v3140
        %v3165 = vpack.c.b16 %v3149, %v3149
        %v3166 = vpack.c.b16 %v3150, %v3150
        %v3167 = vpack.c.b16 %v3151, %v3151
        %v3168 = vpack.c.b16 %v3152, %v3152
        %v3169 = vpack.c.b16 %v3153, %v3153
        %v3170 = vpack.c.b16 %v3154, %v3154
        %v3171 = vpack.c.b16 %v3155, %v3155
        %v3172 = vpack.c.b16 %v3156, %v3156
        %v3173 = vpack.c.b16 %v3157, %v3157
        %v3174 = vpack.c.b16 %v3158, %v3158
        %v3175 = vpack.c.b16 %v3159, %v3159
        %v3176 = vpack.c.b16 %v3160, %v3160
        %v3177 = vpack.c.b16 %v3161, %v3161
        %v3178 = vpack.c.b16 %v3162, %v3162
        %v3179 = vpack.c.b16 %v3163, %v3163
        %v3180 = vpack.c.b16 %v3164, %v3164
        %vm3197 = vcmask 683008
        %3198 = vst.msk [vmem:[#allocation4] sm:$0xf] %vm3197, %v3165
        %3199 = vst.msk [vmem:[#allocation4 + $0x4] sm:$0xf] %vm3197, %v3166
        %3200 = vst.msk [vmem:[#allocation4 + $0x8] sm:$0xf] %vm3197, %v3167
        %3201 = vst.msk [vmem:[#allocation4 + $0xc] sm:$0xf] %vm3197, %v3168
        %3202 = vst.msk [vmem:[#allocation4 + $0x10] sm:$0xf] %vm3197, %v3169
        %3203 = vst.msk [vmem:[#allocation4 + $0x14] sm:$0xf] %vm3197, %v3170
        %3204 = vst.msk [vmem:[#allocation4 + $0x18] sm:$0xf] %vm3197, %v3171
        %3205 = vst.msk [vmem:[#allocation4 + $0x1c] sm:$0xf] %vm3197, %v3172
        %3206 = vst.msk [vmem:[#allocation4 + $0x20] sm:$0xf] %vm3197, %v3173
        %3207 = vst.msk [vmem:[#allocation4 + $0x24] sm:$0xf] %vm3197, %v3174
        %3208 = vst.msk [vmem:[#allocation4 + $0x28] sm:$0xf] %vm3197, %v3175
        %3209 = vst.msk [vmem:[#allocation4 + $0x2c] sm:$0xf] %vm3197, %v3176
        %3210 = vst.msk [vmem:[#allocation4 + $0x30] sm:$0xf] %vm3197, %v3177
        %3211 = vst.msk [vmem:[#allocation4 + $0x34] sm:$0xf] %vm3197, %v3178
        %3212 = vst.msk [vmem:[#allocation4 + $0x38] sm:$0xf] %vm3197, %v3179
        %3213 = vst.msk [vmem:[#allocation4 + $0x3c] sm:$0xf] %vm3197, %v3180
        %3214 = vst.msk [vmem:[#allocation4 + $0x40] sm:$0xf] %vm3197, 0
        %v3215 = vld [vmem:[#allocation4] sm:$0xf]
        %v3216 = vld [vmem:[#allocation4 + $0x4] sm:$0xf]
        %v3217 = vld [vmem:[#allocation4 + $0x8] sm:$0xf]
        %v3218 = vld [vmem:[#allocation4 + $0xc] sm:$0xf]
        %v3219 = vld [vmem:[#allocation4 + $0x10] sm:$0xf]
        %v3220 = vld [vmem:[#allocation4 + $0x14] sm:$0xf]
        %v3221 = vld [vmem:[#allocation4 + $0x18] sm:$0xf]
        %v3222 = vld [vmem:[#allocation4 + $0x1c] sm:$0xf]
        %v3223 = vld [vmem:[#allocation4 + $0x20] sm:$0xf]
        %v3224 = vld [vmem:[#allocation4 + $0x24] sm:$0xf]
        %v3225 = vld [vmem:[#allocation4 + $0x28] sm:$0xf]
        %v3226 = vld [vmem:[#allocation4 + $0x2c] sm:$0xf]
        %v3227 = vld [vmem:[#allocation4 + $0x30] sm:$0xf]
        %v3228 = vld [vmem:[#allocation4 + $0x34] sm:$0xf]
        %v3229 = vld [vmem:[#allocation4 + $0x38] sm:$0xf]
        %v3230 = vld [vmem:[#allocation4 + $0x3c] sm:$0xf]
        %v3231 = vld [vmem:[%s3] sm:$0xff]
        %v3232 = vld [vmem:[%s3 + $0x8] sm:$0xff]
        %v3233 = vld [vmem:[%s3 + $0x10] sm:$0xff]
        %v3234 = vld [vmem:[%s3 + $0x18] sm:$0xff]
        %v3235 = vld [vmem:[%s3 + $0x20] sm:$0xff]
        %v3236 = vld [vmem:[%s3 + $0x28] sm:$0xff]
        %v3237 = vld [vmem:[%s3 + $0x30] sm:$0xff]
        %v3238 = vld [vmem:[%s3 + $0x38] sm:$0xff]
        %v3239 = vld [vmem:[%s3 + $0x40] sm:$0xff]
        %v3240 = vld [vmem:[%s3 + $0x48] sm:$0xff]
        %v3241 = vld [vmem:[%s3 + $0x50] sm:$0x33]
        %v3242 = vld [vmem:[#allocation4 + $0x40] sm:$0x1]
        %s3243 = scalar_lea.vmem %s3, 88
        %v3244 = vld [vmem:[%s3243] sm:$0xff]
        %v3245 = vld [vmem:[%s3243 + $0x8] sm:$0xff]
        %v3246 = vld [vmem:[%s3243 + $0x10] sm:$0xff]
        %v3247 = vld [vmem:[%s3243 + $0x18] sm:$0xff]
        %v3248 = vld [vmem:[%s3243 + $0x20] sm:$0xff]
        %v3249 = vld [vmem:[%s3243 + $0x28] sm:$0xff]
        %v3250 = vld [vmem:[%s3243 + $0x30] sm:$0xff]
        %v3251 = vld [vmem:[%s3243 + $0x38] sm:$0xff]
        %v3252 = vld [vmem:[%s3243 + $0x40] sm:$0xff]
        %v3253 = vld [vmem:[%s3243 + $0x48] sm:$0xff]
        %v3254 = vld [vmem:[%s3243 + $0x50] sm:$0x33]
        %v3272 = vunpack.c.l.b16 %v3215
        %v3273 = vunpack.c.l.b16 %v3216
        %v3274 = vunpack.c.l.b16 %v3217
        %v3275 = vunpack.c.l.b16 %v3218
        %v3276 = vunpack.c.l.b16 %v3219
        %v3277 = vunpack.c.l.b16 %v3220
        %v3278 = vunpack.c.l.b16 %v3221
        %v3279 = vunpack.c.l.b16 %v3222
        %v3280 = vunpack.c.l.b16 %v3223
        %v3281 = vunpack.c.l.b16 %v3224
        %v3282 = vunpack.c.l.b16 %v3225
        %v3283 = vunpack.c.l.b16 %v3226
        %v3284 = vunpack.c.l.b16 %v3227
        %v3285 = vunpack.c.l.b16 %v3228
        %v3286 = vunpack.c.l.b16 %v3229
        %v3287 = vunpack.c.l.b16 %v3230
        %v3288 = vunpack.c.l.b16 %v3242
        %v3289 = vpack.c.b16 %v3273, %v3272
        %v3290 = vpack.c.b16 %v3275, %v3274
        %v3291 = vpack.c.b16 %v3277, %v3276
        %v3292 = vpack.c.b16 %v3279, %v3278
        %v3293 = vpack.c.b16 %v3281, %v3280
        %v3294 = vpack.c.b16 %v3283, %v3282
        %v3295 = vpack.c.b16 %v3285, %v3284
        %v3296 = vpack.c.b16 %v3287, %v3286
        %v3297 = vpack.c.b16 %v3288, %v3288
        %v3299 = vshrl.u32 %v3289, 16
        %v3301 = vshll.u32 %v3289, 16
        %v3303 = vrot.slane %v3301, 1
        %v3304 = vor.u32 %v3299, %v3303
        %v3306 = vshll.u32 %v3290, 16
        %v3308 = vrot.slane %v3306, 1
        %v3309 = vsel %vm634, %v3304, %v3308
        %v3310 = vshrl.u32 %v3290, 16
        %v3312 = vor.u32 %v3310, %v3308
        %v3314 = vshll.u32 %v3291, 16
        %v3316 = vrot.slane %v3314, 1
        %v3317 = vsel %vm634, %v3312, %v3316
        %v3318 = vshrl.u32 %v3291, 16
        %v3320 = vor.u32 %v3318, %v3316
        %v3322 = vshll.u32 %v3292, 16
        %v3324 = vrot.slane %v3322, 1
        %v3325 = vsel %vm634, %v3320, %v3324
        %v3326 = vshrl.u32 %v3292, 16
        %v3328 = vor.u32 %v3326, %v3324
        %v3330 = vshll.u32 %v3293, 16
        %v3332 = vrot.slane %v3330, 1
        %v3333 = vsel %vm634, %v3328, %v3332
        %v3334 = vshrl.u32 %v3293, 16
        %v3336 = vor.u32 %v3334, %v3332
        %v3338 = vshll.u32 %v3294, 16
        %v3340 = vrot.slane %v3338, 1
        %v3341 = vsel %vm634, %v3336, %v3340
        %v3342 = vshrl.u32 %v3294, 16
        %v3344 = vor.u32 %v3342, %v3340
        %v3346 = vshll.u32 %v3295, 16
        %v3348 = vrot.slane %v3346, 1
        %v3349 = vsel %vm634, %v3344, %v3348
        %v3350 = vshrl.u32 %v3295, 16
        %v3352 = vor.u32 %v3350, %v3348
        %v3354 = vshll.u32 %v3296, 16
        %v3356 = vrot.slane %v3354, 1
        %v3357 = vsel %vm634, %v3352, %v3356
        %v3358 = vshrl.u32 %v3296, 16
        %v3360 = vor.u32 %v3358, %v3356
        %v3362 = vshll.u32 %v3297, 16
        %v3364 = vrot.slane %v3362, 1
        %v3365 = vsel %vm634, %v3360, %v3364
        %v3377 = vunpack.c.l.b16 %v3244
        %v3378 = vunpack.c.h.b16 %v3244
        %v3379 = vunpack.c.l.b16 %v3245
        %v3380 = vunpack.c.h.b16 %v3245
        %v3381 = vunpack.c.l.b16 %v3246
        %v3382 = vunpack.c.h.b16 %v3246
        %v3383 = vunpack.c.l.b16 %v3247
        %v3384 = vunpack.c.h.b16 %v3247
        %v3385 = vunpack.c.l.b16 %v3248
        %v3386 = vunpack.c.h.b16 %v3248
        %v3387 = vunpack.c.l.b16 %v3249
        %v3388 = vunpack.c.h.b16 %v3249
        %v3389 = vunpack.c.l.b16 %v3250
        %v3390 = vunpack.c.h.b16 %v3250
        %v3391 = vunpack.c.l.b16 %v3251
        %v3392 = vunpack.c.h.b16 %v3251
        %v3393 = vunpack.c.l.b16 %v3252
        %v3394 = vunpack.c.h.b16 %v3252
        %v3395 = vunpack.c.l.b16 %v3253
        %v3396 = vunpack.c.h.b16 %v3253
        %v3397 = vunpack.c.l.b16 %v3254
        %v3398 = vunpack.c.h.b16 %v3254
        %v3399 = vpack.c.b16 %v3379, %v3377
        %v3400 = vpack.c.b16 %v3380, %v3378
        %v3401 = vpack.c.b16 %v3383, %v3381
        %v3402 = vpack.c.b16 %v3384, %v3382
        %v3403 = vpack.c.b16 %v3387, %v3385
        %v3404 = vpack.c.b16 %v3388, %v3386
        %v3405 = vpack.c.b16 %v3391, %v3389
        %v3406 = vpack.c.b16 %v3392, %v3390
        %v3407 = vpack.c.b16 %v3395, %v3393
        %v3408 = vpack.c.b16 %v3396, %v3394
        %v3409 = vpack.c.b16 %v3397, %v3397
        %v3410 = vpack.c.b16 %v3398, %v3398
        %v3422 = vsel %vm2982, %v3309, 0
        %v3425 = vsel %vm2982, %v3317, 0
        %v3428 = vsel %vm2982, %v3325, 0
        %v3431 = vsel %vm2982, %v3333, 0
        %v3434 = vsel %vm2982, %v3341, 0
        %v3437 = vsel %vm2982, %v3349, 0
        %v3440 = vsel %vm2982, %v3357, 0
        %v3443 = vsel %vm2982, %v3365, 0
        %vm3445 = vcmask 1041408
        %v3447 = vsel %vm3445, %v3409, 0
        %v3450 = vsel %vm3445, %v3410, 0
        %3452 = vmatprep.subr.bf16.mxu0 %v3400
        %3453 = vmatpush1.bf16.msra.mxu0 %v3399
        %3454 = vmatprep.subr.bf16.mxu0 %v3402
        %3455 = vmatpush1.bf16.msra.mxu0 %v3401
        %3456 = vmatprep.subr.bf16.mxu0 %v3404
        %3457 = vmatpush1.bf16.msra.mxu0 %v3403
        %3458 = vmatprep.subr.bf16.mxu0 %v3406
        %3459 = vmatpush1.bf16.msra.mxu0 %v3405
        %3460 = vmatprep.subr.bf16.mxu0 %v3408
        %3461 = vmatpush1.bf16.msra.mxu0 %v3407
        %3462 = vmatprep.subr.bf16.mxu0 %v3450
        %3463 = vmatpush1.bf16.msra.mxu0 %v3447
        %3464 = vmatprep.subr.bf16.mxu0 0
        %3465 = vmatpush1.bf16.msra.mxu0 0
        %3466 = vmatprep.subr.bf16.mxu0 0
        %3467 = vmatpush1.bf16.msra.mxu0 0
        %3468 = vmatprep.subr.bf16.mxu0 0
        %3469 = vmatpush1.bf16.msra.mxu0 0
        %3470 = vmatprep.subr.bf16.mxu0 0
        %3471 = vmatpush1.bf16.msra.mxu0 0
        %3472 = vmatprep.subr.bf16.mxu0 0
        %3473 = vmatpush1.bf16.msra.mxu0 0
        %3474 = vmatprep.subr.bf16.mxu0 0
        %3475 = vmatpush1.bf16.msra.mxu0 0
        %3476 = vmatprep.subr.bf16.mxu0 0
        %3477 = vmatpush1.bf16.msra.mxu0 0
        %3478 = vmatprep.subr.bf16.mxu0 0
        %3479 = vmatpush1.bf16.msra.mxu0 0
        %3480 = vmatprep.subr.bf16.mxu0 0
        %3481 = vmatpush1.bf16.msra.mxu0 0
        %3482 = vmatprep.subr.bf16.mxu0 0
        %3483 = vmatpush1.bf16.msra.mxu0 0
        %3484 = vmatprep.mubr.bf16.mxu0 0
        %3485 = vmatmul.mubr.bf16.gmra.mrb[0].mxu0 %v3422
        %v3486 = vpop.f32.mrb[0].mxu0
        %v3487 = vadd.f32 0.0, %v3486
        %v3488 = vpop.f32.mrb[0].mxu0
        %v3489 = vadd.f32 0.0, %v3488
        %v3490 = vpop.f32.mrb[0].mxu0
        %v3491 = vadd.f32 0.0, %v3490
        %v3492 = vpop.f32.mrb[0].mxu0
        %v3493 = vadd.f32 0.0, %v3492
        %3494 = vmatprep.mubr.bf16.mxu0 0
        %3495 = vmatmul.mubr.bf16.gmra.mrb[0].mxu0 %v3425
        %v3496 = vpop.f32.mrb[0].mxu0
        %v3497 = vadd.f32 0.0, %v3496
        %v3498 = vpop.f32.mrb[0].mxu0
        %v3499 = vadd.f32 0.0, %v3498
        %v3500 = vpop.f32.mrb[0].mxu0
        %v3501 = vadd.f32 0.0, %v3500
        %v3502 = vpop.f32.mrb[0].mxu0
        %v3503 = vadd.f32 0.0, %v3502
        %3504 = vmatprep.mubr.bf16.mxu0 0
        %3505 = vmatmul.mubr.bf16.gmra.mrb[0].mxu0 %v3428
        %v3506 = vpop.f32.mrb[0].mxu0
        %v3507 = vadd.f32 0.0, %v3506
        %v3508 = vpop.f32.mrb[0].mxu0
        %v3509 = vadd.f32 0.0, %v3508
        %v3510 = vpop.f32.mrb[0].mxu0
        %v3511 = vadd.f32 0.0, %v3510
        %v3512 = vpop.f32.mrb[0].mxu0
        %v3513 = vadd.f32 0.0, %v3512
        %3514 = vmatprep.mubr.bf16.mxu0 0
        %3515 = vmatmul.mubr.bf16.gmra.mrb[0].mxu0 %v3431
        %v3516 = vpop.f32.mrb[0].mxu0
        %v3517 = vadd.f32 0.0, %v3516
        %v3518 = vpop.f32.mrb[0].mxu0
        %v3519 = vadd.f32 0.0, %v3518
        %v3520 = vpop.f32.mrb[0].mxu0
        %v3521 = vadd.f32 0.0, %v3520
        %v3522 = vpop.f32.mrb[0].mxu0
        %v3523 = vadd.f32 0.0, %v3522
        %3524 = vmatprep.mubr.bf16.mxu0 0
        %3525 = vmatmul.mubr.bf16.gmra.mrb[0].mxu0 %v3434
        %v3526 = vpop.f32.mrb[0].mxu0
        %v3527 = vadd.f32 0.0, %v3526
        %v3528 = vpop.f32.mrb[0].mxu0
        %v3529 = vadd.f32 0.0, %v3528
        %v3530 = vpop.f32.mrb[0].mxu0
        %v3531 = vadd.f32 0.0, %v3530
        %v3532 = vpop.f32.mrb[0].mxu0
        %v3533 = vadd.f32 0.0, %v3532
        %3534 = vmatprep.mubr.bf16.mxu0 0
        %3535 = vmatmul.mubr.bf16.gmra.mrb[0].mxu0 %v3437
        %v3536 = vpop.f32.mrb[0].mxu0
        %v3537 = vadd.f32 0.0, %v3536
        %v3538 = vpop.f32.mrb[0].mxu0
        %v3539 = vadd.f32 0.0, %v3538
        %v3540 = vpop.f32.mrb[0].mxu0
        %v3541 = vadd.f32 0.0, %v3540
        %v3542 = vpop.f32.mrb[0].mxu0
        %v3543 = vadd.f32 0.0, %v3542
        %3544 = vmatprep.mubr.bf16.mxu0 0
        %3545 = vmatmul.mubr.bf16.gmra.mrb[0].mxu0 %v3440
        %v3546 = vpop.f32.mrb[0].mxu0
        %v3547 = vadd.f32 0.0, %v3546
        %v3548 = vpop.f32.mrb[0].mxu0
        %v3549 = vadd.f32 0.0, %v3548
        %v3550 = vpop.f32.mrb[0].mxu0
        %v3551 = vadd.f32 0.0, %v3550
        %v3552 = vpop.f32.mrb[0].mxu0
        %v3553 = vadd.f32 0.0, %v3552
        %3554 = vmatprep.mubr.bf16.mxu0 0
        %3555 = vmatmul.mubr.bf16.gmra.mrb[0].mxu0 %v3443
        %v3556 = vpop.f32.mrb[0].mxu0
        %v3557 = vadd.f32 0.0, %v3556
        %v3558 = vpop.f32.mrb[0].mxu0
        %v3559 = vadd.f32 0.0, %v3558
        %v3560 = vpop.f32.mrb[0].mxu0
        %v3561 = vadd.f32 0.0, %v3560
        %v3562 = vpop.f32.mrb[0].mxu0
        %v3563 = vadd.f32 0.0, %v3562
        %3564 = vdwg.mxu0
        %v3576 = vunpack.c.l.b16 %v3231
        %v3577 = vunpack.c.h.b16 %v3231
        %v3578 = vunpack.c.l.b16 %v3232
        %v3579 = vunpack.c.h.b16 %v3232
        %v3580 = vunpack.c.l.b16 %v3233
        %v3581 = vunpack.c.h.b16 %v3233
        %v3582 = vunpack.c.l.b16 %v3234
        %v3583 = vunpack.c.h.b16 %v3234
        %v3584 = vunpack.c.l.b16 %v3235
        %v3585 = vunpack.c.h.b16 %v3235
        %v3586 = vunpack.c.l.b16 %v3236
        %v3587 = vunpack.c.h.b16 %v3236
        %v3588 = vunpack.c.l.b16 %v3237
        %v3589 = vunpack.c.h.b16 %v3237
        %v3590 = vunpack.c.l.b16 %v3238
        %v3591 = vunpack.c.h.b16 %v3238
        %v3592 = vunpack.c.l.b16 %v3239
        %v3593 = vunpack.c.h.b16 %v3239
        %v3594 = vunpack.c.l.b16 %v3240
        %v3595 = vunpack.c.h.b16 %v3240
        %v3596 = vunpack.c.l.b16 %v3241
        %v3597 = vunpack.c.h.b16 %v3241
        %v3598 = vpack.c.b16 %v3578, %v3576
        %v3599 = vpack.c.b16 %v3579, %v3577
        %v3600 = vpack.c.b16 %v3582, %v3580
        %v3601 = vpack.c.b16 %v3583, %v3581
        %v3602 = vpack.c.b16 %v3586, %v3584
        %v3603 = vpack.c.b16 %v3587, %v3585
        %v3604 = vpack.c.b16 %v3590, %v3588
        %v3605 = vpack.c.b16 %v3591, %v3589
        %v3606 = vpack.c.b16 %v3594, %v3592
        %v3607 = vpack.c.b16 %v3595, %v3593
        %v3608 = vpack.c.b16 %v3596, %v3596
        %v3609 = vpack.c.b16 %v3597, %v3597
        %v3620 = vsel %vm2982, %v3289, 0
        %v3622 = vsel %vm2982, %v3290, 0
        %v3624 = vsel %vm2982, %v3291, 0
        %v3626 = vsel %vm2982, %v3292, 0
        %v3628 = vsel %vm2982, %v3293, 0
        %v3630 = vsel %vm2982, %v3294, 0
        %v3632 = vsel %vm2982, %v3295, 0
        %v3634 = vsel %vm2982, %v3296, 0
        %v3637 = vsel %vm3445, %v3608, 0
        %v3640 = vsel %vm3445, %v3609, 0
        %3642 = vmatprep.subr.bf16.mxu0 %v3599
        %3643 = vmatpush1.bf16.msra.mxu0 %v3598
        %3644 = vmatprep.subr.bf16.mxu0 %v3601
        %3645 = vmatpush1.bf16.msra.mxu0 %v3600
        %3646 = vmatprep.subr.bf16.mxu0 %v3603
        %3647 = vmatpush1.bf16.msra.mxu0 %v3602
        %3648 = vmatprep.subr.bf16.mxu0 %v3605
        %3649 = vmatpush1.bf16.msra.mxu0 %v3604
        %3650 = vmatprep.subr.bf16.mxu0 %v3607
        %3651 = vmatpush1.bf16.msra.mxu0 %v3606
        %3652 = vmatprep.subr.bf16.mxu0 %v3640
        %3653 = vmatpush1.bf16.msra.mxu0 %v3637
        %3654 = vmatprep.subr.bf16.mxu0 0
        %3655 = vmatpush1.bf16.msra.mxu0 0
        %3656 = vmatprep.subr.bf16.mxu0 0
        %3657 = vmatpush1.bf16.msra.mxu0 0
        %3658 = vmatprep.subr.bf16.mxu0 0
        %3659 = vmatpush1.bf16.msra.mxu0 0
        %3660 = vmatprep.subr.bf16.mxu0 0
        %3661 = vmatpush1.bf16.msra.mxu0 0
        %3662 = vmatprep.subr.bf16.mxu0 0
        %3663 = vmatpush1.bf16.msra.mxu0 0
        %3664 = vmatprep.subr.bf16.mxu0 0
        %3665 = vmatpush1.bf16.msra.mxu0 0
        %3666 = vmatprep.subr.bf16.mxu0 0
        %3667 = vmatpush1.bf16.msra.mxu0 0
        %3668 = vmatprep.subr.bf16.mxu0 0
        %3669 = vmatpush1.bf16.msra.mxu0 0
        %3670 = vmatprep.subr.bf16.mxu0 0
        %3671 = vmatpush1.bf16.msra.mxu0 0
        %3672 = vmatprep.subr.bf16.mxu0 0
        %3673 = vmatpush1.bf16.msra.mxu0 0
        %3674 = vmatprep.mubr.bf16.mxu0 0
        %3675 = vmatmul.mubr.bf16.gmra.mrb[0].mxu0 %v3620
        %v3676 = vpop.f32.mrb[0].mxu0
        %v3677 = vadd.f32 %v3487, %v3676
        %v3678 = vpop.f32.mrb[0].mxu0
        %v3679 = vadd.f32 %v3489, %v3678
        %v3680 = vpop.f32.mrb[0].mxu0
        %v3681 = vadd.f32 %v3491, %v3680
        %v3682 = vpop.f32.mrb[0].mxu0
        %v3683 = vadd.f32 %v3493, %v3682
        %3684 = vmatprep.mubr.bf16.mxu0 0
        %3685 = vmatmul.mubr.bf16.gmra.mrb[0].mxu0 %v3622
        %v3686 = vpop.f32.mrb[0].mxu0
        %v3687 = vadd.f32 %v3497, %v3686
        %v3688 = vpop.f32.mrb[0].mxu0
        %v3689 = vadd.f32 %v3499, %v3688
        %v3690 = vpop.f32.mrb[0].mxu0
        %v3691 = vadd.f32 %v3501, %v3690
        %v3692 = vpop.f32.mrb[0].mxu0
        %v3693 = vadd.f32 %v3503, %v3692
        %3694 = vmatprep.mubr.bf16.mxu0 0
        %3695 = vmatmul.mubr.bf16.gmra.mrb[0].mxu0 %v3624
        %v3696 = vpop.f32.mrb[0].mxu0
        %v3697 = vadd.f32 %v3507, %v3696
        %v3698 = vpop.f32.mrb[0].mxu0
        %v3699 = vadd.f32 %v3509, %v3698
        %v3700 = vpop.f32.mrb[0].mxu0
        %v3701 = vadd.f32 %v3511, %v3700
        %v3702 = vpop.f32.mrb[0].mxu0
        %v3703 = vadd.f32 %v3513, %v3702
        %3704 = vmatprep.mubr.bf16.mxu0 0
        %3705 = vmatmul.mubr.bf16.gmra.mrb[0].mxu0 %v3626
        %v3706 = vpop.f32.mrb[0].mxu0
        %v3707 = vadd.f32 %v3517, %v3706
        %v3708 = vpop.f32.mrb[0].mxu0
        %v3709 = vadd.f32 %v3519, %v3708
        %v3710 = vpop.f32.mrb[0].mxu0
        %v3711 = vadd.f32 %v3521, %v3710
        %v3712 = vpop.f32.mrb[0].mxu0
        %v3713 = vadd.f32 %v3523, %v3712
        %3714 = vmatprep.mubr.bf16.mxu0 0
        %3715 = vmatmul.mubr.bf16.gmra.mrb[0].mxu0 %v3628
        %v3716 = vpop.f32.mrb[0].mxu0
        %v3717 = vadd.f32 %v3527, %v3716
        %v3718 = vpop.f32.mrb[0].mxu0
        %v3719 = vadd.f32 %v3529, %v3718
        %v3720 = vpop.f32.mrb[0].mxu0
        %v3721 = vadd.f32 %v3531, %v3720
        %v3722 = vpop.f32.mrb[0].mxu0
        %v3723 = vadd.f32 %v3533, %v3722
        %3724 = vmatprep.mubr.bf16.mxu0 0
        %3725 = vmatmul.mubr.bf16.gmra.mrb[0].mxu0 %v3630
        %v3726 = vpop.f32.mrb[0].mxu0
        %v3727 = vadd.f32 %v3537, %v3726
        %v3728 = vpop.f32.mrb[0].mxu0
        %v3729 = vadd.f32 %v3539, %v3728
        %v3730 = vpop.f32.mrb[0].mxu0
        %v3731 = vadd.f32 %v3541, %v3730
        %v3732 = vpop.f32.mrb[0].mxu0
        %v3733 = vadd.f32 %v3543, %v3732
        %3734 = vmatprep.mubr.bf16.mxu0 0
        %3735 = vmatmul.mubr.bf16.gmra.mrb[0].mxu0 %v3632
        %v3736 = vpop.f32.mrb[0].mxu0
        %v3737 = vadd.f32 %v3547, %v3736
        %v3738 = vpop.f32.mrb[0].mxu0
        %v3739 = vadd.f32 %v3549, %v3738
        %v3740 = vpop.f32.mrb[0].mxu0
        %v3741 = vadd.f32 %v3551, %v3740
        %v3742 = vpop.f32.mrb[0].mxu0
        %v3743 = vadd.f32 %v3553, %v3742
        %3744 = vmatprep.mubr.bf16.mxu0 0
        %3745 = vmatmul.mubr.bf16.gmra.mrb[0].mxu0 %v3634
        %v3746 = vpop.f32.mrb[0].mxu0
        %v3747 = vadd.f32 %v3557, %v3746
        %v3748 = vpop.f32.mrb[0].mxu0
        %v3749 = vadd.f32 %v3559, %v3748
        %v3750 = vpop.f32.mrb[0].mxu0
        %v3751 = vadd.f32 %v3561, %v3750
        %v3752 = vpop.f32.mrb[0].mxu0
        %v3753 = vadd.f32 %v3563, %v3752
        %3754 = vdwg.mxu0
        %v3755 = vld [vmem:[#allocation4] sm:$0xe]
        %s3756 = scalar_lea.vmem %s3, 176
        %v3757 = vld [vmem:[%s3756] sm:$0xff]
        %v3758 = vld [vmem:[%s3756 + $0x8] sm:$0xff]
        %v3759 = vld [vmem:[%s3756 + $0x10] sm:$0xff]
        %v3760 = vld [vmem:[%s3756 + $0x18] sm:$0xff]
        %v3761 = vld [vmem:[%s3756 + $0x20] sm:$0xff]
        %v3762 = vld [vmem:[%s3756 + $0x28] sm:$0xff]
        %v3763 = vld [vmem:[%s3756 + $0x30] sm:$0xff]
        %v3764 = vld [vmem:[%s3756 + $0x38] sm:$0xff]
        %v3765 = vld [vmem:[%s3756 + $0x40] sm:$0xff]
        %v3766 = vld [vmem:[%s3756 + $0x48] sm:$0xff]
        %v3767 = vld [vmem:[%s3756 + $0x50] sm:$0x33]
        %v3769 = vunpack.c.l.b16 %v3755
        %v3770 = vpack.c.b16 %v3273, %v3769
        %v3771 = vrot.slane %v3770, 1
        %v3772 = vrot.slane %v3290, 1
        %v3773 = vsel %vm1446, %v3771, %v3772
        %v3774 = vrot.slane %v3291, 1
        %v3775 = vsel %vm1446, %v3772, %v3774
        %v3776 = vrot.slane %v3292, 1
        %v3777 = vsel %vm1446, %v3774, %v3776
        %v3778 = vrot.slane %v3293, 1
        %v3779 = vsel %vm1446, %v3776, %v3778
        %v3780 = vrot.slane %v3294, 1
        %v3781 = vsel %vm1446, %v3778, %v3780
        %v3782 = vrot.slane %v3295, 1
        %v3783 = vsel %vm1446, %v3780, %v3782
        %v3784 = vrot.slane %v3296, 1
        %v3785 = vsel %vm1446, %v3782, %v3784
        %v3786 = vrot.slane %v3297, 1
        %v3787 = vsel %vm1446, %v3784, %v3786
        %v3799 = vunpack.c.l.b16 %v3757
        %v3800 = vunpack.c.h.b16 %v3757
        %v3801 = vunpack.c.l.b16 %v3758
        %v3802 = vunpack.c.h.b16 %v3758
        %v3803 = vunpack.c.l.b16 %v3759
        %v3804 = vunpack.c.h.b16 %v3759
        %v3805 = vunpack.c.l.b16 %v3760
        %v3806 = vunpack.c.h.b16 %v3760
        %v3807 = vunpack.c.l.b16 %v3761
        %v3808 = vunpack.c.h.b16 %v3761
        %v3809 = vunpack.c.l.b16 %v3762
        %v3810 = vunpack.c.h.b16 %v3762
        %v3811 = vunpack.c.l.b16 %v3763
        %v3812 = vunpack.c.h.b16 %v3763
        %v3813 = vunpack.c.l.b16 %v3764
        %v3814 = vunpack.c.h.b16 %v3764
        %v3815 = vunpack.c.l.b16 %v3765
        %v3816 = vunpack.c.h.b16 %v3765
        %v3817 = vunpack.c.l.b16 %v3766
        %v3818 = vunpack.c.h.b16 %v3766
        %v3819 = vunpack.c.l.b16 %v3767
        %v3820 = vunpack.c.h.b16 %v3767
        %v3821 = vpack.c.b16 %v3801, %v3799
        %v3822 = vpack.c.b16 %v3802, %v3800
        %v3823 = vpack.c.b16 %v3805, %v3803
        %v3824 = vpack.c.b16 %v3806, %v3804
        %v3825 = vpack.c.b16 %v3809, %v3807
        %v3826 = vpack.c.b16 %v3810, %v3808
        %v3827 = vpack.c.b16 %v3813, %v3811
        %v3828 = vpack.c.b16 %v3814, %v3812
        %v3829 = vpack.c.b16 %v3817, %v3815
        %v3830 = vpack.c.b16 %v3818, %v3816
        %v3831 = vpack.c.b16 %v3819, %v3819
        %v3832 = vpack.c.b16 %v3820, %v3820
        %v3844 = vsel %vm2982, %v3773, 0
        %v3847 = vsel %vm2982, %v3775, 0
        %v3850 = vsel %vm2982, %v3777, 0
        %v3853 = vsel %vm2982, %v3779, 0
        %v3856 = vsel %vm2982, %v3781, 0
        %v3859 = vsel %vm2982, %v3783, 0
        %v3862 = vsel %vm2982, %v3785, 0
        %v3865 = vsel %vm2982, %v3787, 0
        %v3868 = vsel %vm3445, %v3831, 0
        %v3871 = vsel %vm3445, %v3832, 0
        %3873 = vmatprep.subr.bf16.mxu0 %v3822
        %3874 = vmatpush1.bf16.msra.mxu0 %v3821
        %3875 = vmatprep.subr.bf16.mxu0 %v3824
        %3876 = vmatpush1.bf16.msra.mxu0 %v3823
        %3877 = vmatprep.subr.bf16.mxu0 %v3826
        %3878 = vmatpush1.bf16.msra.mxu0 %v3825
        %3879 = vmatprep.subr.bf16.mxu0 %v3828
        %3880 = vmatpush1.bf16.msra.mxu0 %v3827
        %3881 = vmatprep.subr.bf16.mxu0 %v3830
        %3882 = vmatpush1.bf16.msra.mxu0 %v3829
        %3883 = vmatprep.subr.bf16.mxu0 %v3871
        %3884 = vmatpush1.bf16.msra.mxu0 %v3868
        %3885 = vmatprep.subr.bf16.mxu0 0
        %3886 = vmatpush1.bf16.msra.mxu0 0
        %3887 = vmatprep.subr.bf16.mxu0 0
        %3888 = vmatpush1.bf16.msra.mxu0 0
        %3889 = vmatprep.subr.bf16.mxu0 0
        %3890 = vmatpush1.bf16.msra.mxu0 0
        %3891 = vmatprep.subr.bf16.mxu0 0
        %3892 = vmatpush1.bf16.msra.mxu0 0
        %3893 = vmatprep.subr.bf16.mxu0 0
        %3894 = vmatpush1.bf16.msra.mxu0 0
        %3895 = vmatprep.subr.bf16.mxu0 0
        %3896 = vmatpush1.bf16.msra.mxu0 0
        %3897 = vmatprep.subr.bf16.mxu0 0
        %3898 = vmatpush1.bf16.msra.mxu0 0
        %3899 = vmatprep.subr.bf16.mxu0 0
        %3900 = vmatpush1.bf16.msra.mxu0 0
        %3901 = vmatprep.subr.bf16.mxu0 0
        %3902 = vmatpush1.bf16.msra.mxu0 0
        %3903 = vmatprep.subr.bf16.mxu0 0
        %3904 = vmatpush1.bf16.msra.mxu0 0
        %3905 = vmatprep.mubr.bf16.mxu0 0
        %3906 = vmatmul.mubr.bf16.gmra.mrb[0].mxu0 %v3844
        %v3907 = vpop.f32.mrb[0].mxu0
        %v3908 = vadd.f32 0.0, %v3907
        %v3909 = vpop.f32.mrb[0].mxu0
        %v3910 = vadd.f32 0.0, %v3909
        %v3911 = vpop.f32.mrb[0].mxu0
        %v3912 = vadd.f32 0.0, %v3911
        %v3913 = vpop.f32.mrb[0].mxu0
        %v3914 = vadd.f32 0.0, %v3913
        %3915 = vmatprep.mubr.bf16.mxu0 0
        %3916 = vmatmul.mubr.bf16.gmra.mrb[0].mxu0 %v3847
        %v3917 = vpop.f32.mrb[0].mxu0
        %v3918 = vadd.f32 0.0, %v3917
        %v3919 = vpop.f32.mrb[0].mxu0
        %v3920 = vadd.f32 0.0, %v3919
        %v3921 = vpop.f32.mrb[0].mxu0
        %v3922 = vadd.f32 0.0, %v3921
        %v3923 = vpop.f32.mrb[0].mxu0
        %v3924 = vadd.f32 0.0, %v3923
        %3925 = vmatprep.mubr.bf16.mxu0 0
        %3926 = vmatmul.mubr.bf16.gmra.mrb[0].mxu0 %v3850
        %v3927 = vpop.f32.mrb[0].mxu0
        %v3928 = vadd.f32 0.0, %v3927
        %v3929 = vpop.f32.mrb[0].mxu0
        %v3930 = vadd.f32 0.0, %v3929
        %v3931 = vpop.f32.mrb[0].mxu0
        %v3932 = vadd.f32 0.0, %v3931
        %v3933 = vpop.f32.mrb[0].mxu0
        %v3934 = vadd.f32 0.0, %v3933
        %3935 = vmatprep.mubr.bf16.mxu0 0
        %3936 = vmatmul.mubr.bf16.gmra.mrb[0].mxu0 %v3853
        %v3937 = vpop.f32.mrb[0].mxu0
        %v3938 = vadd.f32 0.0, %v3937
        %v3939 = vpop.f32.mrb[0].mxu0
        %v3940 = vadd.f32 0.0, %v3939
        %v3941 = vpop.f32.mrb[0].mxu0
        %v3942 = vadd.f32 0.0, %v3941
        %v3943 = vpop.f32.mrb[0].mxu0
        %v3944 = vadd.f32 0.0, %v3943
        %3945 = vmatprep.mubr.bf16.mxu0 0
        %3946 = vmatmul.mubr.bf16.gmra.mrb[0].mxu0 %v3856
        %v3947 = vpop.f32.mrb[0].mxu0
        %v3948 = vadd.f32 0.0, %v3947
        %v3949 = vpop.f32.mrb[0].mxu0
        %v3950 = vadd.f32 0.0, %v3949
        %v3951 = vpop.f32.mrb[0].mxu0
        %v3952 = vadd.f32 0.0, %v3951
        %v3953 = vpop.f32.mrb[0].mxu0
        %v3954 = vadd.f32 0.0, %v3953
        %3955 = vmatprep.mubr.bf16.mxu0 0
        %3956 = vmatmul.mubr.bf16.gmra.mrb[0].mxu0 %v3859
        %v3957 = vpop.f32.mrb[0].mxu0
        %v3958 = vadd.f32 0.0, %v3957
        %v3959 = vpop.f32.mrb[0].mxu0
        %v3960 = vadd.f32 0.0, %v3959
        %v3961 = vpop.f32.mrb[0].mxu0
        %v3962 = vadd.f32 0.0, %v3961
        %v3963 = vpop.f32.mrb[0].mxu0
        %v3964 = vadd.f32 0.0, %v3963
        %3965 = vmatprep.mubr.bf16.mxu0 0
        %3966 = vmatmul.mubr.bf16.gmra.mrb[0].mxu0 %v3862
        %v3967 = vpop.f32.mrb[0].mxu0
        %v3968 = vadd.f32 0.0, %v3967
        %v3969 = vpop.f32.mrb[0].mxu0
        %v3970 = vadd.f32 0.0, %v3969
        %v3971 = vpop.f32.mrb[0].mxu0
        %v3972 = vadd.f32 0.0, %v3971
        %v3973 = vpop.f32.mrb[0].mxu0
        %v3974 = vadd.f32 0.0, %v3973
        %3975 = vmatprep.mubr.bf16.mxu0 0
        %3976 = vmatmul.mubr.bf16.gmra.mrb[0].mxu0 %v3865
        %v3977 = vpop.f32.mrb[0].mxu0
        %v3978 = vadd.f32 0.0, %v3977
        %v3979 = vpop.f32.mrb[0].mxu0
        %v3980 = vadd.f32 0.0, %v3979
        %v3981 = vpop.f32.mrb[0].mxu0
        %v3982 = vadd.f32 0.0, %v3981
        %v3983 = vpop.f32.mrb[0].mxu0
        %v3984 = vadd.f32 0.0, %v3983
        %3985 = vdwg.mxu0
        %v3986 = vadd.f32 %v3677, %v3908
        %v3987 = vadd.f32 %v3679, %v3910
        %v3988 = vadd.f32 %v3681, %v3912
        %v3989 = vadd.f32 %v3683, %v3914
        %v3990 = vadd.f32 %v3687, %v3918
        %v3991 = vadd.f32 %v3689, %v3920
        %v3992 = vadd.f32 %v3691, %v3922
        %v3993 = vadd.f32 %v3693, %v3924
        %v3994 = vadd.f32 %v3697, %v3928
        %v3995 = vadd.f32 %v3699, %v3930
        %v3996 = vadd.f32 %v3701, %v3932
        %v3997 = vadd.f32 %v3703, %v3934
        %v3998 = vadd.f32 %v3707, %v3938
        %v3999 = vadd.f32 %v3709, %v3940
        %v4000 = vadd.f32 %v3711, %v3942
        %v4001 = vadd.f32 %v3713, %v3944
        %v4002 = vadd.f32 %v3717, %v3948
        %v4003 = vadd.f32 %v3719, %v3950
        %v4004 = vadd.f32 %v3721, %v3952
        %v4005 = vadd.f32 %v3723, %v3954
        %v4006 = vadd.f32 %v3727, %v3958
        %v4007 = vadd.f32 %v3729, %v3960
        %v4008 = vadd.f32 %v3731, %v3962
        %v4009 = vadd.f32 %v3733, %v3964
        %v4010 = vadd.f32 %v3737, %v3968
        %v4011 = vadd.f32 %v3739, %v3970
        %v4012 = vadd.f32 %v3741, %v3972
        %v4013 = vadd.f32 %v3743, %v3974
        %v4014 = vadd.f32 %v3747, %v3978
        %v4015 = vadd.f32 %v3749, %v3980
        %v4016 = vadd.f32 %v3751, %v3982
        %v4017 = vadd.f32 %v3753, %v3984
        %v4018 = vld [vmem:[#allocation4 + $0x40] sm:$0x3]
        %s4019 = scalar_lea.vmem %s3, 264
        %v4020 = vld [vmem:[%s4019] sm:$0xff]
        %v4021 = vld [vmem:[%s4019 + $0x8] sm:$0xff]
        %v4022 = vld [vmem:[%s4019 + $0x10] sm:$0xff]
        %v4023 = vld [vmem:[%s4019 + $0x18] sm:$0xff]
        %v4024 = vld [vmem:[%s4019 + $0x20] sm:$0xff]
        %v4025 = vld [vmem:[%s4019 + $0x28] sm:$0xff]
        %v4026 = vld [vmem:[%s4019 + $0x30] sm:$0xff]
        %v4027 = vld [vmem:[%s4019 + $0x38] sm:$0xff]
        %v4028 = vld [vmem:[%s4019 + $0x40] sm:$0xff]
        %v4029 = vld [vmem:[%s4019 + $0x48] sm:$0xff]
        %v4030 = vld [vmem:[%s4019 + $0x50] sm:$0x33]
        %v4032 = vunpack.c.l.b16 %v4018
        %v4033 = vpack.c.b16 %v4032, %v4032
        %v4035 = vshrl.u32 %v3770, 16
        %v4037 = vrot.slane %v4035, 1
        %v4038 = vshll.u32 %v3770, 16
        %v4040 = vrot.slane %v4038, 2
        %v4041 = vor.u32 %v4037, %v4040
        %v4042 = vrot.slane %v3310, 1
        %v4043 = vrot.slane %v3306, 2
        %v4044 = vor.u32 %v4042, %v4043
        %v4045 = vsel %vm1854, %v4041, %v4044
        %v4046 = vrot.slane %v3318, 1
        %v4047 = vrot.slane %v3314, 2
        %v4048 = vor.u32 %v4046, %v4047
        %v4049 = vsel %vm1854, %v4044, %v4048
        %v4050 = vrot.slane %v3326, 1
        %v4051 = vrot.slane %v3322, 2
        %v4052 = vor.u32 %v4050, %v4051
        %v4053 = vsel %vm1854, %v4048, %v4052
        %v4054 = vrot.slane %v3334, 1
        %v4055 = vrot.slane %v3330, 2
        %v4056 = vor.u32 %v4054, %v4055
        %v4057 = vsel %vm1854, %v4052, %v4056
        %v4058 = vrot.slane %v3342, 1
        %v4059 = vrot.slane %v3338, 2
        %v4060 = vor.u32 %v4058, %v4059
        %v4061 = vsel %vm1854, %v4056, %v4060
        %v4062 = vrot.slane %v3350, 1
        %v4063 = vrot.slane %v3346, 2
        %v4064 = vor.u32 %v4062, %v4063
        %v4065 = vsel %vm1854, %v4060, %v4064
        %v4066 = vrot.slane %v3358, 1
        %v4067 = vrot.slane %v3354, 2
        %v4068 = vor.u32 %v4066, %v4067
        %v4069 = vsel %vm1854, %v4064, %v4068
        %v4071 = vshrl.u32 %v4033, 16
        %v4073 = vrot.slane %v4071, 1
        %v4074 = vshll.u32 %v4033, 16
        %v4076 = vrot.slane %v4074, 2
        %v4077 = vor.u32 %v4073, %v4076
        %v4078 = vsel %vm1854, %v4068, %v4077
        %v4090 = vunpack.c.l.b16 %v4020
        %v4091 = vunpack.c.h.b16 %v4020
        %v4092 = vunpack.c.l.b16 %v4021
        %v4093 = vunpack.c.h.b16 %v4021
        %v4094 = vunpack.c.l.b16 %v4022
        %v4095 = vunpack.c.h.b16 %v4022
        %v4096 = vunpack.c.l.b16 %v4023
        %v4097 = vunpack.c.h.b16 %v4023
        %v4098 = vunpack.c.l.b16 %v4024
        %v4099 = vunpack.c.h.b16 %v4024
        %v4100 = vunpack.c.l.b16 %v4025
        %v4101 = vunpack.c.h.b16 %v4025
        %v4102 = vunpack.c.l.b16 %v4026
        %v4103 = vunpack.c.h.b16 %v4026
        %v4104 = vunpack.c.l.b16 %v4027
        %v4105 = vunpack.c.h.b16 %v4027
        %v4106 = vunpack.c.l.b16 %v4028
        %v4107 = vunpack.c.h.b16 %v4028
        %v4108 = vunpack.c.l.b16 %v4029
        %v4109 = vunpack.c.h.b16 %v4029
        %v4110 = vunpack.c.l.b16 %v4030
        %v4111 = vunpack.c.h.b16 %v4030
        %v4112 = vpack.c.b16 %v4092, %v4090
        %v4113 = vpack.c.b16 %v4093, %v4091
        %v4114 = vpack.c.b16 %v4096, %v4094
        %v4115 = vpack.c.b16 %v4097, %v4095
        %v4116 = vpack.c.b16 %v4100, %v4098
        %v4117 = vpack.c.b16 %v4101, %v4099
        %v4118 = vpack.c.b16 %v4104, %v4102
        %v4119 = vpack.c.b16 %v4105, %v4103
        %v4120 = vpack.c.b16 %v4108, %v4106
        %v4121 = vpack.c.b16 %v4109, %v4107
        %v4122 = vpack.c.b16 %v4110, %v4110
        %v4123 = vpack.c.b16 %v4111, %v4111
        %v4135 = vsel %vm2982, %v4045, 0
        %v4138 = vsel %vm2982, %v4049, 0
        %v4141 = vsel %vm2982, %v4053, 0
        %v4144 = vsel %vm2982, %v4057, 0
        %v4147 = vsel %vm2982, %v4061, 0
        %v4150 = vsel %vm2982, %v4065, 0
        %v4153 = vsel %vm2982, %v4069, 0
        %v4156 = vsel %vm2982, %v4078, 0
        %v4159 = vsel %vm3445, %v4122, 0
        %v4162 = vsel %vm3445, %v4123, 0
        %4164 = vmatprep.subr.bf16.mxu0 %v4113
        %4165 = vmatpush1.bf16.msra.mxu0 %v4112
        %4166 = vmatprep.subr.bf16.mxu0 %v4115
        %4167 = vmatpush1.bf16.msra.mxu0 %v4114
        %4168 = vmatprep.subr.bf16.mxu0 %v4117
        %4169 = vmatpush1.bf16.msra.mxu0 %v4116
        %4170 = vmatprep.subr.bf16.mxu0 %v4119
        %4171 = vmatpush1.bf16.msra.mxu0 %v4118
        %4172 = vmatprep.subr.bf16.mxu0 %v4121
        %4173 = vmatpush1.bf16.msra.mxu0 %v4120
        %4174 = vmatprep.subr.bf16.mxu0 %v4162
        %4175 = vmatpush1.bf16.msra.mxu0 %v4159
        %4176 = vmatprep.subr.bf16.mxu0 0
        %4177 = vmatpush1.bf16.msra.mxu0 0
        %4178 = vmatprep.subr.bf16.mxu0 0
        %4179 = vmatpush1.bf16.msra.mxu0 0
        %4180 = vmatprep.subr.bf16.mxu0 0
        %4181 = vmatpush1.bf16.msra.mxu0 0
        %4182 = vmatprep.subr.bf16.mxu0 0
        %4183 = vmatpush1.bf16.msra.mxu0 0
        %4184 = vmatprep.subr.bf16.mxu0 0
        %4185 = vmatpush1.bf16.msra.mxu0 0
        %4186 = vmatprep.subr.bf16.mxu0 0
        %4187 = vmatpush1.bf16.msra.mxu0 0
        %4188 = vmatprep.subr.bf16.mxu0 0
        %4189 = vmatpush1.bf16.msra.mxu0 0
        %4190 = vmatprep.subr.bf16.mxu0 0
        %4191 = vmatpush1.bf16.msra.mxu0 0
        %4192 = vmatprep.subr.bf16.mxu0 0
        %4193 = vmatpush1.bf16.msra.mxu0 0
        %4194 = vmatprep.subr.bf16.mxu0 0
        %4195 = vmatpush1.bf16.msra.mxu0 0
        %4196 = vmatprep.mubr.bf16.mxu0 0
        %4197 = vmatmul.mubr.bf16.gmra.mrb[0].mxu0 %v4135
        %v4198 = vpop.f32.mrb[0].mxu0
        %v4199 = vadd.f32 0.0, %v4198
        %v4200 = vpop.f32.mrb[0].mxu0
        %v4201 = vadd.f32 0.0, %v4200
        %v4202 = vpop.f32.mrb[0].mxu0
        %v4203 = vadd.f32 0.0, %v4202
        %v4204 = vpop.f32.mrb[0].mxu0
        %v4205 = vadd.f32 0.0, %v4204
        %4206 = vmatprep.mubr.bf16.mxu0 0
        %4207 = vmatmul.mubr.bf16.gmra.mrb[0].mxu0 %v4138
        %v4208 = vpop.f32.mrb[0].mxu0
        %v4209 = vadd.f32 0.0, %v4208
        %v4210 = vpop.f32.mrb[0].mxu0
        %v4211 = vadd.f32 0.0, %v4210
        %v4212 = vpop.f32.mrb[0].mxu0
        %v4213 = vadd.f32 0.0, %v4212
        %v4214 = vpop.f32.mrb[0].mxu0
        %v4215 = vadd.f32 0.0, %v4214
        %4216 = vmatprep.mubr.bf16.mxu0 0
        %4217 = vmatmul.mubr.bf16.gmra.mrb[0].mxu0 %v4141
        %v4218 = vpop.f32.mrb[0].mxu0
        %v4219 = vadd.f32 0.0, %v4218
        %v4220 = vpop.f32.mrb[0].mxu0
        %v4221 = vadd.f32 0.0, %v4220
        %v4222 = vpop.f32.mrb[0].mxu0
        %v4223 = vadd.f32 0.0, %v4222
        %v4224 = vpop.f32.mrb[0].mxu0
        %v4225 = vadd.f32 0.0, %v4224
        %4226 = vmatprep.mubr.bf16.mxu0 0
        %4227 = vmatmul.mubr.bf16.gmra.mrb[0].mxu0 %v4144
        %v4228 = vpop.f32.mrb[0].mxu0
        %v4229 = vadd.f32 0.0, %v4228
        %v4230 = vpop.f32.mrb[0].mxu0
        %v4231 = vadd.f32 0.0, %v4230
        %v4232 = vpop.f32.mrb[0].mxu0
        %v4233 = vadd.f32 0.0, %v4232
        %v4234 = vpop.f32.mrb[0].mxu0
        %v4235 = vadd.f32 0.0, %v4234
        %4236 = vmatprep.mubr.bf16.mxu0 0
        %4237 = vmatmul.mubr.bf16.gmra.mrb[0].mxu0 %v4147
        %v4238 = vpop.f32.mrb[0].mxu0
        %v4239 = vadd.f32 0.0, %v4238
        %v4240 = vpop.f32.mrb[0].mxu0
        %v4241 = vadd.f32 0.0, %v4240
        %v4242 = vpop.f32.mrb[0].mxu0
        %v4243 = vadd.f32 0.0, %v4242
        %v4244 = vpop.f32.mrb[0].mxu0
        %v4245 = vadd.f32 0.0, %v4244
        %4246 = vmatprep.mubr.bf16.mxu0 0
        %4247 = vmatmul.mubr.bf16.gmra.mrb[0].mxu0 %v4150
        %v4248 = vpop.f32.mrb[0].mxu0
        %v4249 = vadd.f32 0.0, %v4248
        %v4250 = vpop.f32.mrb[0].mxu0
        %v4251 = vadd.f32 0.0, %v4250
        %v4252 = vpop.f32.mrb[0].mxu0
        %v4253 = vadd.f32 0.0, %v4252
        %v4254 = vpop.f32.mrb[0].mxu0
        %v4255 = vadd.f32 0.0, %v4254
        %4256 = vmatprep.mubr.bf16.mxu0 0
        %4257 = vmatmul.mubr.bf16.gmra.mrb[0].mxu0 %v4153
        %v4258 = vpop.f32.mrb[0].mxu0
        %v4259 = vadd.f32 0.0, %v4258
        %v4260 = vpop.f32.mrb[0].mxu0
        %v4261 = vadd.f32 0.0, %v4260
        %v4262 = vpop.f32.mrb[0].mxu0
        %v4263 = vadd.f32 0.0, %v4262
        %v4264 = vpop.f32.mrb[0].mxu0
        %v4265 = vadd.f32 0.0, %v4264
        %4266 = vmatprep.mubr.bf16.mxu0 0
        %4267 = vmatmul.mubr.bf16.gmra.mrb[0].mxu0 %v4156
        %v4268 = vpop.f32.mrb[0].mxu0
        %v4269 = vadd.f32 0.0, %v4268
        %v4270 = vpop.f32.mrb[0].mxu0
        %v4271 = vadd.f32 0.0, %v4270
        %v4272 = vpop.f32.mrb[0].mxu0
        %v4273 = vadd.f32 0.0, %v4272
        %v4274 = vpop.f32.mrb[0].mxu0
        %v4275 = vadd.f32 0.0, %v4274
        %4276 = vdwg.mxu0
        %v4277 = vadd.f32 %v3986, %v4199
        %v4278 = vadd.f32 %v3987, %v4201
        %v4279 = vadd.f32 %v3988, %v4203
        %v4280 = vadd.f32 %v3989, %v4205
        %v4281 = vadd.f32 %v3990, %v4209
        %v4282 = vadd.f32 %v3991, %v4211
        %v4283 = vadd.f32 %v3992, %v4213
        %v4284 = vadd.f32 %v3993, %v4215
        %v4285 = vadd.f32 %v3994, %v4219
        %v4286 = vadd.f32 %v3995, %v4221
        %v4287 = vadd.f32 %v3996, %v4223
        %v4288 = vadd.f32 %v3997, %v4225
        %v4289 = vadd.f32 %v3998, %v4229
        %v4290 = vadd.f32 %v3999, %v4231
        %v4291 = vadd.f32 %v4000, %v4233
        %v4292 = vadd.f32 %v4001, %v4235
        %v4293 = vadd.f32 %v4002, %v4239
        %v4294 = vadd.f32 %v4003, %v4241
        %v4295 = vadd.f32 %v4004, %v4243
        %v4296 = vadd.f32 %v4005, %v4245
        %v4297 = vadd.f32 %v4006, %v4249
        %v4298 = vadd.f32 %v4007, %v4251
        %v4299 = vadd.f32 %v4008, %v4253
        %v4300 = vadd.f32 %v4009, %v4255
        %v4301 = vadd.f32 %v4010, %v4259
        %v4302 = vadd.f32 %v4011, %v4261
        %v4303 = vadd.f32 %v4012, %v4263
        %v4304 = vadd.f32 %v4013, %v4265
        %v4305 = vadd.f32 %v4014, %v4269
        %v4306 = vadd.f32 %v4015, %v4271
        %v4307 = vadd.f32 %v4016, %v4273
        %v4308 = vadd.f32 %v4017, %v4275
        %v4309 = vld [vmem:[#allocation4] sm:$0xc]
        %s4310 = scalar_lea.vmem %s3, 352
        %v4311 = vld [vmem:[%s4310] sm:$0xff]
        %v4312 = vld [vmem:[%s4310 + $0x8] sm:$0xff]
        %v4313 = vld [vmem:[%s4310 + $0x10] sm:$0xff]
        %v4314 = vld [vmem:[%s4310 + $0x18] sm:$0xff]
        %v4315 = vld [vmem:[%s4310 + $0x20] sm:$0xff]
        %v4316 = vld [vmem:[%s4310 + $0x28] sm:$0xff]
        %v4317 = vld [vmem:[%s4310 + $0x30] sm:$0xff]
        %v4318 = vld [vmem:[%s4310 + $0x38] sm:$0xff]
        %v4319 = vld [vmem:[%s4310 + $0x40] sm:$0xff]
        %v4320 = vld [vmem:[%s4310 + $0x48] sm:$0xff]
        %v4321 = vld [vmem:[%s4310 + $0x50] sm:$0x33]
        %v4323 = vunpack.c.l.b16 %v4309
        %v4324 = vpack.c.b16 %v3273, %v4323
        %v4325 = vrot.slane %v4324, 2
        %v4326 = vrot.slane %v3290, 2
        %v4327 = vsel %vm2306, %v4325, %v4326
        %v4328 = vrot.slane %v3291, 2
        %v4329 = vsel %vm2306, %v4326, %v4328
        %v4330 = vrot.slane %v3292, 2
        %v4331 = vsel %vm2306, %v4328, %v4330
        %v4332 = vrot.slane %v3293, 2
        %v4333 = vsel %vm2306, %v4330, %v4332
        %v4334 = vrot.slane %v3294, 2
        %v4335 = vsel %vm2306, %v4332, %v4334
        %v4336 = vrot.slane %v3295, 2
        %v4337 = vsel %vm2306, %v4334, %v4336
        %v4338 = vrot.slane %v3296, 2
        %v4339 = vsel %vm2306, %v4336, %v4338
        %v4340 = vrot.slane %v4033, 2
        %v4341 = vsel %vm2306, %v4338, %v4340
        %v4353 = vunpack.c.l.b16 %v4311
        %v4354 = vunpack.c.h.b16 %v4311
        %v4355 = vunpack.c.l.b16 %v4312
        %v4356 = vunpack.c.h.b16 %v4312
        %v4357 = vunpack.c.l.b16 %v4313
        %v4358 = vunpack.c.h.b16 %v4313
        %v4359 = vunpack.c.l.b16 %v4314
        %v4360 = vunpack.c.h.b16 %v4314
        %v4361 = vunpack.c.l.b16 %v4315
        %v4362 = vunpack.c.h.b16 %v4315
        %v4363 = vunpack.c.l.b16 %v4316
        %v4364 = vunpack.c.h.b16 %v4316
        %v4365 = vunpack.c.l.b16 %v4317
        %v4366 = vunpack.c.h.b16 %v4317
        %v4367 = vunpack.c.l.b16 %v4318
        %v4368 = vunpack.c.h.b16 %v4318
        %v4369 = vunpack.c.l.b16 %v4319
        %v4370 = vunpack.c.h.b16 %v4319
        %v4371 = vunpack.c.l.b16 %v4320
        %v4372 = vunpack.c.h.b16 %v4320
        %v4373 = vunpack.c.l.b16 %v4321
        %v4374 = vunpack.c.h.b16 %v4321
        %v4375 = vpack.c.b16 %v4355, %v4353
        %v4376 = vpack.c.b16 %v4356, %v4354
        %v4377 = vpack.c.b16 %v4359, %v4357
        %v4378 = vpack.c.b16 %v4360, %v4358
        %v4379 = vpack.c.b16 %v4363, %v4361
        %v4380 = vpack.c.b16 %v4364, %v4362
        %v4381 = vpack.c.b16 %v4367, %v4365
        %v4382 = vpack.c.b16 %v4368, %v4366
        %v4383 = vpack.c.b16 %v4371, %v4369
        %v4384 = vpack.c.b16 %v4372, %v4370
        %v4385 = vpack.c.b16 %v4373, %v4373
        %v4386 = vpack.c.b16 %v4374, %v4374
        %v4398 = vsel %vm2982, %v4327, 0
        %v4401 = vsel %vm2982, %v4329, 0
        %v4404 = vsel %vm2982, %v4331, 0
        %v4407 = vsel %vm2982, %v4333, 0
        %v4410 = vsel %vm2982, %v4335, 0
        %v4413 = vsel %vm2982, %v4337, 0
        %v4416 = vsel %vm2982, %v4339, 0
        %v4419 = vsel %vm2982, %v4341, 0
        %v4422 = vsel %vm3445, %v4385, 0
        %v4425 = vsel %vm3445, %v4386, 0
        %4427 = vmatprep.subr.bf16.mxu0 %v4376
        %4428 = vmatpush1.bf16.msra.mxu0 %v4375
        %4429 = vmatprep.subr.bf16.mxu0 %v4378
        %4430 = vmatpush1.bf16.msra.mxu0 %v4377
        %4431 = vmatprep.subr.bf16.mxu0 %v4380
        %4432 = vmatpush1.bf16.msra.mxu0 %v4379
        %4433 = vmatprep.subr.bf16.mxu0 %v4382
        %4434 = vmatpush1.bf16.msra.mxu0 %v4381
        %4435 = vmatprep.subr.bf16.mxu0 %v4384
        %4436 = vmatpush1.bf16.msra.mxu0 %v4383
        %4437 = vmatprep.subr.bf16.mxu0 %v4425
        %4438 = vmatpush1.bf16.msra.mxu0 %v4422
        %4439 = vmatprep.subr.bf16.mxu0 0
        %4440 = vmatpush1.bf16.msra.mxu0 0
        %4441 = vmatprep.subr.bf16.mxu0 0
        %4442 = vmatpush1.bf16.msra.mxu0 0
        %4443 = vmatprep.subr.bf16.mxu0 0
        %4444 = vmatpush1.bf16.msra.mxu0 0
        %4445 = vmatprep.subr.bf16.mxu0 0
        %4446 = vmatpush1.bf16.msra.mxu0 0
        %4447 = vmatprep.subr.bf16.mxu0 0
        %4448 = vmatpush1.bf16.msra.mxu0 0
        %4449 = vmatprep.subr.bf16.mxu0 0
        %4450 = vmatpush1.bf16.msra.mxu0 0
        %4451 = vmatprep.subr.bf16.mxu0 0
        %4452 = vmatpush1.bf16.msra.mxu0 0
        %4453 = vmatprep.subr.bf16.mxu0 0
        %4454 = vmatpush1.bf16.msra.mxu0 0
        %4455 = vmatprep.subr.bf16.mxu0 0
        %4456 = vmatpush1.bf16.msra.mxu0 0
        %4457 = vmatprep.subr.bf16.mxu0 0
        %4458 = vmatpush1.bf16.msra.mxu0 0
        %4459 = vmatprep.mubr.bf16.mxu0 0
        %4460 = vmatmul.mubr.bf16.gmra.mrb[0].mxu0 %v4398
        %v4461 = vpop.f32.mrb[0].mxu0
        %v4462 = vadd.f32 0.0, %v4461
        %v4463 = vpop.f32.mrb[0].mxu0
        %v4464 = vadd.f32 0.0, %v4463
        %v4465 = vpop.f32.mrb[0].mxu0
        %v4466 = vadd.f32 0.0, %v4465
        %v4467 = vpop.f32.mrb[0].mxu0
        %v4468 = vadd.f32 0.0, %v4467
        %4469 = vmatprep.mubr.bf16.mxu0 0
        %4470 = vmatmul.mubr.bf16.gmra.mrb[0].mxu0 %v4401
        %v4471 = vpop.f32.mrb[0].mxu0
        %v4472 = vadd.f32 0.0, %v4471
        %v4473 = vpop.f32.mrb[0].mxu0
        %v4474 = vadd.f32 0.0, %v4473
        %v4475 = vpop.f32.mrb[0].mxu0
        %v4476 = vadd.f32 0.0, %v4475
        %v4477 = vpop.f32.mrb[0].mxu0
        %v4478 = vadd.f32 0.0, %v4477
        %4479 = vmatprep.mubr.bf16.mxu0 0
        %4480 = vmatmul.mubr.bf16.gmra.mrb[0].mxu0 %v4404
        %v4481 = vpop.f32.mrb[0].mxu0
        %v4482 = vadd.f32 0.0, %v4481
        %v4483 = vpop.f32.mrb[0].mxu0
        %v4484 = vadd.f32 0.0, %v4483
        %v4485 = vpop.f32.mrb[0].mxu0
        %v4486 = vadd.f32 0.0, %v4485
        %v4487 = vpop.f32.mrb[0].mxu0
        %v4488 = vadd.f32 0.0, %v4487
        %4489 = vmatprep.mubr.bf16.mxu0 0
        %4490 = vmatmul.mubr.bf16.gmra.mrb[0].mxu0 %v4407
        %v4491 = vpop.f32.mrb[0].mxu0
        %v4492 = vadd.f32 0.0, %v4491
        %v4493 = vpop.f32.mrb[0].mxu0
        %v4494 = vadd.f32 0.0, %v4493
        %v4495 = vpop.f32.mrb[0].mxu0
        %v4496 = vadd.f32 0.0, %v4495
        %v4497 = vpop.f32.mrb[0].mxu0
        %v4498 = vadd.f32 0.0, %v4497
        %4499 = vmatprep.mubr.bf16.mxu0 0
        %4500 = vmatmul.mubr.bf16.gmra.mrb[0].mxu0 %v4410
        %v4501 = vpop.f32.mrb[0].mxu0
        %v4502 = vadd.f32 0.0, %v4501
        %v4503 = vpop.f32.mrb[0].mxu0
        %v4504 = vadd.f32 0.0, %v4503
        %v4505 = vpop.f32.mrb[0].mxu0
        %v4506 = vadd.f32 0.0, %v4505
        %v4507 = vpop.f32.mrb[0].mxu0
        %v4508 = vadd.f32 0.0, %v4507
        %4509 = vmatprep.mubr.bf16.mxu0 0
        %4510 = vmatmul.mubr.bf16.gmra.mrb[0].mxu0 %v4413
        %v4511 = vpop.f32.mrb[0].mxu0
        %v4512 = vadd.f32 0.0, %v4511
        %v4513 = vpop.f32.mrb[0].mxu0
        %v4514 = vadd.f32 0.0, %v4513
        %v4515 = vpop.f32.mrb[0].mxu0
        %v4516 = vadd.f32 0.0, %v4515
        %v4517 = vpop.f32.mrb[0].mxu0
        %v4518 = vadd.f32 0.0, %v4517
        %4519 = vmatprep.mubr.bf16.mxu0 0
        %4520 = vmatmul.mubr.bf16.gmra.mrb[0].mxu0 %v4416
        %v4521 = vpop.f32.mrb[0].mxu0
        %v4522 = vadd.f32 0.0, %v4521
        %v4523 = vpop.f32.mrb[0].mxu0
        %v4524 = vadd.f32 0.0, %v4523
        %v4525 = vpop.f32.mrb[0].mxu0
        %v4526 = vadd.f32 0.0, %v4525
        %v4527 = vpop.f32.mrb[0].mxu0
        %v4528 = vadd.f32 0.0, %v4527
        %4529 = vmatprep.mubr.bf16.mxu0 0
        %4530 = vmatmul.mubr.bf16.gmra.mrb[0].mxu0 %v4419
        %v4531 = vpop.f32.mrb[0].mxu0
        %v4532 = vadd.f32 0.0, %v4531
        %v4533 = vpop.f32.mrb[0].mxu0
        %v4534 = vadd.f32 0.0, %v4533
        %v4535 = vpop.f32.mrb[0].mxu0
        %v4536 = vadd.f32 0.0, %v4535
        %v4537 = vpop.f32.mrb[0].mxu0
        %v4538 = vadd.f32 0.0, %v4537
        %4539 = vdwg.mxu0
        %v4540 = vadd.f32 %v4277, %v4462
        %v4541 = vadd.f32 %v4278, %v4464
        %v4542 = vadd.f32 %v4279, %v4466
        %v4543 = vadd.f32 %v4280, %v4468
        %v4544 = vadd.f32 %v4281, %v4472
        %v4545 = vadd.f32 %v4282, %v4474
        %v4546 = vadd.f32 %v4283, %v4476
        %v4547 = vadd.f32 %v4284, %v4478
        %v4548 = vadd.f32 %v4285, %v4482
        %v4549 = vadd.f32 %v4286, %v4484
        %v4550 = vadd.f32 %v4287, %v4486
        %v4551 = vadd.f32 %v4288, %v4488
        %v4552 = vadd.f32 %v4289, %v4492
        %v4553 = vadd.f32 %v4290, %v4494
        %v4554 = vadd.f32 %v4291, %v4496
        %v4555 = vadd.f32 %v4292, %v4498
        %v4556 = vadd.f32 %v4293, %v4502
        %v4557 = vadd.f32 %v4294, %v4504
        %v4558 = vadd.f32 %v4295, %v4506
        %v4559 = vadd.f32 %v4296, %v4508
        %v4560 = vadd.f32 %v4297, %v4512
        %v4561 = vadd.f32 %v4298, %v4514
        %v4562 = vadd.f32 %v4299, %v4516
        %v4563 = vadd.f32 %v4300, %v4518
        %v4564 = vadd.f32 %v4301, %v4522
        %v4565 = vadd.f32 %v4302, %v4524
        %v4566 = vadd.f32 %v4303, %v4526
        %v4567 = vadd.f32 %v4304, %v4528
        %v4568 = vadd.f32 %v4305, %v4532
        %v4569 = vadd.f32 %v4306, %v4534
        %v4570 = vadd.f32 %v4307, %v4536
        %v4571 = vadd.f32 %v4308, %v4538
        %4604 = vrot.lane.b32.xlu0 %v4540, 48
        %v4605 = vpop.permute.xlu0 %4604
        %4606 = vrot.lane.b32.xlu0 %v4541, 48
        %v4607 = vpop.permute.xlu0 %4606
        %4608 = vrot.lane.b32.xlu0 %v4542, 48
        %v4609 = vpop.permute.xlu0 %4608
        %4610 = vrot.lane.b32.xlu0 %v4543, 48
        %v4611 = vpop.permute.xlu0 %4610
        %4612 = vrot.lane.b32.xlu0 %v4544, 48
        %v4613 = vpop.permute.xlu0 %4612
        %4614 = vrot.lane.b32.xlu0 %v4545, 48
        %v4615 = vpop.permute.xlu0 %4614
        %4616 = vrot.lane.b32.xlu0 %v4546, 48
        %v4617 = vpop.permute.xlu0 %4616
        %4618 = vrot.lane.b32.xlu0 %v4547, 48
        %v4619 = vpop.permute.xlu0 %4618
        %4620 = vrot.lane.b32.xlu0 %v4548, 48
        %v4621 = vpop.permute.xlu0 %4620
        %4622 = vrot.lane.b32.xlu0 %v4549, 48
        %v4623 = vpop.permute.xlu0 %4622
        %4624 = vrot.lane.b32.xlu0 %v4550, 48
        %v4625 = vpop.permute.xlu0 %4624
        %4626 = vrot.lane.b32.xlu0 %v4551, 48
        %v4627 = vpop.permute.xlu0 %4626
        %4628 = vrot.lane.b32.xlu0 %v4552, 48
        %v4629 = vpop.permute.xlu0 %4628
        %4630 = vrot.lane.b32.xlu0 %v4553, 48
        %v4631 = vpop.permute.xlu0 %4630
        %4632 = vrot.lane.b32.xlu0 %v4554, 48
        %v4633 = vpop.permute.xlu0 %4632
        %4634 = vrot.lane.b32.xlu0 %v4555, 48
        %v4635 = vpop.permute.xlu0 %4634
        %4636 = vrot.lane.b32.xlu0 %v4556, 48
        %v4637 = vpop.permute.xlu0 %4636
        %4638 = vrot.lane.b32.xlu0 %v4557, 48
        %v4639 = vpop.permute.xlu0 %4638
        %4640 = vrot.lane.b32.xlu0 %v4558, 48
        %v4641 = vpop.permute.xlu0 %4640
        %4642 = vrot.lane.b32.xlu0 %v4559, 48
        %v4643 = vpop.permute.xlu0 %4642
        %4644 = vrot.lane.b32.xlu0 %v4560, 48
        %v4645 = vpop.permute.xlu0 %4644
        %4646 = vrot.lane.b32.xlu0 %v4561, 48
        %v4647 = vpop.permute.xlu0 %4646
        %4648 = vrot.lane.b32.xlu0 %v4562, 48
        %v4649 = vpop.permute.xlu0 %4648
        %4650 = vrot.lane.b32.xlu0 %v4563, 48
        %v4651 = vpop.permute.xlu0 %4650
        %4652 = vrot.lane.b32.xlu0 %v4564, 48
        %v4653 = vpop.permute.xlu0 %4652
        %4654 = vrot.lane.b32.xlu0 %v4565, 48
        %v4655 = vpop.permute.xlu0 %4654
        %4656 = vrot.lane.b32.xlu0 %v4566, 48
        %v4657 = vpop.permute.xlu0 %4656
        %4658 = vrot.lane.b32.xlu0 %v4567, 48
        %v4659 = vpop.permute.xlu0 %4658
        %4660 = vrot.lane.b32.xlu0 %v4568, 48
        %v4661 = vpop.permute.xlu0 %4660
        %4662 = vrot.lane.b32.xlu0 %v4569, 48
        %v4663 = vpop.permute.xlu0 %4662
        %4664 = vrot.lane.b32.xlu0 %v4570, 48
        %v4665 = vpop.permute.xlu0 %4664
        %4666 = vrot.lane.b32.xlu0 %v4571, 48
        %v4667 = vpop.permute.xlu0 %4666
        %vm4668 = vcmask 392192
        %v4669 = vsel %vm4668, %v4605, %v4607
        %v4670 = vsel %vm4668, %v4609, %v4611
        %v4671 = vsel %vm4668, %v4613, %v4615
        %v4672 = vsel %vm4668, %v4617, %v4619
        %v4673 = vsel %vm4668, %v4621, %v4623
        %v4674 = vsel %vm4668, %v4625, %v4627
        %v4675 = vsel %vm4668, %v4629, %v4631
        %v4676 = vsel %vm4668, %v4633, %v4635
        %v4677 = vsel %vm4668, %v4637, %v4639
        %v4678 = vsel %vm4668, %v4641, %v4643
        %v4679 = vsel %vm4668, %v4645, %v4647
        %v4680 = vsel %vm4668, %v4649, %v4651
        %v4681 = vsel %vm4668, %v4653, %v4655
        %v4682 = vsel %vm4668, %v4657, %v4659
        %v4683 = vsel %vm4668, %v4661, %v4663
        %v4684 = vsel %vm4668, %v4665, %v4667
        %v4701 = vmax.f32 %v4540, %v4669
        %v4702 = vmax.f32 %v4542, %v4670
        %v4703 = vmax.f32 %v4544, %v4671
        %v4704 = vmax.f32 %v4546, %v4672
        %v4705 = vmax.f32 %v4548, %v4673
        %v4706 = vmax.f32 %v4550, %v4674
        %v4707 = vmax.f32 %v4552, %v4675
        %v4708 = vmax.f32 %v4554, %v4676
        %v4709 = vmax.f32 %v4556, %v4677
        %v4710 = vmax.f32 %v4558, %v4678
        %v4711 = vmax.f32 %v4560, %v4679
        %v4712 = vmax.f32 %v4562, %v4680
        %v4713 = vmax.f32 %v4564, %v4681
        %v4714 = vmax.f32 %v4566, %v4682
        %v4715 = vmax.f32 %v4568, %v4683
        %v4716 = vmax.f32 %v4570, %v4684
        %vm4717 = vcmask 654336
        %4718 = vst.msk [vmem:[#allocation5] sm:$0xff] %vm4717, %v4701
        %4719 = vst.msk [vmem:[#allocation5 + $0x8] sm:$0xff] %vm4717, %v4702
        %4720 = vst.msk [vmem:[#allocation5 + $0x10] sm:$0xff] %vm4717, %v4703
        %4721 = vst.msk [vmem:[#allocation5 + $0x18] sm:$0xff] %vm4717, %v4704
        %4722 = vst.msk [vmem:[#allocation5 + $0x20] sm:$0xff] %vm4717, %v4705
        %4723 = vst.msk [vmem:[#allocation5 + $0x28] sm:$0xff] %vm4717, %v4706
        %4724 = vst.msk [vmem:[#allocation5 + $0x30] sm:$0xff] %vm4717, %v4707
        %4725 = vst.msk [vmem:[#allocation5 + $0x38] sm:$0xff] %vm4717, %v4708
        %4726 = vst.msk [vmem:[#allocation5 + $0x40] sm:$0xff] %vm4717, %v4709
        %4727 = vst.msk [vmem:[#allocation5 + $0x48] sm:$0xff] %vm4717, %v4710
        %4728 = vst.msk [vmem:[#allocation5 + $0x50] sm:$0xff] %vm4717, %v4711
        %4729 = vst.msk [vmem:[#allocation5 + $0x58] sm:$0xff] %vm4717, %v4712
        %4730 = vst.msk [vmem:[#allocation5 + $0x60] sm:$0xff] %vm4717, %v4713
        %4731 = vst.msk [vmem:[#allocation5 + $0x68] sm:$0xff] %vm4717, %v4714
        %4732 = vst.msk [vmem:[#allocation5 + $0x70] sm:$0xff] %vm4717, %v4715
        %4733 = vst.msk [vmem:[#allocation5 + $0x78] sm:$0xff] %vm4717, %v4716
        %v4734 = vld [vmem:[#allocation5] ss:$16 sm:$0x3]
        %v4735 = vld [vmem:[#allocation5] ss:$16 sm:$0xc]
        %v4736 = vor.u32 %v4734, %v4735
        %v4737 = vld [vmem:[#allocation5] ss:$16 sm:$0x30]
        %v4738 = vor.u32 %v4736, %v4737
        %v4739 = vld [vmem:[#allocation5] ss:$16 sm:$0xc0]
        %v4740 = vor.u32 %v4738, %v4739
        %s4741 = scalar_lea.vmem [#allocation5], 1
        %v4742 = vld [vmem:[%s4741] ss:$16 sm:$0x3]
        %v4743 = vld [vmem:[%s4741] ss:$16 sm:$0xc]
        %v4744 = vor.u32 %v4742, %v4743
        %v4745 = vld [vmem:[%s4741] ss:$16 sm:$0x30]
        %v4746 = vor.u32 %v4744, %v4745
        %v4747 = vld [vmem:[%s4741] ss:$16 sm:$0xc0]
        %v4748 = vor.u32 %v4746, %v4747
        %v4749 = vmax.f32 %v4740, %v4748
        %v4750 = vld [vmem:[%s4] sm:$0x1]
        %v4752 = vlaneseq
        %v4753 = vshrl.u32 %v4752, 7
        %v4754 = vsub.s32 0, %v4753
        %v4755 = vrot.slane %v4750, %v4754
        %v4757 = vadd.f32 %v4749, %v4755
        %v4758 = vmax.f32 %v4757, 0.0
        %v4759 = vpack.c.bf16 %v4758, %v4758
        %s4760 = scalar_lea.vmem [#allocation5], 2
        %v4761 = vld [vmem:[%s4760] ss:$16 sm:$0x3]
        %v4762 = vld [vmem:[%s4760] ss:$16 sm:$0xc]
        %v4763 = vor.u32 %v4761, %v4762
        %v4764 = vld [vmem:[%s4760] ss:$16 sm:$0x30]
        %v4765 = vor.u32 %v4763, %v4764
        %v4766 = vld [vmem:[%s4760] ss:$16 sm:$0xc0]
        %v4767 = vor.u32 %v4765, %v4766
        %s4768 = scalar_lea.vmem [#allocation5], 3
        %v4769 = vld [vmem:[%s4768] ss:$16 sm:$0x3]
        %v4770 = vld [vmem:[%s4768] ss:$16 sm:$0xc]
        %v4771 = vor.u32 %v4769, %v4770
        %v4772 = vld [vmem:[%s4768] ss:$16 sm:$0x30]
        %v4773 = vor.u32 %v4771, %v4772
        %v4774 = vld [vmem:[%s4768] ss:$16 sm:$0xc0]
        %v4775 = vor.u32 %v4773, %v4774
        %v4776 = vmax.f32 %v4767, %v4775
        %v4777 = vadd.f32 %v4776, %v4755
        %v4778 = vmax.f32 %v4777, 0.0
        %v4779 = vpack.c.bf16 %v4778, %v4778
        %s4780 = scalar_lea.vmem [#allocation5], 4
        %v4781 = vld [vmem:[%s4780] ss:$16 sm:$0x3]
        %v4782 = vld [vmem:[%s4780] ss:$16 sm:$0xc]
        %v4783 = vor.u32 %v4781, %v4782
        %v4784 = vld [vmem:[%s4780] ss:$16 sm:$0x30]
        %v4785 = vor.u32 %v4783, %v4784
        %v4786 = vld [vmem:[%s4780] ss:$16 sm:$0xc0]
        %v4787 = vor.u32 %v4785, %v4786
        %s4788 = scalar_lea.vmem [#allocation5], 5
        %v4789 = vld [vmem:[%s4788] ss:$16 sm:$0x3]
        %v4790 = vld [vmem:[%s4788] ss:$16 sm:$0xc]
        %v4791 = vor.u32 %v4789, %v4790
        %v4792 = vld [vmem:[%s4788] ss:$16 sm:$0x30]
        %v4793 = vor.u32 %v4791, %v4792
        %v4794 = vld [vmem:[%s4788] ss:$16 sm:$0xc0]
        %v4795 = vor.u32 %v4793, %v4794
        %v4796 = vmax.f32 %v4787, %v4795
        %v4797 = vadd.f32 %v4796, %v4755
        %v4798 = vmax.f32 %v4797, 0.0
        %v4799 = vpack.c.bf16 %v4798, %v4798
        %s4800 = scalar_lea.vmem [#allocation5], 6
        %v4801 = vld [vmem:[%s4800] ss:$16 sm:$0x3]
        %v4802 = vld [vmem:[%s4800] ss:$16 sm:$0xc]
        %v4803 = vor.u32 %v4801, %v4802
        %v4804 = vld [vmem:[%s4800] ss:$16 sm:$0x30]
        %v4805 = vor.u32 %v4803, %v4804
        %v4806 = vld [vmem:[%s4800] ss:$16 sm:$0xc0]
        %v4807 = vor.u32 %v4805, %v4806
        %s4808 = scalar_lea.vmem [#allocation5], 7
        %v4809 = vld [vmem:[%s4808] ss:$16 sm:$0x3]
        %v4810 = vld [vmem:[%s4808] ss:$16 sm:$0xc]
        %v4811 = vor.u32 %v4809, %v4810
        %v4812 = vld [vmem:[%s4808] ss:$16 sm:$0x30]
        %v4813 = vor.u32 %v4811, %v4812
        %v4814 = vld [vmem:[%s4808] ss:$16 sm:$0xc0]
        %v4815 = vor.u32 %v4813, %v4814
        %v4816 = vmax.f32 %v4807, %v4815
        %v4817 = vadd.f32 %v4816, %v4755
        %v4818 = vmax.f32 %v4817, 0.0
        %v4819 = vpack.c.bf16 %v4818, %v4818
        %s4820 = scalar_lea.vmem [#allocation5], 8
        %v4821 = vld [vmem:[%s4820] ss:$16 sm:$0x3]
        %v4822 = vld [vmem:[%s4820] ss:$16 sm:$0xc]
        %v4823 = vor.u32 %v4821, %v4822
        %v4824 = vld [vmem:[%s4820] ss:$16 sm:$0x30]
        %v4825 = vor.u32 %v4823, %v4824
        %v4826 = vld [vmem:[%s4820] ss:$16 sm:$0xc0]
        %v4827 = vor.u32 %v4825, %v4826
        %s4828 = scalar_lea.vmem [#allocation5], 9
        %v4829 = vld [vmem:[%s4828] ss:$16 sm:$0x3]
        %v4830 = vld [vmem:[%s4828] ss:$16 sm:$0xc]
        %v4831 = vor.u32 %v4829, %v4830
        %v4832 = vld [vmem:[%s4828] ss:$16 sm:$0x30]
        %v4833 = vor.u32 %v4831, %v4832
        %v4834 = vld [vmem:[%s4828] ss:$16 sm:$0xc0]
        %v4835 = vor.u32 %v4833, %v4834
        %v4836 = vmax.f32 %v4827, %v4835
        %v4837 = vadd.f32 %v4836, %v4755
        %v4838 = vmax.f32 %v4837, 0.0
        %v4839 = vpack.c.bf16 %v4838, %v4838
        %4841 = vrot.lane.b32.xlu0 %v4779, 80
        %v4842 = vpop.permute.xlu0 %4841
        %4844 = vrot.lane.b32.xlu0 %v4799, 32
        %v4845 = vpop.permute.xlu0 %4844
        %4847 = vrot.lane.b32.xlu0 %v4819, 112
        %v4848 = vpop.permute.xlu0 %4847
        %4850 = vrot.lane.b32.xlu0 %v4839, 64
        %v4851 = vpop.permute.xlu0 %4850
        %v4854 = vsel %vm4717, %v4759, %v4842
        %vm4856 = vcmask 261120
        %v4858 = vsel %vm4856, %v4842, %v4845
        %vm4859 = vcmask 916480
        %v4861 = vsel %vm4859, %v4858, %v4848
        %vm4863 = vcmask 523264
        %v4865 = vsel %vm4863, %v4848, %v4851
        %v4867 = vld [vmem:[%s5] sm:$0xf]
        %v4868 = vld [vmem:[%s5 + $0x4] sm:$0xf]
        %v4869 = vld [vmem:[%s5 + $0x8] sm:$0xf]
        %v4870 = vld [vmem:[%s5 + $0xc] sm:$0xf]
        %v4871 = vld [vmem:[%s5 + $0x10] sm:$0xf]
        %v4872 = vld [vmem:[%s5 + $0x14] sm:$0xf]
        %v4873 = vld [vmem:[%s5 + $0x18] sm:$0xf]
        %v4874 = vld [vmem:[%s5 + $0x1c] sm:$0xf]
        %v4875 = vld [vmem:[%s5 + $0x20] sm:$0xf]
        %v4876 = vld [vmem:[%s5 + $0x24] sm:$0xf]
        %v4877 = vld [vmem:[%s5 + $0x28] sm:$0xf]
        %v4878 = vld [vmem:[%s5 + $0x2c] sm:$0xf]
        %v4879 = vld [vmem:[%s5 + $0x30] sm:$0xf]
        %v4880 = vld [vmem:[%s5 + $0x34] sm:$0xf]
        %v4881 = vld [vmem:[%s5 + $0x38] sm:$0xf]
        %v4882 = vld [vmem:[%s5 + $0x3c] sm:$0xf]
        %v4883 = vld [vmem:[%s5 + $0x40] sm:$0xf]
        %v4884 = vld [vmem:[%s5 + $0x44] sm:$0xf]
        %v4885 = vld [vmem:[%s5 + $0x48] sm:$0xf]
        %v4886 = vld [vmem:[%s5 + $0x4c] sm:$0xf]
        %v4887 = vld [vmem:[%s5 + $0x50] sm:$0xf]
        %v4888 = vld [vmem:[%s5 + $0x54] sm:$0xf]
        %v4889 = vld [vmem:[%s5 + $0x58] sm:$0xf]
        %v4890 = vld [vmem:[%s5 + $0x5c] sm:$0xf]
        %v4891 = vld [vmem:[%s5 + $0x60] sm:$0xf]
        %v4892 = vld [vmem:[%s5 + $0x64] sm:$0xf]
        %v4893 = vld [vmem:[%s5 + $0x68] sm:$0xf]
        %v4894 = vld [vmem:[%s5 + $0x6c] sm:$0xf]
        %v4895 = vld [vmem:[%s5 + $0x70] sm:$0xf]
        %v4896 = vld [vmem:[%s5 + $0x74] sm:$0xf]
        %v4897 = vld [vmem:[%s5 + $0x78] sm:$0xf]
        %v4898 = vld [vmem:[%s5 + $0x7c] sm:$0xf]
        %v4899 = vld [vmem:[%s5 + $0x80] sm:$0xf]
        %v4900 = vld [vmem:[%s5 + $0x84] sm:$0xf]
        %v4901 = vld [vmem:[%s5 + $0x88] sm:$0xf]
        %v4902 = vld [vmem:[%s5 + $0x8c] sm:$0xf]
        %v4903 = vld [vmem:[%s5 + $0x90] sm:$0xf]
        %v4904 = vld [vmem:[%s5 + $0x94] sm:$0xf]
        %v4905 = vld [vmem:[%s5 + $0x98] sm:$0xf]
        %v4906 = vld [vmem:[%s5 + $0x9c] sm:$0xf]
        %v4907 = vld [vmem:[%s5 + $0xa0] sm:$0xf]
        %v4908 = vld [vmem:[%s5 + $0xa4] sm:$0xf]
        %v4909 = vld [vmem:[%s5 + $0xa8] sm:$0xf]
        %v4910 = vld [vmem:[%s5 + $0xac] sm:$0xf]
        %v4911 = vld [vmem:[%s5 + $0xb0] sm:$0xf]
        %v4912 = vld [vmem:[%s5 + $0xb4] sm:$0xf]
        %v4913 = vld [vmem:[%s5 + $0xb8] sm:$0xf]
        %v4914 = vld [vmem:[%s5 + $0xbc] sm:$0xf]
        %v4915 = vld [vmem:[%s5 + $0xc0] sm:$0xf]
        %v4916 = vld [vmem:[%s5 + $0xc4] sm:$0xf]
        %v4917 = vld [vmem:[%s6] sm:$0x1]
        %v4919 = vlaneseq
        %v4920 = vshrl.u32 %v4919, 7
        %v4921 = vsub.s32 0, %v4920
        %v4922 = vrot.slane %v4917, %v4921
        %v4974 = vunpack.c.l.b16 %v4867
        %v4975 = vunpack.c.l.b16 %v4868
        %v4976 = vunpack.c.l.b16 %v4869
        %v4977 = vunpack.c.l.b16 %v4870
        %v4978 = vunpack.c.l.b16 %v4871
        %v4979 = vunpack.c.l.b16 %v4872
        %v4980 = vunpack.c.l.b16 %v4873
        %v4981 = vunpack.c.l.b16 %v4874
        %v4982 = vunpack.c.l.b16 %v4875
        %v4983 = vunpack.c.l.b16 %v4876
        %v4984 = vunpack.c.l.b16 %v4877
        %v4985 = vunpack.c.l.b16 %v4878
        %v4986 = vunpack.c.l.b16 %v4879
        %v4987 = vunpack.c.l.b16 %v4880
        %v4988 = vunpack.c.l.b16 %v4881
        %v4989 = vunpack.c.l.b16 %v4882
        %v4990 = vunpack.c.l.b16 %v4883
        %v4991 = vunpack.c.l.b16 %v4884
        %v4992 = vunpack.c.l.b16 %v4885
        %v4993 = vunpack.c.l.b16 %v4886
        %v4994 = vunpack.c.l.b16 %v4887
        %v4995 = vunpack.c.l.b16 %v4888
        %v4996 = vunpack.c.l.b16 %v4889
        %v4997 = vunpack.c.l.b16 %v4890
        %v4998 = vunpack.c.l.b16 %v4891
        %v4999 = vunpack.c.l.b16 %v4892
        %v5000 = vunpack.c.l.b16 %v4893
        %v5001 = vunpack.c.l.b16 %v4894
        %v5002 = vunpack.c.l.b16 %v4895
        %v5003 = vunpack.c.l.b16 %v4896
        %v5004 = vunpack.c.l.b16 %v4897
        %v5005 = vunpack.c.l.b16 %v4898
        %v5006 = vunpack.c.l.b16 %v4899
        %v5007 = vunpack.c.l.b16 %v4900
        %v5008 = vunpack.c.l.b16 %v4901
        %v5009 = vunpack.c.l.b16 %v4902
        %v5010 = vunpack.c.l.b16 %v4903
        %v5011 = vunpack.c.l.b16 %v4904
        %v5012 = vunpack.c.l.b16 %v4905
        %v5013 = vunpack.c.l.b16 %v4906
        %v5014 = vunpack.c.l.b16 %v4907
        %v5015 = vunpack.c.l.b16 %v4908
        %v5016 = vunpack.c.l.b16 %v4909
        %v5017 = vunpack.c.l.b16 %v4910
        %v5018 = vunpack.c.l.b16 %v4911
        %v5019 = vunpack.c.l.b16 %v4912
        %v5020 = vunpack.c.l.b16 %v4913
        %v5021 = vunpack.c.l.b16 %v4914
        %v5022 = vunpack.c.l.b16 %v4915
        %v5023 = vunpack.c.l.b16 %v4916
        %v5024 = vpack.c.b16 %v4975, %v4974
        %v5025 = vpack.c.b16 %v4977, %v4976
        %v5026 = vpack.c.b16 %v4979, %v4978
        %v5027 = vpack.c.b16 %v4981, %v4980
        %v5028 = vpack.c.b16 %v4983, %v4982
        %v5029 = vpack.c.b16 %v4985, %v4984
        %v5030 = vpack.c.b16 %v4987, %v4986
        %v5031 = vpack.c.b16 %v4989, %v4988
        %v5032 = vpack.c.b16 %v4991, %v4990
        %v5033 = vpack.c.b16 %v4993, %v4992
        %v5034 = vpack.c.b16 %v4995, %v4994
        %v5035 = vpack.c.b16 %v4997, %v4996
        %v5036 = vpack.c.b16 %v4999, %v4998
        %v5037 = vpack.c.b16 %v5001, %v5000
        %v5038 = vpack.c.b16 %v5003, %v5002
        %v5039 = vpack.c.b16 %v5005, %v5004
        %v5040 = vpack.c.b16 %v5007, %v5006
        %v5041 = vpack.c.b16 %v5009, %v5008
        %v5042 = vpack.c.b16 %v5011, %v5010
        %v5043 = vpack.c.b16 %v5013, %v5012
        %v5044 = vpack.c.b16 %v5015, %v5014
        %v5045 = vpack.c.b16 %v5017, %v5016
        %v5046 = vpack.c.b16 %v5019, %v5018
        %v5047 = vpack.c.b16 %v5021, %v5020
        %v5048 = vpack.c.b16 %v5023, %v5022
        %vm5074 = vcmask 130048
        %v5075 = vsel %vm5074, %v4851, 0
        %5077 = vmatprep.subr.bf16.mxu0 0
        %5078 = vmatpush1.bf16.msra.mxu0 %v5024
        %5079 = vmatprep.subr.bf16.mxu0 0
        %5080 = vmatpush1.bf16.msra.mxu0 %v5025
        %5081 = vmatprep.subr.bf16.mxu0 0
        %5082 = vmatpush1.bf16.msra.mxu0 %v5026
        %5083 = vmatprep.subr.bf16.mxu0 0
        %5084 = vmatpush1.bf16.msra.mxu0 %v5027
        %5085 = vmatprep.subr.bf16.mxu0 0
        %5086 = vmatpush1.bf16.msra.mxu0 %v5028
        %5087 = vmatprep.subr.bf16.mxu0 0
        %5088 = vmatpush1.bf16.msra.mxu0 %v5029
        %5089 = vmatprep.subr.bf16.mxu0 0
        %5090 = vmatpush1.bf16.msra.mxu0 %v5030
        %5091 = vmatprep.subr.bf16.mxu0 0
        %5092 = vmatpush1.bf16.msra.mxu0 %v5031
        %5093 = vmatprep.subr.bf16.mxu0 0
        %5094 = vmatpush1.bf16.msra.mxu0 %v5032
        %5095 = vmatprep.subr.bf16.mxu0 0
        %5096 = vmatpush1.bf16.msra.mxu0 %v5033
        %5097 = vmatprep.subr.bf16.mxu0 0
        %5098 = vmatpush1.bf16.msra.mxu0 %v5034
        %5099 = vmatprep.subr.bf16.mxu0 0
        %5100 = vmatpush1.bf16.msra.mxu0 %v5035
        %5101 = vmatprep.subr.bf16.mxu0 0
        %5102 = vmatpush1.bf16.msra.mxu0 %v5036
        %5103 = vmatprep.subr.bf16.mxu0 0
        %5104 = vmatpush1.bf16.msra.mxu0 %v5037
        %5105 = vmatprep.subr.bf16.mxu0 0
        %5106 = vmatpush1.bf16.msra.mxu0 %v5038
        %5107 = vmatprep.subr.bf16.mxu0 0
        %5108 = vmatpush1.bf16.msra.mxu0 %v5039
        %5109 = vmatprep.mubr.bf16.mxu0 %v4861
        %5110 = vmatmul.mubr.bf16.gmra.mrb[0].mxu0 %v4854
        %v5111 = vpop.f32.mrb[0].mxu0
        %v5112 = vadd.f32 %v4922, %v5111
        %v5113 = vpop.f32.mrb[0].mxu0
        %v5114 = vpop.f32.mrb[0].mxu0
        %v5115 = vpop.f32.mrb[0].mxu0
        %5116 = vdwg.mxu0
        %5117 = vmatprep.subr.bf16.mxu0 0
        %5118 = vmatpush1.bf16.msra.mxu0 %v5040
        %5119 = vmatprep.subr.bf16.mxu0 0
        %5120 = vmatpush1.bf16.msra.mxu0 %v5041
        %5121 = vmatprep.subr.bf16.mxu0 0
        %5122 = vmatpush1.bf16.msra.mxu0 %v5042
        %5123 = vmatprep.subr.bf16.mxu0 0
        %5124 = vmatpush1.bf16.msra.mxu0 %v5043
        %5125 = vmatprep.subr.bf16.mxu0 0
        %5126 = vmatpush1.bf16.msra.mxu0 %v5044
        %5127 = vmatprep.subr.bf16.mxu0 0
        %5128 = vmatpush1.bf16.msra.mxu0 %v5045
        %5129 = vmatprep.subr.bf16.mxu0 0
        %5130 = vmatpush1.bf16.msra.mxu0 %v5046
        %5131 = vmatprep.subr.bf16.mxu0 0
        %5132 = vmatpush1.bf16.msra.mxu0 %v5047
        %5133 = vmatprep.subr.bf16.mxu0 0
        %5134 = vmatpush1.bf16.msra.mxu0 %v5048
        %5135 = vmatprep.subr.bf16.mxu0 0
        %5136 = vmatpush1.bf16.msra.mxu0 0
        %5137 = vmatprep.subr.bf16.mxu0 0
        %5138 = vmatpush1.bf16.msra.mxu0 0
        %5139 = vmatprep.subr.bf16.mxu0 0
        %5140 = vmatpush1.bf16.msra.mxu0 0
        %5141 = vmatprep.subr.bf16.mxu0 0
        %5142 = vmatpush1.bf16.msra.mxu0 0
        %5143 = vmatprep.subr.bf16.mxu0 0
        %5144 = vmatpush1.bf16.msra.mxu0 0
        %5145 = vmatprep.subr.bf16.mxu0 0
        %5146 = vmatpush1.bf16.msra.mxu0 0
        %5147 = vmatprep.subr.bf16.mxu0 0
        %5148 = vmatpush1.bf16.msra.mxu0 0
        %5149 = vmatprep.mubr.bf16.mxu0 %v5075
        %5150 = vmatmul.mubr.bf16.gmra.mrb[0].mxu0 %v4865
        %v5151 = vpop.f32.mrb[0].mxu0
        %v5152 = vadd.f32 %v5112, %v5151
        %v5153 = vpop.f32.mrb[0].mxu0
        %v5154 = vpop.f32.mrb[0].mxu0
        %v5155 = vpop.f32.mrb[0].mxu0
        %5156 = vdwg.mxu0
        %v5157 = vmax.f32 %v5152, 0.0
        %v5158 = vpack.c.bf16 %v5157, %v5157
        %v5159 = vld [vmem:[%s7] sm:$0xf]
        %v5160 = vld [vmem:[%s7 + $0x4] sm:$0xf]
        %v5161 = vld [vmem:[%s7 + $0x8] sm:$0xf]
        %v5162 = vld [vmem:[%s7 + $0xc] sm:$0xf]
        %v5163 = vld [vmem:[%s7 + $0x10] sm:$0xf]
        %v5164 = vld [vmem:[%s7 + $0x14] sm:$0xf]
        %v5165 = vld [vmem:[%s7 + $0x18] sm:$0xf]
        %v5166 = vld [vmem:[%s7 + $0x1c] sm:$0xf]
        %v5167 = vld [vmem:[%s7 + $0x20] sm:$0xf]
        %v5168 = vld [vmem:[%s7 + $0x24] sm:$0xf]
        %v5169 = vld [vmem:[%s7 + $0x28] sm:$0xf]
        %v5170 = vld [vmem:[%s7 + $0x2c] sm:$0xf]
        %v5171 = vld [vmem:[%s7 + $0x30] sm:$0xf]
        %v5172 = vld [vmem:[%s7 + $0x34] sm:$0xf]
        %v5173 = vld [vmem:[%s7 + $0x38] sm:$0xf]
        %v5174 = vld [vmem:[%s8] sm:$0x1]
        %v5176 = vlaneseq
        %v5177 = vshrl.u32 %v5176, 7
        %v5178 = vsub.s32 0, %v5177
        %v5179 = vrot.slane %v5174, %v5178
        %v5196 = vunpack.c.l.b16 %v5159
        %v5197 = vunpack.c.l.b16 %v5160
        %v5198 = vunpack.c.l.b16 %v5161
        %v5199 = vunpack.c.l.b16 %v5162
        %v5200 = vunpack.c.l.b16 %v5163
        %v5201 = vunpack.c.l.b16 %v5164
        %v5202 = vunpack.c.l.b16 %v5165
        %v5203 = vunpack.c.l.b16 %v5166
        %v5204 = vunpack.c.l.b16 %v5167
        %v5205 = vunpack.c.l.b16 %v5168
        %v5206 = vunpack.c.l.b16 %v5169
        %v5207 = vunpack.c.l.b16 %v5170
        %v5208 = vunpack.c.l.b16 %v5171
        %v5209 = vunpack.c.l.b16 %v5172
        %v5210 = vunpack.c.l.b16 %v5173
        %v5211 = vpack.c.b16 %v5197, %v5196
        %v5212 = vpack.c.b16 %v5199, %v5198
        %v5213 = vpack.c.b16 %v5201, %v5200
        %v5214 = vpack.c.b16 %v5203, %v5202
        %v5215 = vpack.c.b16 %v5205, %v5204
        %v5216 = vpack.c.b16 %v5207, %v5206
        %v5217 = vpack.c.b16 %v5209, %v5208
        %v5218 = vpack.c.b16 %v5210, %v5210
        %vm5226 = vcmask 982016
        %v5228 = vsel %vm5226, %v5158, 0
        %vm5230 = vcmask 1043456
        %v5232 = vsel %vm5230, %v5218, 0
        %5234 = vmatprep.subr.bf16.mxu0 0
        %5235 = vmatpush1.bf16.msra.mxu0 %v5211
        %5236 = vmatprep.subr.bf16.mxu0 0
        %5237 = vmatpush1.bf16.msra.mxu0 %v5212
        %5238 = vmatprep.subr.bf16.mxu0 0
        %5239 = vmatpush1.bf16.msra.mxu0 %v5213
        %5240 = vmatprep.subr.bf16.mxu0 0
        %5241 = vmatpush1.bf16.msra.mxu0 %v5214
        %5242 = vmatprep.subr.bf16.mxu0 0
        %5243 = vmatpush1.bf16.msra.mxu0 %v5215
        %5244 = vmatprep.subr.bf16.mxu0 0
        %5245 = vmatpush1.bf16.msra.mxu0 %v5216
        %5246 = vmatprep.subr.bf16.mxu0 0
        %5247 = vmatpush1.bf16.msra.mxu0 %v5217
        %5248 = vmatprep.subr.bf16.mxu0 0
        %5249 = vmatpush1.bf16.msra.mxu0 %v5232
        %5250 = vmatprep.subr.bf16.mxu0 0
        %5251 = vmatpush1.bf16.msra.mxu0 0
        %5252 = vmatprep.subr.bf16.mxu0 0
        %5253 = vmatpush1.bf16.msra.mxu0 0
        %5254 = vmatprep.subr.bf16.mxu0 0
        %5255 = vmatpush1.bf16.msra.mxu0 0
        %5256 = vmatprep.subr.bf16.mxu0 0
        %5257 = vmatpush1.bf16.msra.mxu0 0
        %5258 = vmatprep.subr.bf16.mxu0 0
        %5259 = vmatpush1.bf16.msra.mxu0 0
        %5260 = vmatprep.subr.bf16.mxu0 0
        %5261 = vmatpush1.bf16.msra.mxu0 0
        %5262 = vmatprep.subr.bf16.mxu0 0
        %5263 = vmatpush1.bf16.msra.mxu0 0
        %5264 = vmatprep.subr.bf16.mxu0 0
        %5265 = vmatpush1.bf16.msra.mxu0 0
        %5266 = vmatprep.mubr.bf16.mxu0 0
        %5267 = vmatmul.mubr.bf16.gmra.mrb[0].mxu0 %v5228
        %v5268 = vpop.f32.mrb[0].mxu0
        %v5269 = vadd.f32 %v5179, %v5268
        %v5270 = vpop.f32.mrb[0].mxu0
        %v5271 = vpop.f32.mrb[0].mxu0
        %v5272 = vpop.f32.mrb[0].mxu0
        %5273 = vdwg.mxu0
        %v5274 = vmax.f32 %v5269, 0.0
        %v5275 = vpack.c.bf16 %v5274, %v5274
        %v5276 = vld [vmem:[%s9] sm:$0xf]
        %v5277 = vld [vmem:[%s9 + $0x4] sm:$0xf]
        %v5278 = vld [vmem:[%s9 + $0x8] sm:$0xf]
        %v5279 = vld [vmem:[%s9 + $0xc] sm:$0xf]
        %v5280 = vld [vmem:[%s9 + $0x10] sm:$0xf]
        %v5281 = vld [vmem:[%s9 + $0x14] sm:$0xf]
        %v5282 = vld [vmem:[%s9 + $0x18] sm:$0xf]
        %v5283 = vld [vmem:[%s9 + $0x1c] sm:$0xf]
        %v5284 = vld [vmem:[%s9 + $0x20] sm:$0xf]
        %v5285 = vld [vmem:[%s9 + $0x24] sm:$0xf]
        %v5286 = vld [vmem:[%s9 + $0x28] sm:$0x3]
        %v5287 = vld [vmem:[%s10] sm:$0x1]
        %v5289 = vlaneseq
        %v5290 = vshrl.u32 %v5289, 7
        %v5291 = vsub.s32 0, %v5290
        %v5292 = vrot.slane %v5287, %v5291
        %v5305 = vunpack.c.l.b16 %v5276
        %v5306 = vunpack.c.l.b16 %v5277
        %v5307 = vunpack.c.l.b16 %v5278
        %v5308 = vunpack.c.l.b16 %v5279
        %v5309 = vunpack.c.l.b16 %v5280
        %v5310 = vunpack.c.l.b16 %v5281
        %v5311 = vunpack.c.l.b16 %v5282
        %v5312 = vunpack.c.l.b16 %v5283
        %v5313 = vunpack.c.l.b16 %v5284
        %v5314 = vunpack.c.l.b16 %v5285
        %v5315 = vunpack.c.l.b16 %v5286
        %v5316 = vpack.c.b16 %v5306, %v5305
        %v5317 = vpack.c.b16 %v5308, %v5307
        %v5318 = vpack.c.b16 %v5310, %v5309
        %v5319 = vpack.c.b16 %v5312, %v5311
        %v5320 = vpack.c.b16 %v5314, %v5313
        %v5321 = vpack.c.b16 %v5315, %v5315
        %v5328 = vsel %vm2982, %v5275, 0
        %v5331 = vsel %vm3445, %v5321, 0
        %5333 = vmatprep.subr.bf16.mxu0 0
        %5334 = vmatpush1.bf16.msra.mxu0 %v5316
        %5335 = vmatprep.subr.bf16.mxu0 0
        %5336 = vmatpush1.bf16.msra.mxu0 %v5317
        %5337 = vmatprep.subr.bf16.mxu0 0
        %5338 = vmatpush1.bf16.msra.mxu0 %v5318
        %5339 = vmatprep.subr.bf16.mxu0 0
        %5340 = vmatpush1.bf16.msra.mxu0 %v5319
        %5341 = vmatprep.subr.bf16.mxu0 0
        %5342 = vmatpush1.bf16.msra.mxu0 %v5320
        %5343 = vmatprep.subr.bf16.mxu0 0
        %5344 = vmatpush1.bf16.msra.mxu0 %v5331
        %5345 = vmatprep.subr.bf16.mxu0 0
        %5346 = vmatpush1.bf16.msra.mxu0 0
        %5347 = vmatprep.subr.bf16.mxu0 0
        %5348 = vmatpush1.bf16.msra.mxu0 0
        %5349 = vmatprep.subr.bf16.mxu0 0
        %5350 = vmatpush1.bf16.msra.mxu0 0
        %5351 = vmatprep.subr.bf16.mxu0 0
        %5352 = vmatpush1.bf16.msra.mxu0 0
        %5353 = vmatprep.subr.bf16.mxu0 0
        %5354 = vmatpush1.bf16.msra.mxu0 0
        %5355 = vmatprep.subr.bf16.mxu0 0
        %5356 = vmatpush1.bf16.msra.mxu0 0
        %5357 = vmatprep.subr.bf16.mxu0 0
        %5358 = vmatpush1.bf16.msra.mxu0 0
        %5359 = vmatprep.subr.bf16.mxu0 0
        %5360 = vmatpush1.bf16.msra.mxu0 0
        %5361 = vmatprep.subr.bf16.mxu0 0
        %5362 = vmatpush1.bf16.msra.mxu0 0
        %5363 = vmatprep.subr.bf16.mxu0 0
        %5364 = vmatpush1.bf16.msra.mxu0 0
        %5365 = vmatprep.mubr.bf16.mxu0 0
        %5366 = vmatmul.mubr.bf16.gmra.mrb[0].mxu0 %v5328
        %v5367 = vpop.f32.mrb[0].mxu0
        %v5368 = vadd.f32 %v5292, %v5367
        %v5369 = vpop.f32.mrb[0].mxu0
        %v5370 = vpop.f32.mrb[0].mxu0
        %v5371 = vpop.f32.mrb[0].mxu0
        %5372 = vdwg.mxu0
        %5373 = vst [vmem:[%s380] sm:$0xff] %v5368
        %s5374 = sand.u32 %s269, 1
        %s5375 = scalar_lea.sflag [#allocation7], %s5374
        %s5376 = sand.u32 %s269, 1
        %s5377 = smul.addr %s5376, 8
        %s5378 = scalar_lea.vmem [#allocation6], %s5377
        // Predicated region
        $region65: #{net_forward.1} parent=63 // pred_check
          %p5379 = pneg %p279
        $region66: #{net_forward.1} parent=63 // pred_check_branch
          %5381 = sbr.rel (%p5379) target = $region68
        $region67: #{net_forward.1} parent=63 // pred_region
          %s5383 = ssub.s32 128, 128
          %5384 = vsyncadd %s5375, %s5383
          %s5385 = smul.addr %s25, 128
          %s5386 = scalar_lea.hbm %s11, %s5385
          %s5388 = sshll.u32 %s5378, 4
          %s5389 = int_to_ptr.vmem [resolvable:$true] %s5388
          %5391 = dma.vmem_to_hbm [thread:$0]  %s5389, 128, %s5386, %s5375
        $region68: #{net_forward.1} parent=63 // pred_fallthru
          _
      $region64: #{net_forward.1} parent=5 // pred_fallthru
        _
      %p5392 = scmp.le.s32.totalorder 2, %s20
      // Predicated region
      $region69: #{net_forward.1} parent=5 // pred_check
        %p5393 = pneg %p5392
      $region70: #{net_forward.1} parent=5 // pred_check_branch
        %5395 = sbr.rel (%p5393) target = $region72
      $region71: #{net_forward.1} parent=5 // pred_region
        %s5396 = ssub.s32 %s20, 2
        // Predicated region
        $region73: #{net_forward.1} parent=71 // pred_check
          %p5397 = pneg %p285
        $region74: #{net_forward.1} parent=71 // pred_check_branch
          %5399 = sbr.rel (%p5397) target = $region76
        $region75: #{net_forward.1} parent=71 // pred_region
          %s5400 = sand.u32 %s270, 1
          %s5401 = scalar_lea.sflag [#allocation7], %s5400
          %s5402 = sand.u32 %s270, 1
          %s5403 = smul.addr %s5402, 8
          %s5404 = scalar_lea.vmem [#allocation6], %s5403
          %5405 = dma.done %s5401, 128
        $region76: #{net_forward.1} parent=71 // pred_fallthru
          _
      $region72: #{net_forward.1} parent=5 // pred_fallthru
        _
    $region6: #{net_forward.1} parent=1 // loop_footer
      %s24 = sadd.s32 1, %s20
    $region7: #{net_forward.1} parent=1 // loop_footer_branch
      %19 = sbr.rel target = $region3
    $region8: #{net_forward.1} parent=1 // loop_exit
      _
    %5406 = vsyncpa [#allocation7], 1
    %s5407 = scalar_lea.sflag [#allocation7], 1
    %5408 = vsyncpa %s5407, 1

</llo_original>
